<compile_context>
chip_gen: v5e
topology: v5e:2x2
jax: 0.10.0
libtpu: 0.0.40
codegen_flags: <defaults>
</compile_context>

<pallas_src>
import functools
import math

import jax
import jax.numpy as jnp
import numpy as np
from jax.experimental import pallas as pl
from jax.experimental.pallas import tpu as pltpu


# ----------------------------------------------------------------------------
# Shared math (used by the Pallas kernel body AND the pure-JAX reference).
# ----------------------------------------------------------------------------
def _layer_norm(x, gamma, beta, eps=1e-5):
    mean = jnp.mean(x, axis=-1, keepdims=True)
    xc = x - mean
    var = jnp.mean(xc * xc, axis=-1, keepdims=True)
    inv = jax.lax.rsqrt(var + eps)
    return xc * inv * gamma + beta


def _erf_poly(x):
    # Abramowitz & Stegun 7.1.26 polynomial erf (|err| <= 1.5e-7). Used instead
    # of lax.erf so the kernel only needs exp/mul/add (guaranteed Mosaic
    # lowering); matches PyTorch's exact-erf nn.GELU to ~1e-7.
    a1, a2, a3, a4, a5 = (0.254829592, -0.284496736, 1.421413741,
                          -1.453152027, 1.061405429)
    p = 0.3275911
    ax = jnp.abs(x)
    t = 1.0 / (1.0 + p * ax)
    poly = ((((a5 * t + a4) * t + a3) * t + a2) * t + a1) * t
    y = 1.0 - poly * jnp.exp(-ax * ax)
    return jnp.where(x < 0, -y, y)


def _gelu_exact(x):
    return 0.5 * x * (1.0 + _erf_poly(x * (1.0 / math.sqrt(2.0))))


def _transformer_math(x, wqkv, wo, bo, ln1_g, ln1_b, ln2_g, ln2_b,
                      w1, b1, w2, b2, *, depth, heads, dim_head):
    """x: (n, dim) float32 tokens for ONE batch element.
    Weights stacked over `depth` on their leading axis; matmul weights bf16."""
    scale = dim_head ** -0.5
    inner = heads * dim_head
    qk_dims = (((1,), (1,)), ((), ()))       # contract last dims: q @ k^T

    for layer in range(depth):
        # ---------------- PreNorm + self-attention --------------------------
        xn = _layer_norm(x, ln1_g[layer], ln1_b[layer])
        qkv = jnp.dot(xn.astype(jnp.bfloat16), wqkv[layer],
                      preferred_element_type=jnp.float32)       # (n, 3*inner)
        q = qkv[:, 0 * inner:1 * inner]
        k = qkv[:, 1 * inner:2 * inner]
        v = qkv[:, 2 * inner:3 * inner]

        head_outs = []
        for h in range(heads):
            sl = slice(h * dim_head, (h + 1) * dim_head)
            qh = q[:, sl].astype(jnp.bfloat16)
            kh = k[:, sl].astype(jnp.bfloat16)
            vh = v[:, sl].astype(jnp.bfloat16)
            dots = jax.lax.dot_general(
                qh, kh, dimension_numbers=qk_dims,
                preferred_element_type=jnp.float32) * scale     # (n, n)
            dots = dots - jnp.max(dots, axis=-1, keepdims=True)
            pexp = jnp.exp(dots)
            attn = pexp / jnp.sum(pexp, axis=-1, keepdims=True)
            head_outs.append(
                jnp.dot(attn.astype(jnp.bfloat16), vh,
                        preferred_element_type=jnp.float32))    # (n, dim_head)

        attn_cat = jnp.concatenate(head_outs, axis=-1)           # (n, inner)
        attn_out = jnp.dot(attn_cat.astype(jnp.bfloat16), wo[layer],
                           preferred_element_type=jnp.float32) + bo[layer]
        x = x + attn_out

        # ---------------- PreNorm + feed-forward ----------------------------
        xn2 = _layer_norm(x, ln2_g[layer], ln2_b[layer])
        h1 = jnp.dot(xn2.astype(jnp.bfloat16), w1[layer],
                     preferred_element_type=jnp.float32) + b1[layer]
        h1 = _gelu_exact(h1)
        ff = jnp.dot(h1.astype(jnp.bfloat16), w2[layer],
                     preferred_element_type=jnp.float32) + b2[layer]
        x = x + ff
    return x


# ----------------------------------------------------------------------------
# Pallas kernel: full Transformer forward for one batch element per grid step.
# ----------------------------------------------------------------------------
def transformer_kernel(x_ref, wqkv_ref, wo_ref, bo_ref,
                       ln1_g_ref, ln1_b_ref, ln2_g_ref, ln2_b_ref,
                       w1_ref, b1_ref, w2_ref, b2_ref, out_ref,
                       *, depth, heads, dim_head):
    out = _transformer_math(
        x_ref[0],
        wqkv_ref[...], wo_ref[...], bo_ref[...],
        ln1_g_ref[...], ln1_b_ref[...], ln2_g_ref[...], ln2_b_ref[...],
        w1_ref[...], b1_ref[...], w2_ref[...], b2_ref[...],
        depth=depth, heads=heads, dim_head=dim_head)
    out_ref[0] = out.astype(out_ref.dtype)


# ----------------------------------------------------------------------------
# Wrapper
# ----------------------------------------------------------------------------
def transformer_forward(x, params, *, heads, dim_head):
    B, N, D = x.shape
    depth = int(params["wqkv"].shape[0])
    inner = heads * dim_head
    mlp_dim = int(params["w1"].shape[-1])

    kernel = functools.partial(transformer_kernel, depth=depth,
                               heads=heads, dim_head=dim_head)

    const3 = lambda b: (0, 0, 0)   # constant index_map -> weights fetched once

    flops = 2 * B * depth * (
        N * D * 3 * inner                     # qkv projection
        + heads * (2 * N * N * dim_head)      # scores + attn @ v
        + N * inner * D                       # output projection
        + 2 * N * D * mlp_dim)                # feed-forward
    transcendentals = B * depth * (heads * N * N + N * mlp_dim)
    bytes_accessed = (2 * x.size * 4
                      + sum(int(v.size) * v.dtype.itemsize
                            for v in params.values()))

    return pl.pallas_call(
        kernel,
        out_shape=jax.ShapeDtypeStruct((B, N, D), jnp.float32),
        grid_spec=pltpu.PrefetchScalarGridSpec(
            num_scalar_prefetch=0,
            grid=(B,),
            in_specs=[
                pl.BlockSpec((1, N, D), lambda b: (b, 0, 0)),      # x
                pl.BlockSpec(params["wqkv"].shape, const3),
                pl.BlockSpec(params["wo"].shape, const3),
                pl.BlockSpec(params["bo"].shape, const3),
                pl.BlockSpec(params["ln1_g"].shape, const3),
                pl.BlockSpec(params["ln1_b"].shape, const3),
                pl.BlockSpec(params["ln2_g"].shape, const3),
                pl.BlockSpec(params["ln2_b"].shape, const3),
                pl.BlockSpec(params["w1"].shape, const3),
                pl.BlockSpec(params["b1"].shape, const3),
                pl.BlockSpec(params["w2"].shape, const3),
                pl.BlockSpec(params["b2"].shape, const3),
            ],
            out_specs=pl.BlockSpec((1, N, D), lambda b: (b, 0, 0)),
        ),
        compiler_params=pltpu.CompilerParams(
            dimension_semantics=("parallel",),          # megacore on v7x
            vmem_limit_bytes=32 * 1024 * 1024,
        ),
        cost_estimate=pl.CostEstimate(
            flops=flops, transcendentals=transcendentals,
            bytes_accessed=bytes_accessed),
    )(x.astype(jnp.float32),
      params["wqkv"], params["wo"], params["bo"],
      params["ln1_g"], params["ln1_b"], params["ln2_g"], params["ln2_b"],
      params["w1"], params["b1"], params["w2"], params["b2"])


# ----------------------------------------------------------------------------
# Demo / correctness check
# ----------------------------------------------------------------------------
if __name__ == "__main__":
    # Small shapes, lane-aligned: dim=128, mlp_dim=256, seq=8, batch=2.
    B, N, D = 2, 8, 128
    depth, heads, dim_head, mlp_dim = 2, 4, 32, 256
    inner = heads * dim_head

    key = jax.random.PRNGKey(0)
    keys = jax.random.split(key, 12)
    f32, bf16 = jnp.float32, jnp.bfloat16

    params = {
        # MXU matmul weights in bf16 (f32 accumulation inside the kernel).
        "wqkv": (0.05 * jax.random.normal(keys[0], (depth, D, 3 * inner), f32)).astype(bf16),
        "wo":   (0.05 * jax.random.normal(keys[1], (depth, inner, D), f32)).astype(bf16),
        "w1":   (0.05 * jax.random.normal(keys[2], (depth, D, mlp_dim), f32)).astype(bf16),
        "w2":   (0.05 * jax.random.normal(keys[3], (depth, mlp_dim, D), f32)).astype(bf16),
        # Biases / LayerNorm params stay f32 (VPU elementwise path).
        "bo":    0.02 * jax.random.normal(keys[4], (depth, 1, D), f32),
        "b1":    0.02 * jax.random.normal(keys[5], (depth, 1, mlp_dim), f32),
        "b2":    0.02 * jax.random.normal(keys[6], (depth, 1, D), f32),
        "ln1_g": 1.0 + 0.1 * jax.random.normal(keys[7], (depth, 1, D), f32),
        "ln1_b": 0.05 * jax.random.normal(keys[8], (depth, 1, D), f32),
        "ln2_g": 1.0 + 0.1 * jax.random.normal(keys[9], (depth, 1, D), f32),
        "ln2_b": 0.05 * jax.random.normal(keys[10], (depth, 1, D), f32),
    }
    x = 0.5 * jax.random.normal(keys[11], (B, N, D), f32)

    out = transformer_forward(x, params, heads=heads, dim_head=dim_head)
    out = jax.block_until_ready(out)

    # Pure-JAX reference using the exact same math (same bf16 matmul casts).
    ref = jax.vmap(lambda xb: _transformer_math(
        xb, params["wqkv"], params["wo"], params["bo"],
        params["ln1_g"], params["ln1_b"], params["ln2_g"], params["ln2_b"],
        params["w1"], params["b1"], params["w2"], params["b2"],
        depth=depth, heads=heads, dim_head=dim_head))(x)

    np.testing.assert_allclose(np.asarray(out), np.asarray(ref),
                               rtol=2e-3, atol=2e-3)
    print("KERNEL_OK")
</pallas_src>

<mosaic_0001>
module attributes {stable_mosaic.version = 11 : i64} {
  func.func @transformer_kernel(%arg0: i32, %arg1: memref<1x8x128xf32, #tpu.memory_space<vmem>>, %arg2: memref<2x128x384xbf16, #tpu.memory_space<vmem>>, %arg3: memref<2x128x128xbf16, #tpu.memory_space<vmem>>, %arg4: memref<2x1x128xf32, #tpu.memory_space<vmem>>, %arg5: memref<2x1x128xf32, #tpu.memory_space<vmem>>, %arg6: memref<2x1x128xf32, #tpu.memory_space<vmem>>, %arg7: memref<2x1x128xf32, #tpu.memory_space<vmem>>, %arg8: memref<2x1x128xf32, #tpu.memory_space<vmem>>, %arg9: memref<2x128x256xbf16, #tpu.memory_space<vmem>>, %arg10: memref<2x1x256xf32, #tpu.memory_space<vmem>>, %arg11: memref<2x256x128xbf16, #tpu.memory_space<vmem>>, %arg12: memref<2x1x128xf32, #tpu.memory_space<vmem>>, %arg13: memref<1x8x128xf32, #tpu.memory_space<vmem>>) attributes {dimension_semantics = [#tpu.dimension_semantics<parallel>], iteration_bounds = array<i64: 2>, scalar_prefetch = 0 : i64, scratch_operands = 0 : i64, tpu.core_type = #tpu.core_type<tc>, window_params = [{transform_indices = @transform_0, window_bounds = array<i64: 1, 8, 128>}, {pipeline_mode = #tpu.pipeline_mode<synchronous>, transform_indices = @transform_1, window_bounds = array<i64: 2, 128, 384>}, {pipeline_mode = #tpu.pipeline_mode<synchronous>, transform_indices = @transform_2, window_bounds = array<i64: 2, 128, 128>}, {pipeline_mode = #tpu.pipeline_mode<synchronous>, transform_indices = @transform_3, window_bounds = array<i64: 2, 1, 128>}, {pipeline_mode = #tpu.pipeline_mode<synchronous>, transform_indices = @transform_4, window_bounds = array<i64: 2, 1, 128>}, {pipeline_mode = #tpu.pipeline_mode<synchronous>, transform_indices = @transform_5, window_bounds = array<i64: 2, 1, 128>}, {pipeline_mode = #tpu.pipeline_mode<synchronous>, transform_indices = @transform_6, window_bounds = array<i64: 2, 1, 128>}, {pipeline_mode = #tpu.pipeline_mode<synchronous>, transform_indices = @transform_7, window_bounds = array<i64: 2, 1, 128>}, {pipeline_mode = #tpu.pipeline_mode<synchronous>, transform_indices = @transform_8, window_bounds = array<i64: 2, 128, 256>}, {pipeline_mode = #tpu.pipeline_mode<synchronous>, transform_indices = @transform_9, window_bounds = array<i64: 2, 1, 256>}, {pipeline_mode = #tpu.pipeline_mode<synchronous>, transform_indices = @transform_10, window_bounds = array<i64: 2, 256, 128>}, {pipeline_mode = #tpu.pipeline_mode<synchronous>, transform_indices = @transform_11, window_bounds = array<i64: 2, 1, 128>}, {transform_indices = @transform_12, window_bounds = array<i64: 1, 8, 128>}]} {
    %c0 = arith.constant 0 : index
    %c0_0 = arith.constant 0 : index
    %c0_1 = arith.constant 0 : index
    %0 = vector.load %arg1[%c0, %c0_0, %c0_1] : memref<1x8x128xf32, #tpu.memory_space<vmem>>, vector<1x8x128xf32>
    %1 = vector.shape_cast %0 : vector<1x8x128xf32> to vector<8x128xf32>
    %c0_2 = arith.constant 0 : index
    %c0_3 = arith.constant 0 : index
    %c0_4 = arith.constant 0 : index
    %2 = vector.load %arg2[%c0_2, %c0_3, %c0_4] : memref<2x128x384xbf16, #tpu.memory_space<vmem>>, vector<2x128x384xbf16>
    %c0_5 = arith.constant 0 : index
    %c0_6 = arith.constant 0 : index
    %c0_7 = arith.constant 0 : index
    %3 = vector.load %arg3[%c0_5, %c0_6, %c0_7] : memref<2x128x128xbf16, #tpu.memory_space<vmem>>, vector<2x128x128xbf16>
    %c0_8 = arith.constant 0 : index
    %c0_9 = arith.constant 0 : index
    %c0_10 = arith.constant 0 : index
    %4 = vector.load %arg4[%c0_8, %c0_9, %c0_10] : memref<2x1x128xf32, #tpu.memory_space<vmem>>, vector<2x1x128xf32>
    %c0_11 = arith.constant 0 : index
    %c0_12 = arith.constant 0 : index
    %c0_13 = arith.constant 0 : index
    %5 = vector.load %arg5[%c0_11, %c0_12, %c0_13] : memref<2x1x128xf32, #tpu.memory_space<vmem>>, vector<2x1x128xf32>
    %c0_14 = arith.constant 0 : index
    %c0_15 = arith.constant 0 : index
    %c0_16 = arith.constant 0 : index
    %6 = vector.load %arg6[%c0_14, %c0_15, %c0_16] : memref<2x1x128xf32, #tpu.memory_space<vmem>>, vector<2x1x128xf32>
    %c0_17 = arith.constant 0 : index
    %c0_18 = arith.constant 0 : index
    %c0_19 = arith.constant 0 : index
    %7 = vector.load %arg7[%c0_17, %c0_18, %c0_19] : memref<2x1x128xf32, #tpu.memory_space<vmem>>, vector<2x1x128xf32>
    %c0_20 = arith.constant 0 : index
    %c0_21 = arith.constant 0 : index
    %c0_22 = arith.constant 0 : index
    %8 = vector.load %arg8[%c0_20, %c0_21, %c0_22] : memref<2x1x128xf32, #tpu.memory_space<vmem>>, vector<2x1x128xf32>
    %c0_23 = arith.constant 0 : index
    %c0_24 = arith.constant 0 : index
    %c0_25 = arith.constant 0 : index
    %9 = vector.load %arg9[%c0_23, %c0_24, %c0_25] : memref<2x128x256xbf16, #tpu.memory_space<vmem>>, vector<2x128x256xbf16>
    %c0_26 = arith.constant 0 : index
    %c0_27 = arith.constant 0 : index
    %c0_28 = arith.constant 0 : index
    %10 = vector.load %arg10[%c0_26, %c0_27, %c0_28] : memref<2x1x256xf32, #tpu.memory_space<vmem>>, vector<2x1x256xf32>
    %c0_29 = arith.constant 0 : index
    %c0_30 = arith.constant 0 : index
    %c0_31 = arith.constant 0 : index
    %11 = vector.load %arg11[%c0_29, %c0_30, %c0_31] : memref<2x256x128xbf16, #tpu.memory_space<vmem>>, vector<2x256x128xbf16>
    %c0_32 = arith.constant 0 : index
    %c0_33 = arith.constant 0 : index
    %c0_34 = arith.constant 0 : index
    %12 = vector.load %arg12[%c0_32, %c0_33, %c0_34] : memref<2x1x128xf32, #tpu.memory_space<vmem>>, vector<2x1x128xf32>
    %13 = vector.extract_strided_slice %5 {offsets = [0, 0, 0], sizes = [1, 1, 128], strides = [1, 1, 1]} : vector<2x1x128xf32> to vector<1x1x128xf32>
    %14 = vector.shape_cast %13 : vector<1x1x128xf32> to vector<1x128xf32>
    %15 = vector.extract_strided_slice %6 {offsets = [0, 0, 0], sizes = [1, 1, 128], strides = [1, 1, 1]} : vector<2x1x128xf32> to vector<1x1x128xf32>
    %16 = vector.shape_cast %15 : vector<1x1x128xf32> to vector<1x128xf32>
    %cst = arith.constant dense<0.000000e+00> : vector<8xf32>
    %17 = vector.multi_reduction <add>, %1, %cst [1] : vector<8x128xf32> to vector<8xf32>
    %18 = vector.shape_cast %17 : vector<8xf32> to vector<8x1xf32>
    %cst_35 = arith.constant 1.280000e+02 : f32
    %19 = vector.broadcast %cst_35 : f32 to vector<8x1xf32>
    %20 = arith.divf %18, %19 : vector<8x1xf32>
    %21 = vector.broadcast %20 : vector<8x1xf32> to vector<8x128xf32>
    %22 = arith.subf %1, %21 : vector<8x128xf32>
    %23 = arith.mulf %22, %22 : vector<8x128xf32>
    %cst_36 = arith.constant dense<0.000000e+00> : vector<8xf32>
    %24 = vector.multi_reduction <add>, %23, %cst_36 [1] : vector<8x128xf32> to vector<8xf32>
    %25 = vector.shape_cast %24 : vector<8xf32> to vector<8x1xf32>
    %cst_37 = arith.constant 1.280000e+02 : f32
    %26 = vector.broadcast %cst_37 : f32 to vector<8x1xf32>
    %27 = arith.divf %25, %26 : vector<8x1xf32>
    %cst_38 = arith.constant 9.99999974E-6 : f32
    %28 = vector.broadcast %cst_38 : f32 to vector<8x1xf32>
    %29 = arith.addf %27, %28 : vector<8x1xf32>
    %30 = math.rsqrt %29 : vector<8x1xf32>
    %31 = vector.broadcast %30 : vector<8x1xf32> to vector<8x128xf32>
    %32 = arith.mulf %22, %31 : vector<8x128xf32>
    %33 = vector.broadcast %14 : vector<1x128xf32> to vector<8x128xf32>
    %34 = arith.mulf %32, %33 : vector<8x128xf32>
    %35 = vector.broadcast %16 : vector<1x128xf32> to vector<8x128xf32>
    %36 = arith.addf %34, %35 : vector<8x128xf32>
    %37 = arith.truncf %36 : vector<8x128xf32> to vector<8x128xbf16>
    %38 = vector.extract_strided_slice %2 {offsets = [0, 0, 0], sizes = [1, 128, 384], strides = [1, 1, 1]} : vector<2x128x384xbf16> to vector<1x128x384xbf16>
    %39 = vector.shape_cast %38 : vector<1x128x384xbf16> to vector<128x384xbf16>
    %cst_39 = arith.constant dense<0.000000e+00> : vector<8x384xf32>
    %40 = tpu.matmul %37, %39, %cst_39 {dimension_numbers = #tpu.dot_dimension_numbers<[1], [0], [0], [1], [0, 0, 1, 1], [], []>} : vector<8x128xbf16>, vector<128x384xbf16>, vector<8x384xf32> -> vector<8x384xf32>
    %41 = vector.extract_strided_slice %40 {offsets = [0, 0], sizes = [8, 128], strides = [1, 1]} : vector<8x384xf32> to vector<8x128xf32>
    %42 = vector.extract_strided_slice %40 {offsets = [0, 128], sizes = [8, 128], strides = [1, 1]} : vector<8x384xf32> to vector<8x128xf32>
    %43 = vector.extract_strided_slice %40 {offsets = [0, 256], sizes = [8, 128], strides = [1, 1]} : vector<8x384xf32> to vector<8x128xf32>
    %44 = vector.extract_strided_slice %41 {offsets = [0, 0], sizes = [8, 32], strides = [1, 1]} : vector<8x128xf32> to vector<8x32xf32>
    %45 = arith.truncf %44 : vector<8x32xf32> to vector<8x32xbf16>
    %46 = vector.extract_strided_slice %42 {offsets = [0, 0], sizes = [8, 32], strides = [1, 1]} : vector<8x128xf32> to vector<8x32xf32>
    %47 = arith.truncf %46 : vector<8x32xf32> to vector<8x32xbf16>
    %48 = vector.extract_strided_slice %43 {offsets = [0, 0], sizes = [8, 32], strides = [1, 1]} : vector<8x128xf32> to vector<8x32xf32>
    %49 = arith.truncf %48 : vector<8x32xf32> to vector<8x32xbf16>
    %cst_40 = arith.constant dense<0.000000e+00> : vector<8x8xf32>
    %50 = tpu.matmul %45, %47, %cst_40 {dimension_numbers = #tpu.dot_dimension_numbers<[1], [1], [0], [0], [0, 0, 1, 0], [], []>} : vector<8x32xbf16>, vector<8x32xbf16>, vector<8x8xf32> -> vector<8x8xf32>
    %cst_41 = arith.constant 0.176776692 : f32
    %51 = vector.broadcast %cst_41 : f32 to vector<8x8xf32>
    %52 = arith.mulf %50, %51 : vector<8x8xf32>
    %cst_42 = arith.constant dense<0xFF800000> : vector<8xf32>
    %53 = vector.multi_reduction <maximumf>, %52, %cst_42 [1] : vector<8x8xf32> to vector<8xf32>
    %54 = vector.shape_cast %53 : vector<8xf32> to vector<8x1xf32>
    %55 = vector.broadcast %54 : vector<8x1xf32> to vector<8x8xf32>
    %56 = arith.subf %52, %55 : vector<8x8xf32>
    %57 = math.exp %56 : vector<8x8xf32>
    %cst_43 = arith.constant dense<0.000000e+00> : vector<8xf32>
    %58 = vector.multi_reduction <add>, %57, %cst_43 [1] : vector<8x8xf32> to vector<8xf32>
    %59 = vector.shape_cast %58 : vector<8xf32> to vector<8x1xf32>
    %60 = vector.broadcast %59 : vector<8x1xf32> to vector<8x8xf32>
    %61 = arith.divf %57, %60 : vector<8x8xf32>
    %62 = arith.truncf %61 : vector<8x8xf32> to vector<8x8xbf16>
    %cst_44 = arith.constant dense<0.000000e+00> : vector<8x32xf32>
    %63 = tpu.matmul %62, %49, %cst_44 {dimension_numbers = #tpu.dot_dimension_numbers<[1], [0], [0], [1], [0, 0, 1, 1], [], []>} : vector<8x8xbf16>, vector<8x32xbf16>, vector<8x32xf32> -> vector<8x32xf32>
    %64 = vector.extract_strided_slice %41 {offsets = [0, 32], sizes = [8, 32], strides = [1, 1]} : vector<8x128xf32> to vector<8x32xf32>
    %65 = arith.truncf %64 : vector<8x32xf32> to vector<8x32xbf16>
    %66 = vector.extract_strided_slice %42 {offsets = [0, 32], sizes = [8, 32], strides = [1, 1]} : vector<8x128xf32> to vector<8x32xf32>
    %67 = arith.truncf %66 : vector<8x32xf32> to vector<8x32xbf16>
    %68 = vector.extract_strided_slice %43 {offsets = [0, 32], sizes = [8, 32], strides = [1, 1]} : vector<8x128xf32> to vector<8x32xf32>
    %69 = arith.truncf %68 : vector<8x32xf32> to vector<8x32xbf16>
    %cst_45 = arith.constant dense<0.000000e+00> : vector<8x8xf32>
    %70 = tpu.matmul %65, %67, %cst_45 {dimension_numbers = #tpu.dot_dimension_numbers<[1], [1], [0], [0], [0, 0, 1, 0], [], []>} : vector<8x32xbf16>, vector<8x32xbf16>, vector<8x8xf32> -> vector<8x8xf32>
    %cst_46 = arith.constant 0.176776692 : f32
    %71 = vector.broadcast %cst_46 : f32 to vector<8x8xf32>
    %72 = arith.mulf %70, %71 : vector<8x8xf32>
    %cst_47 = arith.constant dense<0xFF800000> : vector<8xf32>
    %73 = vector.multi_reduction <maximumf>, %72, %cst_47 [1] : vector<8x8xf32> to vector<8xf32>
    %74 = vector.shape_cast %73 : vector<8xf32> to vector<8x1xf32>
    %75 = vector.broadcast %74 : vector<8x1xf32> to vector<8x8xf32>
    %76 = arith.subf %72, %75 : vector<8x8xf32>
    %77 = math.exp %76 : vector<8x8xf32>
    %cst_48 = arith.constant dense<0.000000e+00> : vector<8xf32>
    %78 = vector.multi_reduction <add>, %77, %cst_48 [1] : vector<8x8xf32> to vector<8xf32>
    %79 = vector.shape_cast %78 : vector<8xf32> to vector<8x1xf32>
    %80 = vector.broadcast %79 : vector<8x1xf32> to vector<8x8xf32>
    %81 = arith.divf %77, %80 : vector<8x8xf32>
    %82 = arith.truncf %81 : vector<8x8xf32> to vector<8x8xbf16>
    %cst_49 = arith.constant dense<0.000000e+00> : vector<8x32xf32>
    %83 = tpu.matmul %82, %69, %cst_49 {dimension_numbers = #tpu.dot_dimension_numbers<[1], [0], [0], [1], [0, 0, 1, 1], [], []>} : vector<8x8xbf16>, vector<8x32xbf16>, vector<8x32xf32> -> vector<8x32xf32>
    %84 = vector.extract_strided_slice %41 {offsets = [0, 64], sizes = [8, 32], strides = [1, 1]} : vector<8x128xf32> to vector<8x32xf32>
    %85 = arith.truncf %84 : vector<8x32xf32> to vector<8x32xbf16>
    %86 = vector.extract_strided_slice %42 {offsets = [0, 64], sizes = [8, 32], strides = [1, 1]} : vector<8x128xf32> to vector<8x32xf32>
    %87 = arith.truncf %86 : vector<8x32xf32> to vector<8x32xbf16>
    %88 = vector.extract_strided_slice %43 {offsets = [0, 64], sizes = [8, 32], strides = [1, 1]} : vector<8x128xf32> to vector<8x32xf32>
    %89 = arith.truncf %88 : vector<8x32xf32> to vector<8x32xbf16>
    %cst_50 = arith.constant dense<0.000000e+00> : vector<8x8xf32>
    %90 = tpu.matmul %85, %87, %cst_50 {dimension_numbers = #tpu.dot_dimension_numbers<[1], [1], [0], [0], [0, 0, 1, 0], [], []>} : vector<8x32xbf16>, vector<8x32xbf16>, vector<8x8xf32> -> vector<8x8xf32>
    %cst_51 = arith.constant 0.176776692 : f32
    %91 = vector.broadcast %cst_51 : f32 to vector<8x8xf32>
    %92 = arith.mulf %90, %91 : vector<8x8xf32>
    %cst_52 = arith.constant dense<0xFF800000> : vector<8xf32>
    %93 = vector.multi_reduction <maximumf>, %92, %cst_52 [1] : vector<8x8xf32> to vector<8xf32>
    %94 = vector.shape_cast %93 : vector<8xf32> to vector<8x1xf32>
    %95 = vector.broadcast %94 : vector<8x1xf32> to vector<8x8xf32>
    %96 = arith.subf %92, %95 : vector<8x8xf32>
    %97 = math.exp %96 : vector<8x8xf32>
    %cst_53 = arith.constant dense<0.000000e+00> : vector<8xf32>
    %98 = vector.multi_reduction <add>, %97, %cst_53 [1] : vector<8x8xf32> to vector<8xf32>
    %99 = vector.shape_cast %98 : vector<8xf32> to vector<8x1xf32>
    %100 = vector.broadcast %99 : vector<8x1xf32> to vector<8x8xf32>
    %101 = arith.divf %97, %100 : vector<8x8xf32>
    %102 = arith.truncf %101 : vector<8x8xf32> to vector<8x8xbf16>
    %cst_54 = arith.constant dense<0.000000e+00> : vector<8x32xf32>
    %103 = tpu.matmul %102, %89, %cst_54 {dimension_numbers = #tpu.dot_dimension_numbers<[1], [0], [0], [1], [0, 0, 1, 1], [], []>} : vector<8x8xbf16>, vector<8x32xbf16>, vector<8x32xf32> -> vector<8x32xf32>
    %104 = vector.extract_strided_slice %41 {offsets = [0, 96], sizes = [8, 32], strides = [1, 1]} : vector<8x128xf32> to vector<8x32xf32>
    %105 = arith.truncf %104 : vector<8x32xf32> to vector<8x32xbf16>
    %106 = vector.extract_strided_slice %42 {offsets = [0, 96], sizes = [8, 32], strides = [1, 1]} : vector<8x128xf32> to vector<8x32xf32>
    %107 = arith.truncf %106 : vector<8x32xf32> to vector<8x32xbf16>
    %108 = vector.extract_strided_slice %43 {offsets = [0, 96], sizes = [8, 32], strides = [1, 1]} : vector<8x128xf32> to vector<8x32xf32>
    %109 = arith.truncf %108 : vector<8x32xf32> to vector<8x32xbf16>
    %cst_55 = arith.constant dense<0.000000e+00> : vector<8x8xf32>
    %110 = tpu.matmul %105, %107, %cst_55 {dimension_numbers = #tpu.dot_dimension_numbers<[1], [1], [0], [0], [0, 0, 1, 0], [], []>} : vector<8x32xbf16>, vector<8x32xbf16>, vector<8x8xf32> -> vector<8x8xf32>
    %cst_56 = arith.constant 0.176776692 : f32
    %111 = vector.broadcast %cst_56 : f32 to vector<8x8xf32>
    %112 = arith.mulf %110, %111 : vector<8x8xf32>
    %cst_57 = arith.constant dense<0xFF800000> : vector<8xf32>
    %113 = vector.multi_reduction <maximumf>, %112, %cst_57 [1] : vector<8x8xf32> to vector<8xf32>
    %114 = vector.shape_cast %113 : vector<8xf32> to vector<8x1xf32>
    %115 = vector.broadcast %114 : vector<8x1xf32> to vector<8x8xf32>
    %116 = arith.subf %112, %115 : vector<8x8xf32>
    %117 = math.exp %116 : vector<8x8xf32>
    %cst_58 = arith.constant dense<0.000000e+00> : vector<8xf32>
    %118 = vector.multi_reduction <add>, %117, %cst_58 [1] : vector<8x8xf32> to vector<8xf32>
    %119 = vector.shape_cast %118 : vector<8xf32> to vector<8x1xf32>
    %120 = vector.broadcast %119 : vector<8x1xf32> to vector<8x8xf32>
    %121 = arith.divf %117, %120 : vector<8x8xf32>
    %122 = arith.truncf %121 : vector<8x8xf32> to vector<8x8xbf16>
    %cst_59 = arith.constant dense<0.000000e+00> : vector<8x32xf32>
    %123 = tpu.matmul %122, %109, %cst_59 {dimension_numbers = #tpu.dot_dimension_numbers<[1], [0], [0], [1], [0, 0, 1, 1], [], []>} : vector<8x8xbf16>, vector<8x32xbf16>, vector<8x32xf32> -> vector<8x32xf32>
    %124 = tpu.concatenate %63, %83, %103, %123 in 1 : vector<8x32xf32>, vector<8x32xf32>, vector<8x32xf32>, vector<8x32xf32> -> vector<8x128xf32>
    %125 = arith.truncf %124 : vector<8x128xf32> to vector<8x128xbf16>
    %126 = vector.extract_strided_slice %3 {offsets = [0, 0, 0], sizes = [1, 128, 128], strides = [1, 1, 1]} : vector<2x128x128xbf16> to vector<1x128x128xbf16>
    %127 = vector.shape_cast %126 : vector<1x128x128xbf16> to vector<128x128xbf16>
    %cst_60 = arith.constant dense<0.000000e+00> : vector<8x128xf32>
    %128 = tpu.matmul %125, %127, %cst_60 {dimension_numbers = #tpu.dot_dimension_numbers<[1], [0], [0], [1], [0, 0, 1, 1], [], []>} : vector<8x128xbf16>, vector<128x128xbf16>, vector<8x128xf32> -> vector<8x128xf32>
    %129 = vector.extract_strided_slice %4 {offsets = [0, 0, 0], sizes = [1, 1, 128], strides = [1, 1, 1]} : vector<2x1x128xf32> to vector<1x1x128xf32>
    %130 = vector.shape_cast %129 : vector<1x1x128xf32> to vector<1x128xf32>
    %131 = vector.broadcast %130 : vector<1x128xf32> to vector<8x128xf32>
    %132 = arith.addf %128, %131 : vector<8x128xf32>
    %133 = arith.addf %1, %132 : vector<8x128xf32>
    %134 = vector.extract_strided_slice %7 {offsets = [0, 0, 0], sizes = [1, 1, 128], strides = [1, 1, 1]} : vector<2x1x128xf32> to vector<1x1x128xf32>
    %135 = vector.shape_cast %134 : vector<1x1x128xf32> to vector<1x128xf32>
    %136 = vector.extract_strided_slice %8 {offsets = [0, 0, 0], sizes = [1, 1, 128], strides = [1, 1, 1]} : vector<2x1x128xf32> to vector<1x1x128xf32>
    %137 = vector.shape_cast %136 : vector<1x1x128xf32> to vector<1x128xf32>
    %cst_61 = arith.constant dense<0.000000e+00> : vector<8xf32>
    %138 = vector.multi_reduction <add>, %133, %cst_61 [1] : vector<8x128xf32> to vector<8xf32>
    %139 = vector.shape_cast %138 : vector<8xf32> to vector<8x1xf32>
    %cst_62 = arith.constant 1.280000e+02 : f32
    %140 = vector.broadcast %cst_62 : f32 to vector<8x1xf32>
    %141 = arith.divf %139, %140 : vector<8x1xf32>
    %142 = vector.broadcast %141 : vector<8x1xf32> to vector<8x128xf32>
    %143 = arith.subf %133, %142 : vector<8x128xf32>
    %144 = arith.mulf %143, %143 : vector<8x128xf32>
    %cst_63 = arith.constant dense<0.000000e+00> : vector<8xf32>
    %145 = vector.multi_reduction <add>, %144, %cst_63 [1] : vector<8x128xf32> to vector<8xf32>
    %146 = vector.shape_cast %145 : vector<8xf32> to vector<8x1xf32>
    %cst_64 = arith.constant 1.280000e+02 : f32
    %147 = vector.broadcast %cst_64 : f32 to vector<8x1xf32>
    %148 = arith.divf %146, %147 : vector<8x1xf32>
    %cst_65 = arith.constant 9.99999974E-6 : f32
    %149 = vector.broadcast %cst_65 : f32 to vector<8x1xf32>
    %150 = arith.addf %148, %149 : vector<8x1xf32>
    %151 = math.rsqrt %150 : vector<8x1xf32>
    %152 = vector.broadcast %151 : vector<8x1xf32> to vector<8x128xf32>
    %153 = arith.mulf %143, %152 : vector<8x128xf32>
    %154 = vector.broadcast %135 : vector<1x128xf32> to vector<8x128xf32>
    %155 = arith.mulf %153, %154 : vector<8x128xf32>
    %156 = vector.broadcast %137 : vector<1x128xf32> to vector<8x128xf32>
    %157 = arith.addf %155, %156 : vector<8x128xf32>
    %158 = arith.truncf %157 : vector<8x128xf32> to vector<8x128xbf16>
    %159 = vector.extract_strided_slice %9 {offsets = [0, 0, 0], sizes = [1, 128, 256], strides = [1, 1, 1]} : vector<2x128x256xbf16> to vector<1x128x256xbf16>
    %160 = vector.shape_cast %159 : vector<1x128x256xbf16> to vector<128x256xbf16>
    %cst_66 = arith.constant dense<0.000000e+00> : vector<8x256xf32>
    %161 = tpu.matmul %158, %160, %cst_66 {dimension_numbers = #tpu.dot_dimension_numbers<[1], [0], [0], [1], [0, 0, 1, 1], [], []>} : vector<8x128xbf16>, vector<128x256xbf16>, vector<8x256xf32> -> vector<8x256xf32>
    %162 = vector.extract_strided_slice %10 {offsets = [0, 0, 0], sizes = [1, 1, 256], strides = [1, 1, 1]} : vector<2x1x256xf32> to vector<1x1x256xf32>
    %163 = vector.shape_cast %162 : vector<1x1x256xf32> to vector<1x256xf32>
    %164 = vector.broadcast %163 : vector<1x256xf32> to vector<8x256xf32>
    %165 = arith.addf %161, %164 : vector<8x256xf32>
    %cst_67 = arith.constant 5.000000e-01 : f32
    %166 = vector.broadcast %cst_67 : f32 to vector<8x256xf32>
    %167 = arith.mulf %166, %165 : vector<8x256xf32>
    %cst_68 = arith.constant 0.707106769 : f32
    %168 = vector.broadcast %cst_68 : f32 to vector<8x256xf32>
    %169 = arith.mulf %165, %168 : vector<8x256xf32>
    %170 = math.absf %169 : vector<8x256xf32>
    %cst_69 = arith.constant 0.327591091 : f32
    %171 = vector.broadcast %cst_69 : f32 to vector<8x256xf32>
    %172 = arith.mulf %171, %170 : vector<8x256xf32>
    %cst_70 = arith.constant 1.000000e+00 : f32
    %173 = vector.broadcast %cst_70 : f32 to vector<8x256xf32>
    %174 = arith.addf %173, %172 : vector<8x256xf32>
    %cst_71 = arith.constant 1.000000e+00 : f32
    %175 = vector.broadcast %cst_71 : f32 to vector<8x256xf32>
    %176 = arith.divf %175, %174 : vector<8x256xf32>
    %cst_72 = arith.constant 1.06140542 : f32
    %177 = vector.broadcast %cst_72 : f32 to vector<8x256xf32>
    %178 = arith.mulf %177, %176 : vector<8x256xf32>
    %cst_73 = arith.constant -1.45315206 : f32
    %179 = vector.broadcast %cst_73 : f32 to vector<8x256xf32>
    %180 = arith.addf %178, %179 : vector<8x256xf32>
    %181 = arith.mulf %180, %176 : vector<8x256xf32>
    %cst_74 = arith.constant 1.42141378 : f32
    %182 = vector.broadcast %cst_74 : f32 to vector<8x256xf32>
    %183 = arith.addf %181, %182 : vector<8x256xf32>
    %184 = arith.mulf %183, %176 : vector<8x256xf32>
    %cst_75 = arith.constant -0.284496725 : f32
    %185 = vector.broadcast %cst_75 : f32 to vector<8x256xf32>
    %186 = arith.addf %184, %185 : vector<8x256xf32>
    %187 = arith.mulf %186, %176 : vector<8x256xf32>
    %cst_76 = arith.constant 0.254829586 : f32
    %188 = vector.broadcast %cst_76 : f32 to vector<8x256xf32>
    %189 = arith.addf %187, %188 : vector<8x256xf32>
    %190 = arith.mulf %189, %176 : vector<8x256xf32>
    %cst_77 = arith.constant 0.000000e+00 : f32
    %191 = vector.broadcast %cst_77 : f32 to vector<8x256xf32>
    %192 = arith.subf %191, %170 : vector<8x256xf32>
    %193 = arith.mulf %192, %170 : vector<8x256xf32>
    %194 = math.exp %193 : vector<8x256xf32>
    %195 = arith.mulf %190, %194 : vector<8x256xf32>
    %cst_78 = arith.constant 1.000000e+00 : f32
    %196 = vector.broadcast %cst_78 : f32 to vector<8x256xf32>
    %197 = arith.subf %196, %195 : vector<8x256xf32>
    %cst_79 = arith.constant 0.000000e+00 : f32
    %198 = vector.broadcast %cst_79 : f32 to vector<8x256xf32>
    %199 = arith.cmpf olt, %169, %198 : vector<8x256xf32>
    %cst_80 = arith.constant 0.000000e+00 : f32
    %200 = vector.broadcast %cst_80 : f32 to vector<8x256xf32>
    %201 = arith.subf %200, %197 : vector<8x256xf32>
    %202 = arith.select %199, %201, %197 : vector<8x256xi1>, vector<8x256xf32>
    %cst_81 = arith.constant 1.000000e+00 : f32
    %203 = vector.broadcast %cst_81 : f32 to vector<8x256xf32>
    %204 = arith.addf %203, %202 : vector<8x256xf32>
    %205 = arith.mulf %167, %204 : vector<8x256xf32>
    %206 = arith.truncf %205 : vector<8x256xf32> to vector<8x256xbf16>
    %207 = vector.extract_strided_slice %11 {offsets = [0, 0, 0], sizes = [1, 256, 128], strides = [1, 1, 1]} : vector<2x256x128xbf16> to vector<1x256x128xbf16>
    %208 = vector.shape_cast %207 : vector<1x256x128xbf16> to vector<256x128xbf16>
    %cst_82 = arith.constant dense<0.000000e+00> : vector<8x128xf32>
    %209 = tpu.matmul %206, %208, %cst_82 {dimension_numbers = #tpu.dot_dimension_numbers<[1], [0], [0], [1], [0, 0, 1, 1], [], []>} : vector<8x256xbf16>, vector<256x128xbf16>, vector<8x128xf32> -> vector<8x128xf32>
    %210 = vector.extract_strided_slice %12 {offsets = [0, 0, 0], sizes = [1, 1, 128], strides = [1, 1, 1]} : vector<2x1x128xf32> to vector<1x1x128xf32>
    %211 = vector.shape_cast %210 : vector<1x1x128xf32> to vector<1x128xf32>
    %212 = vector.broadcast %211 : vector<1x128xf32> to vector<8x128xf32>
    %213 = arith.addf %209, %212 : vector<8x128xf32>
    %214 = arith.addf %133, %213 : vector<8x128xf32>
    %215 = vector.extract_strided_slice %5 {offsets = [1, 0, 0], sizes = [1, 1, 128], strides = [1, 1, 1]} : vector<2x1x128xf32> to vector<1x1x128xf32>
    %216 = vector.shape_cast %215 : vector<1x1x128xf32> to vector<1x128xf32>
    %217 = vector.extract_strided_slice %6 {offsets = [1, 0, 0], sizes = [1, 1, 128], strides = [1, 1, 1]} : vector<2x1x128xf32> to vector<1x1x128xf32>
    %218 = vector.shape_cast %217 : vector<1x1x128xf32> to vector<1x128xf32>
    %cst_83 = arith.constant dense<0.000000e+00> : vector<8xf32>
    %219 = vector.multi_reduction <add>, %214, %cst_83 [1] : vector<8x128xf32> to vector<8xf32>
    %220 = vector.shape_cast %219 : vector<8xf32> to vector<8x1xf32>
    %cst_84 = arith.constant 1.280000e+02 : f32
    %221 = vector.broadcast %cst_84 : f32 to vector<8x1xf32>
    %222 = arith.divf %220, %221 : vector<8x1xf32>
    %223 = vector.broadcast %222 : vector<8x1xf32> to vector<8x128xf32>
    %224 = arith.subf %214, %223 : vector<8x128xf32>
    %225 = arith.mulf %224, %224 : vector<8x128xf32>
    %cst_85 = arith.constant dense<0.000000e+00> : vector<8xf32>
    %226 = vector.multi_reduction <add>, %225, %cst_85 [1] : vector<8x128xf32> to vector<8xf32>
    %227 = vector.shape_cast %226 : vector<8xf32> to vector<8x1xf32>
    %cst_86 = arith.constant 1.280000e+02 : f32
    %228 = vector.broadcast %cst_86 : f32 to vector<8x1xf32>
    %229 = arith.divf %227, %228 : vector<8x1xf32>
    %cst_87 = arith.constant 9.99999974E-6 : f32
    %230 = vector.broadcast %cst_87 : f32 to vector<8x1xf32>
    %231 = arith.addf %229, %230 : vector<8x1xf32>
    %232 = math.rsqrt %231 : vector<8x1xf32>
    %233 = vector.broadcast %232 : vector<8x1xf32> to vector<8x128xf32>
    %234 = arith.mulf %224, %233 : vector<8x128xf32>
    %235 = vector.broadcast %216 : vector<1x128xf32> to vector<8x128xf32>
    %236 = arith.mulf %234, %235 : vector<8x128xf32>
    %237 = vector.broadcast %218 : vector<1x128xf32> to vector<8x128xf32>
    %238 = arith.addf %236, %237 : vector<8x128xf32>
    %239 = arith.truncf %238 : vector<8x128xf32> to vector<8x128xbf16>
    %240 = vector.extract_strided_slice %2 {offsets = [1, 0, 0], sizes = [1, 128, 384], strides = [1, 1, 1]} : vector<2x128x384xbf16> to vector<1x128x384xbf16>
    %241 = vector.shape_cast %240 : vector<1x128x384xbf16> to vector<128x384xbf16>
    %cst_88 = arith.constant dense<0.000000e+00> : vector<8x384xf32>
    %242 = tpu.matmul %239, %241, %cst_88 {dimension_numbers = #tpu.dot_dimension_numbers<[1], [0], [0], [1], [0, 0, 1, 1], [], []>} : vector<8x128xbf16>, vector<128x384xbf16>, vector<8x384xf32> -> vector<8x384xf32>
    %243 = vector.extract_strided_slice %242 {offsets = [0, 0], sizes = [8, 128], strides = [1, 1]} : vector<8x384xf32> to vector<8x128xf32>
    %244 = vector.extract_strided_slice %242 {offsets = [0, 128], sizes = [8, 128], strides = [1, 1]} : vector<8x384xf32> to vector<8x128xf32>
    %245 = vector.extract_strided_slice %242 {offsets = [0, 256], sizes = [8, 128], strides = [1, 1]} : vector<8x384xf32> to vector<8x128xf32>
    %246 = vector.extract_strided_slice %243 {offsets = [0, 0], sizes = [8, 32], strides = [1, 1]} : vector<8x128xf32> to vector<8x32xf32>
    %247 = arith.truncf %246 : vector<8x32xf32> to vector<8x32xbf16>
    %248 = vector.extract_strided_slice %244 {offsets = [0, 0], sizes = [8, 32], strides = [1, 1]} : vector<8x128xf32> to vector<8x32xf32>
    %249 = arith.truncf %248 : vector<8x32xf32> to vector<8x32xbf16>
    %250 = vector.extract_strided_slice %245 {offsets = [0, 0], sizes = [8, 32], strides = [1, 1]} : vector<8x128xf32> to vector<8x32xf32>
    %251 = arith.truncf %250 : vector<8x32xf32> to vector<8x32xbf16>
    %cst_89 = arith.constant dense<0.000000e+00> : vector<8x8xf32>
    %252 = tpu.matmul %247, %249, %cst_89 {dimension_numbers = #tpu.dot_dimension_numbers<[1], [1], [0], [0], [0, 0, 1, 0], [], []>} : vector<8x32xbf16>, vector<8x32xbf16>, vector<8x8xf32> -> vector<8x8xf32>
    %cst_90 = arith.constant 0.176776692 : f32
    %253 = vector.broadcast %cst_90 : f32 to vector<8x8xf32>
    %254 = arith.mulf %252, %253 : vector<8x8xf32>
    %cst_91 = arith.constant dense<0xFF800000> : vector<8xf32>
    %255 = vector.multi_reduction <maximumf>, %254, %cst_91 [1] : vector<8x8xf32> to vector<8xf32>
    %256 = vector.shape_cast %255 : vector<8xf32> to vector<8x1xf32>
    %257 = vector.broadcast %256 : vector<8x1xf32> to vector<8x8xf32>
    %258 = arith.subf %254, %257 : vector<8x8xf32>
    %259 = math.exp %258 : vector<8x8xf32>
    %cst_92 = arith.constant dense<0.000000e+00> : vector<8xf32>
    %260 = vector.multi_reduction <add>, %259, %cst_92 [1] : vector<8x8xf32> to vector<8xf32>
    %261 = vector.shape_cast %260 : vector<8xf32> to vector<8x1xf32>
    %262 = vector.broadcast %261 : vector<8x1xf32> to vector<8x8xf32>
    %263 = arith.divf %259, %262 : vector<8x8xf32>
    %264 = arith.truncf %263 : vector<8x8xf32> to vector<8x8xbf16>
    %cst_93 = arith.constant dense<0.000000e+00> : vector<8x32xf32>
    %265 = tpu.matmul %264, %251, %cst_93 {dimension_numbers = #tpu.dot_dimension_numbers<[1], [0], [0], [1], [0, 0, 1, 1], [], []>} : vector<8x8xbf16>, vector<8x32xbf16>, vector<8x32xf32> -> vector<8x32xf32>
    %266 = vector.extract_strided_slice %243 {offsets = [0, 32], sizes = [8, 32], strides = [1, 1]} : vector<8x128xf32> to vector<8x32xf32>
    %267 = arith.truncf %266 : vector<8x32xf32> to vector<8x32xbf16>
    %268 = vector.extract_strided_slice %244 {offsets = [0, 32], sizes = [8, 32], strides = [1, 1]} : vector<8x128xf32> to vector<8x32xf32>
    %269 = arith.truncf %268 : vector<8x32xf32> to vector<8x32xbf16>
    %270 = vector.extract_strided_slice %245 {offsets = [0, 32], sizes = [8, 32], strides = [1, 1]} : vector<8x128xf32> to vector<8x32xf32>
    %271 = arith.truncf %270 : vector<8x32xf32> to vector<8x32xbf16>
    %cst_94 = arith.constant dense<0.000000e+00> : vector<8x8xf32>
    %272 = tpu.matmul %267, %269, %cst_94 {dimension_numbers = #tpu.dot_dimension_numbers<[1], [1], [0], [0], [0, 0, 1, 0], [], []>} : vector<8x32xbf16>, vector<8x32xbf16>, vector<8x8xf32> -> vector<8x8xf32>
    %cst_95 = arith.constant 0.176776692 : f32
    %273 = vector.broadcast %cst_95 : f32 to vector<8x8xf32>
    %274 = arith.mulf %272, %273 : vector<8x8xf32>
    %cst_96 = arith.constant dense<0xFF800000> : vector<8xf32>
    %275 = vector.multi_reduction <maximumf>, %274, %cst_96 [1] : vector<8x8xf32> to vector<8xf32>
    %276 = vector.shape_cast %275 : vector<8xf32> to vector<8x1xf32>
    %277 = vector.broadcast %276 : vector<8x1xf32> to vector<8x8xf32>
    %278 = arith.subf %274, %277 : vector<8x8xf32>
    %279 = math.exp %278 : vector<8x8xf32>
    %cst_97 = arith.constant dense<0.000000e+00> : vector<8xf32>
    %280 = vector.multi_reduction <add>, %279, %cst_97 [1] : vector<8x8xf32> to vector<8xf32>
    %281 = vector.shape_cast %280 : vector<8xf32> to vector<8x1xf32>
    %282 = vector.broadcast %281 : vector<8x1xf32> to vector<8x8xf32>
    %283 = arith.divf %279, %282 : vector<8x8xf32>
    %284 = arith.truncf %283 : vector<8x8xf32> to vector<8x8xbf16>
    %cst_98 = arith.constant dense<0.000000e+00> : vector<8x32xf32>
    %285 = tpu.matmul %284, %271, %cst_98 {dimension_numbers = #tpu.dot_dimension_numbers<[1], [0], [0], [1], [0, 0, 1, 1], [], []>} : vector<8x8xbf16>, vector<8x32xbf16>, vector<8x32xf32> -> vector<8x32xf32>
    %286 = vector.extract_strided_slice %243 {offsets = [0, 64], sizes = [8, 32], strides = [1, 1]} : vector<8x128xf32> to vector<8x32xf32>
    %287 = arith.truncf %286 : vector<8x32xf32> to vector<8x32xbf16>
    %288 = vector.extract_strided_slice %244 {offsets = [0, 64], sizes = [8, 32], strides = [1, 1]} : vector<8x128xf32> to vector<8x32xf32>
    %289 = arith.truncf %288 : vector<8x32xf32> to vector<8x32xbf16>
    %290 = vector.extract_strided_slice %245 {offsets = [0, 64], sizes = [8, 32], strides = [1, 1]} : vector<8x128xf32> to vector<8x32xf32>
    %291 = arith.truncf %290 : vector<8x32xf32> to vector<8x32xbf16>
    %cst_99 = arith.constant dense<0.000000e+00> : vector<8x8xf32>
    %292 = tpu.matmul %287, %289, %cst_99 {dimension_numbers = #tpu.dot_dimension_numbers<[1], [1], [0], [0], [0, 0, 1, 0], [], []>} : vector<8x32xbf16>, vector<8x32xbf16>, vector<8x8xf32> -> vector<8x8xf32>
    %cst_100 = arith.constant 0.176776692 : f32
    %293 = vector.broadcast %cst_100 : f32 to vector<8x8xf32>
    %294 = arith.mulf %292, %293 : vector<8x8xf32>
    %cst_101 = arith.constant dense<0xFF800000> : vector<8xf32>
    %295 = vector.multi_reduction <maximumf>, %294, %cst_101 [1] : vector<8x8xf32> to vector<8xf32>
    %296 = vector.shape_cast %295 : vector<8xf32> to vector<8x1xf32>
    %297 = vector.broadcast %296 : vector<8x1xf32> to vector<8x8xf32>
    %298 = arith.subf %294, %297 : vector<8x8xf32>
    %299 = math.exp %298 : vector<8x8xf32>
    %cst_102 = arith.constant dense<0.000000e+00> : vector<8xf32>
    %300 = vector.multi_reduction <add>, %299, %cst_102 [1] : vector<8x8xf32> to vector<8xf32>
    %301 = vector.shape_cast %300 : vector<8xf32> to vector<8x1xf32>
    %302 = vector.broadcast %301 : vector<8x1xf32> to vector<8x8xf32>
    %303 = arith.divf %299, %302 : vector<8x8xf32>
    %304 = arith.truncf %303 : vector<8x8xf32> to vector<8x8xbf16>
    %cst_103 = arith.constant dense<0.000000e+00> : vector<8x32xf32>
    %305 = tpu.matmul %304, %291, %cst_103 {dimension_numbers = #tpu.dot_dimension_numbers<[1], [0], [0], [1], [0, 0, 1, 1], [], []>} : vector<8x8xbf16>, vector<8x32xbf16>, vector<8x32xf32> -> vector<8x32xf32>
    %306 = vector.extract_strided_slice %243 {offsets = [0, 96], sizes = [8, 32], strides = [1, 1]} : vector<8x128xf32> to vector<8x32xf32>
    %307 = arith.truncf %306 : vector<8x32xf32> to vector<8x32xbf16>
    %308 = vector.extract_strided_slice %244 {offsets = [0, 96], sizes = [8, 32], strides = [1, 1]} : vector<8x128xf32> to vector<8x32xf32>
    %309 = arith.truncf %308 : vector<8x32xf32> to vector<8x32xbf16>
    %310 = vector.extract_strided_slice %245 {offsets = [0, 96], sizes = [8, 32], strides = [1, 1]} : vector<8x128xf32> to vector<8x32xf32>
    %311 = arith.truncf %310 : vector<8x32xf32> to vector<8x32xbf16>
    %cst_104 = arith.constant dense<0.000000e+00> : vector<8x8xf32>
    %312 = tpu.matmul %307, %309, %cst_104 {dimension_numbers = #tpu.dot_dimension_numbers<[1], [1], [0], [0], [0, 0, 1, 0], [], []>} : vector<8x32xbf16>, vector<8x32xbf16>, vector<8x8xf32> -> vector<8x8xf32>
    %cst_105 = arith.constant 0.176776692 : f32
    %313 = vector.broadcast %cst_105 : f32 to vector<8x8xf32>
    %314 = arith.mulf %312, %313 : vector<8x8xf32>
    %cst_106 = arith.constant dense<0xFF800000> : vector<8xf32>
    %315 = vector.multi_reduction <maximumf>, %314, %cst_106 [1] : vector<8x8xf32> to vector<8xf32>
    %316 = vector.shape_cast %315 : vector<8xf32> to vector<8x1xf32>
    %317 = vector.broadcast %316 : vector<8x1xf32> to vector<8x8xf32>
    %318 = arith.subf %314, %317 : vector<8x8xf32>
    %319 = math.exp %318 : vector<8x8xf32>
    %cst_107 = arith.constant dense<0.000000e+00> : vector<8xf32>
    %320 = vector.multi_reduction <add>, %319, %cst_107 [1] : vector<8x8xf32> to vector<8xf32>
    %321 = vector.shape_cast %320 : vector<8xf32> to vector<8x1xf32>
    %322 = vector.broadcast %321 : vector<8x1xf32> to vector<8x8xf32>
    %323 = arith.divf %319, %322 : vector<8x8xf32>
    %324 = arith.truncf %323 : vector<8x8xf32> to vector<8x8xbf16>
    %cst_108 = arith.constant dense<0.000000e+00> : vector<8x32xf32>
    %325 = tpu.matmul %324, %311, %cst_108 {dimension_numbers = #tpu.dot_dimension_numbers<[1], [0], [0], [1], [0, 0, 1, 1], [], []>} : vector<8x8xbf16>, vector<8x32xbf16>, vector<8x32xf32> -> vector<8x32xf32>
    %326 = tpu.concatenate %265, %285, %305, %325 in 1 : vector<8x32xf32>, vector<8x32xf32>, vector<8x32xf32>, vector<8x32xf32> -> vector<8x128xf32>
    %327 = arith.truncf %326 : vector<8x128xf32> to vector<8x128xbf16>
    %328 = vector.extract_strided_slice %3 {offsets = [1, 0, 0], sizes = [1, 128, 128], strides = [1, 1, 1]} : vector<2x128x128xbf16> to vector<1x128x128xbf16>
    %329 = vector.shape_cast %328 : vector<1x128x128xbf16> to vector<128x128xbf16>
    %cst_109 = arith.constant dense<0.000000e+00> : vector<8x128xf32>
    %330 = tpu.matmul %327, %329, %cst_109 {dimension_numbers = #tpu.dot_dimension_numbers<[1], [0], [0], [1], [0, 0, 1, 1], [], []>} : vector<8x128xbf16>, vector<128x128xbf16>, vector<8x128xf32> -> vector<8x128xf32>
    %331 = vector.extract_strided_slice %4 {offsets = [1, 0, 0], sizes = [1, 1, 128], strides = [1, 1, 1]} : vector<2x1x128xf32> to vector<1x1x128xf32>
    %332 = vector.shape_cast %331 : vector<1x1x128xf32> to vector<1x128xf32>
    %333 = vector.broadcast %332 : vector<1x128xf32> to vector<8x128xf32>
    %334 = arith.addf %330, %333 : vector<8x128xf32>
    %335 = arith.addf %214, %334 : vector<8x128xf32>
    %336 = vector.extract_strided_slice %7 {offsets = [1, 0, 0], sizes = [1, 1, 128], strides = [1, 1, 1]} : vector<2x1x128xf32> to vector<1x1x128xf32>
    %337 = vector.shape_cast %336 : vector<1x1x128xf32> to vector<1x128xf32>
    %338 = vector.extract_strided_slice %8 {offsets = [1, 0, 0], sizes = [1, 1, 128], strides = [1, 1, 1]} : vector<2x1x128xf32> to vector<1x1x128xf32>
    %339 = vector.shape_cast %338 : vector<1x1x128xf32> to vector<1x128xf32>
    %cst_110 = arith.constant dense<0.000000e+00> : vector<8xf32>
    %340 = vector.multi_reduction <add>, %335, %cst_110 [1] : vector<8x128xf32> to vector<8xf32>
    %341 = vector.shape_cast %340 : vector<8xf32> to vector<8x1xf32>
    %cst_111 = arith.constant 1.280000e+02 : f32
    %342 = vector.broadcast %cst_111 : f32 to vector<8x1xf32>
    %343 = arith.divf %341, %342 : vector<8x1xf32>
    %344 = vector.broadcast %343 : vector<8x1xf32> to vector<8x128xf32>
    %345 = arith.subf %335, %344 : vector<8x128xf32>
    %346 = arith.mulf %345, %345 : vector<8x128xf32>
    %cst_112 = arith.constant dense<0.000000e+00> : vector<8xf32>
    %347 = vector.multi_reduction <add>, %346, %cst_112 [1] : vector<8x128xf32> to vector<8xf32>
    %348 = vector.shape_cast %347 : vector<8xf32> to vector<8x1xf32>
    %cst_113 = arith.constant 1.280000e+02 : f32
    %349 = vector.broadcast %cst_113 : f32 to vector<8x1xf32>
    %350 = arith.divf %348, %349 : vector<8x1xf32>
    %cst_114 = arith.constant 9.99999974E-6 : f32
    %351 = vector.broadcast %cst_114 : f32 to vector<8x1xf32>
    %352 = arith.addf %350, %351 : vector<8x1xf32>
    %353 = math.rsqrt %352 : vector<8x1xf32>
    %354 = vector.broadcast %353 : vector<8x1xf32> to vector<8x128xf32>
    %355 = arith.mulf %345, %354 : vector<8x128xf32>
    %356 = vector.broadcast %337 : vector<1x128xf32> to vector<8x128xf32>
    %357 = arith.mulf %355, %356 : vector<8x128xf32>
    %358 = vector.broadcast %339 : vector<1x128xf32> to vector<8x128xf32>
    %359 = arith.addf %357, %358 : vector<8x128xf32>
    %360 = arith.truncf %359 : vector<8x128xf32> to vector<8x128xbf16>
    %361 = vector.extract_strided_slice %9 {offsets = [1, 0, 0], sizes = [1, 128, 256], strides = [1, 1, 1]} : vector<2x128x256xbf16> to vector<1x128x256xbf16>
    %362 = vector.shape_cast %361 : vector<1x128x256xbf16> to vector<128x256xbf16>
    %cst_115 = arith.constant dense<0.000000e+00> : vector<8x256xf32>
    %363 = tpu.matmul %360, %362, %cst_115 {dimension_numbers = #tpu.dot_dimension_numbers<[1], [0], [0], [1], [0, 0, 1, 1], [], []>} : vector<8x128xbf16>, vector<128x256xbf16>, vector<8x256xf32> -> vector<8x256xf32>
    %364 = vector.extract_strided_slice %10 {offsets = [1, 0, 0], sizes = [1, 1, 256], strides = [1, 1, 1]} : vector<2x1x256xf32> to vector<1x1x256xf32>
    %365 = vector.shape_cast %364 : vector<1x1x256xf32> to vector<1x256xf32>
    %366 = vector.broadcast %365 : vector<1x256xf32> to vector<8x256xf32>
    %367 = arith.addf %363, %366 : vector<8x256xf32>
    %cst_116 = arith.constant 5.000000e-01 : f32
    %368 = vector.broadcast %cst_116 : f32 to vector<8x256xf32>
    %369 = arith.mulf %368, %367 : vector<8x256xf32>
    %cst_117 = arith.constant 0.707106769 : f32
    %370 = vector.broadcast %cst_117 : f32 to vector<8x256xf32>
    %371 = arith.mulf %367, %370 : vector<8x256xf32>
    %372 = math.absf %371 : vector<8x256xf32>
    %cst_118 = arith.constant 0.327591091 : f32
    %373 = vector.broadcast %cst_118 : f32 to vector<8x256xf32>
    %374 = arith.mulf %373, %372 : vector<8x256xf32>
    %cst_119 = arith.constant 1.000000e+00 : f32
    %375 = vector.broadcast %cst_119 : f32 to vector<8x256xf32>
    %376 = arith.addf %375, %374 : vector<8x256xf32>
    %cst_120 = arith.constant 1.000000e+00 : f32
    %377 = vector.broadcast %cst_120 : f32 to vector<8x256xf32>
    %378 = arith.divf %377, %376 : vector<8x256xf32>
    %cst_121 = arith.constant 1.06140542 : f32
    %379 = vector.broadcast %cst_121 : f32 to vector<8x256xf32>
    %380 = arith.mulf %379, %378 : vector<8x256xf32>
    %cst_122 = arith.constant -1.45315206 : f32
    %381 = vector.broadcast %cst_122 : f32 to vector<8x256xf32>
    %382 = arith.addf %380, %381 : vector<8x256xf32>
    %383 = arith.mulf %382, %378 : vector<8x256xf32>
    %cst_123 = arith.constant 1.42141378 : f32
    %384 = vector.broadcast %cst_123 : f32 to vector<8x256xf32>
    %385 = arith.addf %383, %384 : vector<8x256xf32>
    %386 = arith.mulf %385, %378 : vector<8x256xf32>
    %cst_124 = arith.constant -0.284496725 : f32
    %387 = vector.broadcast %cst_124 : f32 to vector<8x256xf32>
    %388 = arith.addf %386, %387 : vector<8x256xf32>
    %389 = arith.mulf %388, %378 : vector<8x256xf32>
    %cst_125 = arith.constant 0.254829586 : f32
    %390 = vector.broadcast %cst_125 : f32 to vector<8x256xf32>
    %391 = arith.addf %389, %390 : vector<8x256xf32>
    %392 = arith.mulf %391, %378 : vector<8x256xf32>
    %cst_126 = arith.constant 0.000000e+00 : f32
    %393 = vector.broadcast %cst_126 : f32 to vector<8x256xf32>
    %394 = arith.subf %393, %372 : vector<8x256xf32>
    %395 = arith.mulf %394, %372 : vector<8x256xf32>
    %396 = math.exp %395 : vector<8x256xf32>
    %397 = arith.mulf %392, %396 : vector<8x256xf32>
    %cst_127 = arith.constant 1.000000e+00 : f32
    %398 = vector.broadcast %cst_127 : f32 to vector<8x256xf32>
    %399 = arith.subf %398, %397 : vector<8x256xf32>
    %cst_128 = arith.constant 0.000000e+00 : f32
    %400 = vector.broadcast %cst_128 : f32 to vector<8x256xf32>
    %401 = arith.cmpf olt, %371, %400 : vector<8x256xf32>
    %cst_129 = arith.constant 0.000000e+00 : f32
    %402 = vector.broadcast %cst_129 : f32 to vector<8x256xf32>
    %403 = arith.subf %402, %399 : vector<8x256xf32>
    %404 = arith.select %401, %403, %399 : vector<8x256xi1>, vector<8x256xf32>
    %cst_130 = arith.constant 1.000000e+00 : f32
    %405 = vector.broadcast %cst_130 : f32 to vector<8x256xf32>
    %406 = arith.addf %405, %404 : vector<8x256xf32>
    %407 = arith.mulf %369, %406 : vector<8x256xf32>
    %408 = arith.truncf %407 : vector<8x256xf32> to vector<8x256xbf16>
    %409 = vector.extract_strided_slice %11 {offsets = [1, 0, 0], sizes = [1, 256, 128], strides = [1, 1, 1]} : vector<2x256x128xbf16> to vector<1x256x128xbf16>
    %410 = vector.shape_cast %409 : vector<1x256x128xbf16> to vector<256x128xbf16>
    %cst_131 = arith.constant dense<0.000000e+00> : vector<8x128xf32>
    %411 = tpu.matmul %408, %410, %cst_131 {dimension_numbers = #tpu.dot_dimension_numbers<[1], [0], [0], [1], [0, 0, 1, 1], [], []>} : vector<8x256xbf16>, vector<256x128xbf16>, vector<8x128xf32> -> vector<8x128xf32>
    %412 = vector.extract_strided_slice %12 {offsets = [1, 0, 0], sizes = [1, 1, 128], strides = [1, 1, 1]} : vector<2x1x128xf32> to vector<1x1x128xf32>
    %413 = vector.shape_cast %412 : vector<1x1x128xf32> to vector<1x128xf32>
    %414 = vector.broadcast %413 : vector<1x128xf32> to vector<8x128xf32>
    %415 = arith.addf %411, %414 : vector<8x128xf32>
    %416 = arith.addf %335, %415 : vector<8x128xf32>
    %c0_132 = arith.constant 0 : index
    %c0_133 = arith.constant 0 : index
    %c0_134 = arith.constant 0 : index
    %417 = vector.load %arg13[%c0_132, %c0_133, %c0_134] : memref<1x8x128xf32, #tpu.memory_space<vmem>>, vector<1x8x128xf32>
    %418 = vector.shape_cast %417 : vector<1x8x128xf32> to vector<8x128xf32>
    %419 = vector.shape_cast %416 : vector<8x128xf32> to vector<1x8x128xf32>
    tpu.vector_store %arg13[%c0_132, %c0_133, %c0_134], %419 {strides = array<i32>} : memref<1x8x128xf32, #tpu.memory_space<vmem>>, vector<1x8x128xf32>,
    return
  }
  func.func @transform_0(%arg0: i32) -> (i32, i32, i32) {
    %c0_i32 = arith.constant 0 : i32
    %c0_i32_0 = arith.constant 0 : i32
    %c0_i32_1 = arith.constant 0 : i32
    return %arg0, %c0_i32, %c0_i32_0 : i32, i32, i32
  }
  func.func @transform_1(%arg0: i32) -> (i32, i32, i32) {
    %c0_i32 = arith.constant 0 : i32
    %c0_i32_0 = arith.constant 0 : i32
    %c0_i32_1 = arith.constant 0 : i32
    %c0_i32_2 = arith.constant 0 : i32
    return %c0_i32, %c0_i32_0, %c0_i32_1 : i32, i32, i32
  }
  func.func @transform_2(%arg0: i32) -> (i32, i32, i32) {
    %c0_i32 = arith.constant 0 : i32
    %c0_i32_0 = arith.constant 0 : i32
    %c0_i32_1 = arith.constant 0 : i32
    %c0_i32_2 = arith.constant 0 : i32
    return %c0_i32, %c0_i32_0, %c0_i32_1 : i32, i32, i32
  }
  func.func @transform_3(%arg0: i32) -> (i32, i32, i32) {
    %c0_i32 = arith.constant 0 : i32
    %c0_i32_0 = arith.constant 0 : i32
    %c0_i32_1 = arith.constant 0 : i32
    %c0_i32_2 = arith.constant 0 : i32
    return %c0_i32, %c0_i32_0, %c0_i32_1 : i32, i32, i32
  }
  func.func @transform_4(%arg0: i32) -> (i32, i32, i32) {
    %c0_i32 = arith.constant 0 : i32
    %c0_i32_0 = arith.constant 0 : i32
    %c0_i32_1 = arith.constant 0 : i32
    %c0_i32_2 = arith.constant 0 : i32
    return %c0_i32, %c0_i32_0, %c0_i32_1 : i32, i32, i32
  }
  func.func @transform_5(%arg0: i32) -> (i32, i32, i32) {
    %c0_i32 = arith.constant 0 : i32
    %c0_i32_0 = arith.constant 0 : i32
    %c0_i32_1 = arith.constant 0 : i32
    %c0_i32_2 = arith.constant 0 : i32
    return %c0_i32, %c0_i32_0, %c0_i32_1 : i32, i32, i32
  }
  func.func @transform_6(%arg0: i32) -> (i32, i32, i32) {
    %c0_i32 = arith.constant 0 : i32
    %c0_i32_0 = arith.constant 0 : i32
    %c0_i32_1 = arith.constant 0 : i32
    %c0_i32_2 = arith.constant 0 : i32
    return %c0_i32, %c0_i32_0, %c0_i32_1 : i32, i32, i32
  }
  func.func @transform_7(%arg0: i32) -> (i32, i32, i32) {
    %c0_i32 = arith.constant 0 : i32
    %c0_i32_0 = arith.constant 0 : i32
    %c0_i32_1 = arith.constant 0 : i32
    %c0_i32_2 = arith.constant 0 : i32
    return %c0_i32, %c0_i32_0, %c0_i32_1 : i32, i32, i32
  }
  func.func @transform_8(%arg0: i32) -> (i32, i32, i32) {
    %c0_i32 = arith.constant 0 : i32
    %c0_i32_0 = arith.constant 0 : i32
    %c0_i32_1 = arith.constant 0 : i32
    %c0_i32_2 = arith.constant 0 : i32
    return %c0_i32, %c0_i32_0, %c0_i32_1 : i32, i32, i32
  }
  func.func @transform_9(%arg0: i32) -> (i32, i32, i32) {
    %c0_i32 = arith.constant 0 : i32
    %c0_i32_0 = arith.constant 0 : i32
    %c0_i32_1 = arith.constant 0 : i32
    %c0_i32_2 = arith.constant 0 : i32
    return %c0_i32, %c0_i32_0, %c0_i32_1 : i32, i32, i32
  }
  func.func @transform_10(%arg0: i32) -> (i32, i32, i32) {
    %c0_i32 = arith.constant 0 : i32
    %c0_i32_0 = arith.constant 0 : i32
    %c0_i32_1 = arith.constant 0 : i32
    %c0_i32_2 = arith.constant 0 : i32
    return %c0_i32, %c0_i32_0, %c0_i32_1 : i32, i32, i32
  }
  func.func @transform_11(%arg0: i32) -> (i32, i32, i32) {
    %c0_i32 = arith.constant 0 : i32
    %c0_i32_0 = arith.constant 0 : i32
    %c0_i32_1 = arith.constant 0 : i32
    %c0_i32_2 = arith.constant 0 : i32
    return %c0_i32, %c0_i32_0, %c0_i32_1 : i32, i32, i32
  }
  func.func @transform_12(%arg0: i32) -> (i32, i32, i32) {
    %c0_i32 = arith.constant 0 : i32
    %c0_i32_0 = arith.constant 0 : i32
    %c0_i32_1 = arith.constant 0 : i32
    return %arg0, %c0_i32, %c0_i32_0 : i32, i32, i32
  }
}

</mosaic_0001>

<llo_original>
// kernel: tpu_custom_call.1
$region0: #{tpu_custom_call.1}
  #allocation0 [shape = 'u32[]', space=smem, size = 0x4, offset = 0x4, fixed_abs, tag = 'smem constant byte address 0x4 - core index']
  #allocation1 [shape = 'u32[72,128]{1,0:T(1,128)}', space=vmem, size = 0x9000, scoped, tag = 'internal scratch']
  %s0 = inlined_call_operand.hbm [shape: f32[2,8,128], index: 0, kind: input, shape index: {}]
  %s1 = inlined_call_operand.hbm [shape: bf16[2,128,384], index: 1, kind: input, shape index: {}]
  %s2 = inlined_call_operand.hbm [shape: bf16[2,128,128], index: 2, kind: input, shape index: {}]
  %s3 = inlined_call_operand.vmem [shape: f32[2,1,128], index: 3, kind: input, shape index: {}]
  %s4 = inlined_call_operand.hbm [shape: f32[2,1,128], index: 4, kind: input, shape index: {}]
  %s5 = inlined_call_operand.hbm [shape: f32[2,1,128], index: 5, kind: input, shape index: {}]
  %s6 = inlined_call_operand.hbm [shape: f32[2,1,128], index: 6, kind: input, shape index: {}]
  %s7 = inlined_call_operand.hbm [shape: f32[2,1,128], index: 7, kind: input, shape index: {}]
  %s8 = inlined_call_operand.hbm [shape: bf16[2,128,256], index: 8, kind: input, shape index: {}]
  %s9 = inlined_call_operand.vmem [shape: f32[2,1,256], index: 9, kind: input, shape index: {}]
  %s10 = inlined_call_operand.hbm [shape: bf16[2,256,128], index: 10, kind: input, shape index: {}]
  %s11 = inlined_call_operand.vmem [shape: f32[2,1,128], index: 11, kind: input, shape index: {}]
  %s12 = inlined_call_operand.hbm [shape: f32[2,8,128], index: 12, kind: output, shape index: {}]
  %s13 = sld [smem:[#allocation0]]
  $region117: #{tpu_custom_call.1} parent=0
    _
  %s15 = ssub.s32 1, %s13
  %s16 = scalar_select 0, %s15, %s13
  $region1: #{tpu_custom_call.1} parent=0
    #allocation2 [shape = 'u8[8192]{0}', space=vmem, size = 0x2000, scoped, tag = 'input window, operand 0']
    #allocation3 [shape = 's32[2]{0}', space=sflag, size = 0x8, scoped, tag = 'scoped memory for tpu_custom_call.1']
    #allocation4 [shape = 's32[2]{0}', space=sflag, size = 0x8, scoped, tag = 'scoped memory for tpu_custom_call.1']
    #allocation5 [shape = 'u8[196608]{0}', space=vmem, size = 0x30000, scoped, tag = 'input window, operand 1, single buffered']
    #allocation6 [shape = 's32[1]{0}', space=sflag, size = 0x4, scoped, tag = 'scoped memory for tpu_custom_call.1']
    #allocation7 [shape = 'u8[65536]{0}', space=vmem, size = 0x10000, scoped, tag = 'input window, operand 2, single buffered']
    #allocation8 [shape = 'u8[1024]{0}', space=vmem, size = 0x400, scoped, tag = 'input window, operand 4, single buffered']
    #allocation9 [shape = 's32[1]{0}', space=sflag, size = 0x4, scoped, tag = 'scoped memory for tpu_custom_call.1']
    #allocation10 [shape = 'u8[1024]{0}', space=vmem, size = 0x400, scoped, tag = 'input window, operand 5, single buffered']
    #allocation11 [shape = 'u8[1024]{0}', space=vmem, size = 0x400, scoped, tag = 'input window, operand 6, single buffered']
    #allocation12 [shape = 's32[1]{0}', space=sflag, size = 0x4, scoped, tag = 'scoped memory for tpu_custom_call.1']
    #allocation13 [shape = 'u8[1024]{0}', space=vmem, size = 0x400, scoped, tag = 'input window, operand 7, single buffered']
    #allocation14 [shape = 'u8[131072]{0}', space=vmem, size = 0x20000, scoped, tag = 'input window, operand 8, single buffered']
    #allocation15 [shape = 's32[1]{0}', space=sflag, size = 0x4, scoped, tag = 'scoped memory for tpu_custom_call.1']
    #allocation16 [shape = 'u8[131072]{0}', space=vmem, size = 0x20000, scoped, tag = 'input window, operand 10, single buffered']
    #allocation17 [shape = 'u8[8192]{0}', space=vmem, size = 0x2000, scoped, tag = 'output window, operand 0']
    %17 = vsyncpa [#allocation3], 0
    %s18 = scalar_lea.sflag [#allocation3], 1
    %19 = vsyncpa %s18, 0
    %20 = vsyncpa [#allocation6], 0
    %21 = vsyncpa [#allocation9], 0
    %22 = vsyncpa [#allocation12], 0
    %23 = vsyncpa [#allocation15], 0
    %24 = vsyncpa [#allocation4], 0
    %s25 = scalar_lea.sflag [#allocation4], 1
    %26 = vsyncpa %s25, 0
    loop: start=0, step=1, limit=4
    $region2: #{tpu_custom_call.1} parent=1 // loop_pre_header
      _
    $region3: #{tpu_custom_call.1} parent=1 // loop_header
      %s28 = sphi 0, %s32
      %p29 = scmp.ge.s32.totalorder %s28, 4
      %s38 = sphi 0, %s40
      %s41 = sphi 0, %s38
      %s42 = sphi 0, %s41
      %s58 = sphi 0, %s42
      %s62 = sphi 0, %s62
      %s64 = sphi 0, %s62
      %s65 = sphi 0, %s64
      %s79 = sphi 0, %s65
      %s83 = sphi 0, %s83
      %s85 = sphi 0, %s83
      %s86 = sphi 0, %s85
      %s100 = sphi 0, %s86
      %s104 = sphi 0, %s104
      %s106 = sphi 0, %s104
      %s107 = sphi 0, %s106
      %s121 = sphi 0, %s107
      %s125 = sphi 0, %s125
      %s127 = sphi 0, %s125
      %s128 = sphi 0, %s127
      %s142 = sphi 0, %s128
      %s146 = sphi 0, %s146
      %s148 = sphi 0, %s146
      %s149 = sphi 0, %s148
      %s163 = sphi 0, %s149
      %s167 = sphi 0, %s167
      %s169 = sphi 0, %s167
      %s170 = sphi 0, %s169
      %s184 = sphi 0, %s170
      %s188 = sphi 0, %s188
      %s190 = sphi 0, %s188
      %s191 = sphi 0, %s190
      %s205 = sphi 0, %s191
      %s209 = sphi 0, %s209
      %s211 = sphi 0, %s209
      %s212 = sphi 0, %s211
      %s226 = sphi 0, %s212
      %s230 = sphi 0, %s230
      %s232 = sphi 0, %s230
      %s233 = sphi 0, %s232
      %s247 = sphi 0, %s233
      %s251 = sphi 0, %s251
      %s253 = sphi 0, %s251
      %s254 = sphi 0, %s253
      %s268 = sphi 0, %s254
      %s272 = sphi 0, %s272
      %s274 = sphi 0, %s272
      %s275 = sphi 0, %s274
      %s289 = sphi 0, %s275
      %s295 = sphi 0, %s297
      %s298 = sphi 0, %s295
      %s299 = sphi 0, %s298
      %s315 = sphi 0, %s299
    $region4: #{tpu_custom_call.1} parent=1 // loop_header_branch
      %31 = sbr.rel (%p29) target = $region8
    $region5: #{tpu_custom_call.1} parent=1 // loop_body
      %s33 = ssub.s32 %s28, 1
      %s34 = ssub.s32 %s28, 2
      %s35 = sadd.s32 %s28, 1
      %s36 = ssub.s32 %s28, %s35
      %p37 = scmp.eq.s32.totalorder %s36, 0
      %s39 = sadd.s32 %s38, 1
      %s40 = scalar_select %p37, %s38, %s39
      %p43 = pneg %p37
      %p44 = scmp.eq.s32.totalorder %s28, 1
      %p45 = por %p43, %p44
      %p46 = scmp.ne.s32.totalorder %s38, %s41
      %p47 = scmp.eq.s32.totalorder %s28, 0
      %p48 = por %p46, %p47
      %p49 = scmp.ne.s32.totalorder %s38, %s41
      %p50 = scmp.eq.s32.totalorder %s33, 1
      %p51 = por %p49, %p50
      %p52 = scmp.ne.s32.totalorder %s41, %s42
      %p53 = scmp.eq.s32.totalorder %s33, 0
      %p54 = por %p52, %p53
      %p55 = scmp.ne.s32.totalorder %s41, %s42
      %p56 = scmp.eq.s32.totalorder %s34, 1
      %p57 = por %p55, %p56
      %p59 = scmp.ne.s32.totalorder %s42, %s58
      %p60 = scmp.eq.s32.totalorder %s34, 0
      %p61 = por %p59, %p60
      %s63 = sadd.s32 %s62, 1
      %p66 = scmp.eq.s32.totalorder %s28, 1
      %p67 = scmp.ne.s32.totalorder %s62, %s64
      %p68 = scmp.eq.s32.totalorder %s28, 0
      %p69 = por %p67, %p68
      %p70 = scmp.ne.s32.totalorder %s62, %s64
      %p71 = scmp.eq.s32.totalorder %s33, 1
      %p72 = por %p70, %p71
      %p73 = scmp.ne.s32.totalorder %s64, %s65
      %p74 = scmp.eq.s32.totalorder %s33, 0
      %p75 = por %p73, %p74
      %p76 = scmp.ne.s32.totalorder %s64, %s65
      %p77 = scmp.eq.s32.totalorder %s34, 1
      %p78 = por %p76, %p77
      %p80 = scmp.ne.s32.totalorder %s65, %s79
      %p81 = scmp.eq.s32.totalorder %s34, 0
      %p82 = por %p80, %p81
      %s84 = sadd.s32 %s83, 1
      %p87 = scmp.eq.s32.totalorder %s28, 1
      %p88 = scmp.ne.s32.totalorder %s83, %s85
      %p89 = scmp.eq.s32.totalorder %s28, 0
      %p90 = por %p88, %p89
      %p91 = scmp.ne.s32.totalorder %s83, %s85
      %p92 = scmp.eq.s32.totalorder %s33, 1
      %p93 = por %p91, %p92
      %p94 = scmp.ne.s32.totalorder %s85, %s86
      %p95 = scmp.eq.s32.totalorder %s33, 0
      %p96 = por %p94, %p95
      %p97 = scmp.ne.s32.totalorder %s85, %s86
      %p98 = scmp.eq.s32.totalorder %s34, 1
      %p99 = por %p97, %p98
      %p101 = scmp.ne.s32.totalorder %s86, %s100
      %p102 = scmp.eq.s32.totalorder %s34, 0
      %p103 = por %p101, %p102
      %s105 = sadd.s32 %s104, 1
      %p108 = scmp.eq.s32.totalorder %s28, 1
      %p109 = scmp.ne.s32.totalorder %s104, %s106
      %p110 = scmp.eq.s32.totalorder %s28, 0
      %p111 = por %p109, %p110
      %p112 = scmp.ne.s32.totalorder %s104, %s106
      %p113 = scmp.eq.s32.totalorder %s33, 1
      %p114 = por %p112, %p113
      %p115 = scmp.ne.s32.totalorder %s106, %s107
      %p116 = scmp.eq.s32.totalorder %s33, 0
      %p117 = por %p115, %p116
      %p118 = scmp.ne.s32.totalorder %s106, %s107
      %p119 = scmp.eq.s32.totalorder %s34, 1
      %p120 = por %p118, %p119
      %p122 = scmp.ne.s32.totalorder %s107, %s121
      %p123 = scmp.eq.s32.totalorder %s34, 0
      %p124 = por %p122, %p123
      %s126 = sadd.s32 %s125, 1
      %p129 = scmp.eq.s32.totalorder %s28, 1
      %p130 = scmp.ne.s32.totalorder %s125, %s127
      %p131 = scmp.eq.s32.totalorder %s28, 0
      %p132 = por %p130, %p131
      %p133 = scmp.ne.s32.totalorder %s125, %s127
      %p134 = scmp.eq.s32.totalorder %s33, 1
      %p135 = por %p133, %p134
      %p136 = scmp.ne.s32.totalorder %s127, %s128
      %p137 = scmp.eq.s32.totalorder %s33, 0
      %p138 = por %p136, %p137
      %p139 = scmp.ne.s32.totalorder %s127, %s128
      %p140 = scmp.eq.s32.totalorder %s34, 1
      %p141 = por %p139, %p140
      %p143 = scmp.ne.s32.totalorder %s128, %s142
      %p144 = scmp.eq.s32.totalorder %s34, 0
      %p145 = por %p143, %p144
      %s147 = sadd.s32 %s146, 1
      %p150 = scmp.eq.s32.totalorder %s28, 1
      %p151 = scmp.ne.s32.totalorder %s146, %s148
      %p152 = scmp.eq.s32.totalorder %s28, 0
      %p153 = por %p151, %p152
      %p154 = scmp.ne.s32.totalorder %s146, %s148
      %p155 = scmp.eq.s32.totalorder %s33, 1
      %p156 = por %p154, %p155
      %p157 = scmp.ne.s32.totalorder %s148, %s149
      %p158 = scmp.eq.s32.totalorder %s33, 0
      %p159 = por %p157, %p158
      %p160 = scmp.ne.s32.totalorder %s148, %s149
      %p161 = scmp.eq.s32.totalorder %s34, 1
      %p162 = por %p160, %p161
      %p164 = scmp.ne.s32.totalorder %s149, %s163
      %p165 = scmp.eq.s32.totalorder %s34, 0
      %p166 = por %p164, %p165
      %s168 = sadd.s32 %s167, 1
      %p171 = scmp.eq.s32.totalorder %s28, 1
      %p172 = scmp.ne.s32.totalorder %s167, %s169
      %p173 = scmp.eq.s32.totalorder %s28, 0
      %p174 = por %p172, %p173
      %p175 = scmp.ne.s32.totalorder %s167, %s169
      %p176 = scmp.eq.s32.totalorder %s33, 1
      %p177 = por %p175, %p176
      %p178 = scmp.ne.s32.totalorder %s169, %s170
      %p179 = scmp.eq.s32.totalorder %s33, 0
      %p180 = por %p178, %p179
      %p181 = scmp.ne.s32.totalorder %s169, %s170
      %p182 = scmp.eq.s32.totalorder %s34, 1
      %p183 = por %p181, %p182
      %p185 = scmp.ne.s32.totalorder %s170, %s184
      %p186 = scmp.eq.s32.totalorder %s34, 0
      %p187 = por %p185, %p186
      %s189 = sadd.s32 %s188, 1
      %p192 = scmp.eq.s32.totalorder %s28, 1
      %p193 = scmp.ne.s32.totalorder %s188, %s190
      %p194 = scmp.eq.s32.totalorder %s28, 0
      %p195 = por %p193, %p194
      %p196 = scmp.ne.s32.totalorder %s188, %s190
      %p197 = scmp.eq.s32.totalorder %s33, 1
      %p198 = por %p196, %p197
      %p199 = scmp.ne.s32.totalorder %s190, %s191
      %p200 = scmp.eq.s32.totalorder %s33, 0
      %p201 = por %p199, %p200
      %p202 = scmp.ne.s32.totalorder %s190, %s191
      %p203 = scmp.eq.s32.totalorder %s34, 1
      %p204 = por %p202, %p203
      %p206 = scmp.ne.s32.totalorder %s191, %s205
      %p207 = scmp.eq.s32.totalorder %s34, 0
      %p208 = por %p206, %p207
      %s210 = sadd.s32 %s209, 1
      %p213 = scmp.eq.s32.totalorder %s28, 1
      %p214 = scmp.ne.s32.totalorder %s209, %s211
      %p215 = scmp.eq.s32.totalorder %s28, 0
      %p216 = por %p214, %p215
      %p217 = scmp.ne.s32.totalorder %s209, %s211
      %p218 = scmp.eq.s32.totalorder %s33, 1
      %p219 = por %p217, %p218
      %p220 = scmp.ne.s32.totalorder %s211, %s212
      %p221 = scmp.eq.s32.totalorder %s33, 0
      %p222 = por %p220, %p221
      %p223 = scmp.ne.s32.totalorder %s211, %s212
      %p224 = scmp.eq.s32.totalorder %s34, 1
      %p225 = por %p223, %p224
      %p227 = scmp.ne.s32.totalorder %s212, %s226
      %p228 = scmp.eq.s32.totalorder %s34, 0
      %p229 = por %p227, %p228
      %s231 = sadd.s32 %s230, 1
      %p234 = scmp.eq.s32.totalorder %s28, 1
      %p235 = scmp.ne.s32.totalorder %s230, %s232
      %p236 = scmp.eq.s32.totalorder %s28, 0
      %p237 = por %p235, %p236
      %p238 = scmp.ne.s32.totalorder %s230, %s232
      %p239 = scmp.eq.s32.totalorder %s33, 1
      %p240 = por %p238, %p239
      %p241 = scmp.ne.s32.totalorder %s232, %s233
      %p242 = scmp.eq.s32.totalorder %s33, 0
      %p243 = por %p241, %p242
      %p244 = scmp.ne.s32.totalorder %s232, %s233
      %p245 = scmp.eq.s32.totalorder %s34, 1
      %p246 = por %p244, %p245
      %p248 = scmp.ne.s32.totalorder %s233, %s247
      %p249 = scmp.eq.s32.totalorder %s34, 0
      %p250 = por %p248, %p249
      %s252 = sadd.s32 %s251, 1
      %p255 = scmp.eq.s32.totalorder %s28, 1
      %p256 = scmp.ne.s32.totalorder %s251, %s253
      %p257 = scmp.eq.s32.totalorder %s28, 0
      %p258 = por %p256, %p257
      %p259 = scmp.ne.s32.totalorder %s251, %s253
      %p260 = scmp.eq.s32.totalorder %s33, 1
      %p261 = por %p259, %p260
      %p262 = scmp.ne.s32.totalorder %s253, %s254
      %p263 = scmp.eq.s32.totalorder %s33, 0
      %p264 = por %p262, %p263
      %p265 = scmp.ne.s32.totalorder %s253, %s254
      %p266 = scmp.eq.s32.totalorder %s34, 1
      %p267 = por %p265, %p266
      %p269 = scmp.ne.s32.totalorder %s254, %s268
      %p270 = scmp.eq.s32.totalorder %s34, 0
      %p271 = por %p269, %p270
      %s273 = sadd.s32 %s272, 1
      %p276 = scmp.eq.s32.totalorder %s28, 1
      %p277 = scmp.ne.s32.totalorder %s272, %s274
      %p278 = scmp.eq.s32.totalorder %s28, 0
      %p279 = por %p277, %p278
      %p280 = scmp.ne.s32.totalorder %s272, %s274
      %p281 = scmp.eq.s32.totalorder %s33, 1
      %p282 = por %p280, %p281
      %p283 = scmp.ne.s32.totalorder %s274, %s275
      %p284 = scmp.eq.s32.totalorder %s33, 0
      %p285 = por %p283, %p284
      %p286 = scmp.ne.s32.totalorder %s274, %s275
      %p287 = scmp.eq.s32.totalorder %s34, 1
      %p288 = por %p286, %p287
      %p290 = scmp.ne.s32.totalorder %s275, %s289
      %p291 = scmp.eq.s32.totalorder %s34, 0
      %p292 = por %p290, %p291
      %s293 = ssub.s32 %s28, %s35
      %p294 = scmp.eq.s32.totalorder %s293, 0
      %s296 = sadd.s32 %s295, 1
      %s297 = scalar_select %p294, %s295, %s296
      %p300 = pneg %p294
      %p301 = scmp.eq.s32.totalorder %s28, 1
      %p302 = por %p300, %p301
      %p303 = scmp.ne.s32.totalorder %s295, %s298
      %p304 = scmp.eq.s32.totalorder %s28, 0
      %p305 = por %p303, %p304
      %p306 = scmp.ne.s32.totalorder %s295, %s298
      %p307 = scmp.eq.s32.totalorder %s33, 1
      %p308 = por %p306, %p307
      %p309 = scmp.ne.s32.totalorder %s298, %s299
      %p310 = scmp.eq.s32.totalorder %s33, 0
      %p311 = por %p309, %p310
      %p312 = scmp.ne.s32.totalorder %s298, %s299
      %p313 = scmp.eq.s32.totalorder %s34, 1
      %p314 = por %p312, %p313
      %p316 = scmp.ne.s32.totalorder %s299, %s315
      %p317 = scmp.eq.s32.totalorder %s34, 0
      %p318 = por %p316, %p317
      %p319 = scmp.le.s32.totalorder 1, %s28
      %p320 = scmp.lt.s32.totalorder %s28, 3
      %p321 = pnand %p319, %p320
      %p322 = pneg %p321
      // Predicated region
      $region9: #{tpu_custom_call.1} parent=5 // pred_check
        _
      $region10: #{tpu_custom_call.1} parent=5 // pred_check_branch
        %324 = sbr.rel (%p321) target = $region12
      $region11: #{tpu_custom_call.1} parent=5 // pred_region
        %s325 = ssub.s32 %s28, 1
        // Predicated region
        $region13: #{tpu_custom_call.1} parent=11 // pred_check
          %p326 = pneg %p75
        $region14: #{tpu_custom_call.1} parent=11 // pred_check_branch
          %328 = sbr.rel (%p326) target = $region16
        $region15: #{tpu_custom_call.1} parent=11 // pred_region
          %330 = vsyncadd [#allocation6], 0
          %s331 = sshll.u32 %s1, 4
          %s332 = int_to_ptr.hbm [resolvable:$true] %s331
          %s333 = sshll.u32 [#allocation5], 4
          %s334 = int_to_ptr.vmem [resolvable:$true] %s333
          %339 = dma.hbm_to_vmem [thread:$0]  %s332, 6144, %s334, [#allocation6], 192, 192, 12
        $region16: #{tpu_custom_call.1} parent=11 // pred_fallthru
          _
        // Predicated region
        $region17: #{tpu_custom_call.1} parent=11 // pred_check
          %p340 = pneg %p96
        $region18: #{tpu_custom_call.1} parent=11 // pred_check_branch
          %342 = sbr.rel (%p340) target = $region20
        $region19: #{tpu_custom_call.1} parent=11 // pred_region
          %344 = vsyncadd [#allocation6], 0
          %s345 = sshll.u32 %s2, 4
          %s346 = int_to_ptr.hbm [resolvable:$true] %s345
          %s347 = sshll.u32 [#allocation7], 4
          %s348 = int_to_ptr.vmem [resolvable:$true] %s347
          %353 = dma.hbm_to_vmem [thread:$0]  %s346, 2048, %s348, [#allocation6], 64, 64, 4
        $region20: #{tpu_custom_call.1} parent=11 // pred_fallthru
          _
        // Predicated region
        $region21: #{tpu_custom_call.1} parent=11 // pred_check
          %p354 = pneg %p117
        $region22: #{tpu_custom_call.1} parent=11 // pred_check_branch
          %356 = sbr.rel (%p354) target = $region24
        $region23: #{tpu_custom_call.1} parent=11 // pred_region
          _
        $region24: #{tpu_custom_call.1} parent=11 // pred_fallthru
          _
        // Predicated region
        $region25: #{tpu_custom_call.1} parent=11 // pred_check
          %p357 = pneg %p138
        $region26: #{tpu_custom_call.1} parent=11 // pred_check_branch
          %359 = sbr.rel (%p357) target = $region28
        $region27: #{tpu_custom_call.1} parent=11 // pred_region
          %361 = vsyncadd [#allocation9], 0
          %s362 = sshll.u32 %s4, 4
          %s363 = int_to_ptr.hbm [resolvable:$true] %s362
          %s364 = sshll.u32 [#allocation8], 4
          %s365 = int_to_ptr.vmem [resolvable:$true] %s364
          %370 = dma.hbm_to_vmem [thread:$0]  %s363, 32, %s365, [#allocation9], 16, 16, 1
        $region28: #{tpu_custom_call.1} parent=11 // pred_fallthru
          _
        // Predicated region
        $region29: #{tpu_custom_call.1} parent=11 // pred_check
          %p371 = pneg %p159
        $region30: #{tpu_custom_call.1} parent=11 // pred_check_branch
          %373 = sbr.rel (%p371) target = $region32
        $region31: #{tpu_custom_call.1} parent=11 // pred_region
          %375 = vsyncadd [#allocation9], 0
          %s376 = sshll.u32 %s5, 4
          %s377 = int_to_ptr.hbm [resolvable:$true] %s376
          %s378 = sshll.u32 [#allocation10], 4
          %s379 = int_to_ptr.vmem [resolvable:$true] %s378
          %384 = dma.hbm_to_vmem [thread:$0]  %s377, 32, %s379, [#allocation9], 16, 16, 1
        $region32: #{tpu_custom_call.1} parent=11 // pred_fallthru
          _
        // Predicated region
        $region33: #{tpu_custom_call.1} parent=11 // pred_check
          %p385 = pneg %p180
        $region34: #{tpu_custom_call.1} parent=11 // pred_check_branch
          %387 = sbr.rel (%p385) target = $region36
        $region35: #{tpu_custom_call.1} parent=11 // pred_region
          %389 = vsyncadd [#allocation12], 0
          %s390 = sshll.u32 %s6, 4
          %s391 = int_to_ptr.hbm [resolvable:$true] %s390
          %s392 = sshll.u32 [#allocation11], 4
          %s393 = int_to_ptr.vmem [resolvable:$true] %s392
          %398 = dma.hbm_to_vmem [thread:$0]  %s391, 32, %s393, [#allocation12], 16, 16, 1
        $region36: #{tpu_custom_call.1} parent=11 // pred_fallthru
          _
        // Predicated region
        $region37: #{tpu_custom_call.1} parent=11 // pred_check
          %p399 = pneg %p201
        $region38: #{tpu_custom_call.1} parent=11 // pred_check_branch
          %401 = sbr.rel (%p399) target = $region40
        $region39: #{tpu_custom_call.1} parent=11 // pred_region
          %403 = vsyncadd [#allocation12], 0
          %s404 = sshll.u32 %s7, 4
          %s405 = int_to_ptr.hbm [resolvable:$true] %s404
          %s406 = sshll.u32 [#allocation13], 4
          %s407 = int_to_ptr.vmem [resolvable:$true] %s406
          %412 = dma.hbm_to_vmem [thread:$0]  %s405, 32, %s407, [#allocation12], 16, 16, 1
        $region40: #{tpu_custom_call.1} parent=11 // pred_fallthru
          _
        // Predicated region
        $region41: #{tpu_custom_call.1} parent=11 // pred_check
          %p413 = pneg %p222
        $region42: #{tpu_custom_call.1} parent=11 // pred_check_branch
          %415 = sbr.rel (%p413) target = $region44
        $region43: #{tpu_custom_call.1} parent=11 // pred_region
          %417 = vsyncadd [#allocation15], 0
          %s418 = sshll.u32 %s8, 4
          %s419 = int_to_ptr.hbm [resolvable:$true] %s418
          %s420 = sshll.u32 [#allocation14], 4
          %s421 = int_to_ptr.vmem [resolvable:$true] %s420
          %426 = dma.hbm_to_vmem [thread:$0]  %s419, 4096, %s421, [#allocation15], 128, 128, 8
        $region44: #{tpu_custom_call.1} parent=11 // pred_fallthru
          _
        // Predicated region
        $region45: #{tpu_custom_call.1} parent=11 // pred_check
          %p427 = pneg %p243
        $region46: #{tpu_custom_call.1} parent=11 // pred_check_branch
          %429 = sbr.rel (%p427) target = $region48
        $region47: #{tpu_custom_call.1} parent=11 // pred_region
          _
        $region48: #{tpu_custom_call.1} parent=11 // pred_fallthru
          _
        // Predicated region
        $region49: #{tpu_custom_call.1} parent=11 // pred_check
          %p430 = pneg %p264
        $region50: #{tpu_custom_call.1} parent=11 // pred_check_branch
          %432 = sbr.rel (%p430) target = $region52
        $region51: #{tpu_custom_call.1} parent=11 // pred_region
          %434 = vsyncadd [#allocation15], 0
          %s435 = sshll.u32 %s10, 4
          %s436 = int_to_ptr.hbm [resolvable:$true] %s435
          %s437 = sshll.u32 [#allocation16], 4
          %s438 = int_to_ptr.vmem [resolvable:$true] %s437
          %443 = dma.hbm_to_vmem [thread:$0]  %s436, 4096, %s438, [#allocation15], 64, 64, 4
        $region52: #{tpu_custom_call.1} parent=11 // pred_fallthru
          _
        // Predicated region
        $region53: #{tpu_custom_call.1} parent=11 // pred_check
          %p444 = pneg %p285
        $region54: #{tpu_custom_call.1} parent=11 // pred_check_branch
          %446 = sbr.rel (%p444) target = $region56
        $region55: #{tpu_custom_call.1} parent=11 // pred_region
          _
        $region56: #{tpu_custom_call.1} parent=11 // pred_fallthru
          _
      $region12: #{tpu_custom_call.1} parent=5 // pred_fallthru
        _
      %p447 = scmp.lt.s32.totalorder %s28, 2
      // Predicated region
      $region57: #{tpu_custom_call.1} parent=5 // pred_check
        %p448 = pneg %p447
      $region58: #{tpu_custom_call.1} parent=5 // pred_check_branch
        %450 = sbr.rel (%p448) target = $region60
      $region59: #{tpu_custom_call.1} parent=5 // pred_region
        // Predicated region
        $region61: #{tpu_custom_call.1} parent=59 // pred_check
          %p451 = pneg %p48
        $region62: #{tpu_custom_call.1} parent=59 // pred_check_branch
          %453 = sbr.rel (%p451) target = $region64
        $region63: #{tpu_custom_call.1} parent=59 // pred_region
          %s454 = sand.u32 %s38, 1
          %s455 = scalar_lea.sflag [#allocation3], %s454
          %s456 = sand.u32 %s38, 1
          %s457 = smul.addr %s456, 8
          %s458 = scalar_lea.vmem [#allocation2], %s457
          %460 = vsyncadd %s455, 0
          %s461 = smul.addr %s28, 8
          %s462 = scalar_lea.hbm %s0, %s461
          %s464 = sshll.u32 %s462, 4
          %s465 = int_to_ptr.hbm [resolvable:$true] %s464
          %s466 = sshll.u32 %s458, 4
          %s467 = int_to_ptr.vmem [resolvable:$true] %s466
          %469 = dma.hbm_to_vmem [thread:$0]  %s465, 128, %s467, %s455
        $region64: #{tpu_custom_call.1} parent=59 // pred_fallthru
          _
      $region60: #{tpu_custom_call.1} parent=5 // pred_fallthru
        _
      %p470 = scmp.le.s32.totalorder 1, %s28
      %p471 = scmp.lt.s32.totalorder %s28, 3
      %p472 = pnand %p470, %p471
      %p473 = pneg %p472
      // Predicated region
      $region65: #{tpu_custom_call.1} parent=5 // pred_check
        _
      $region66: #{tpu_custom_call.1} parent=5 // pred_check_branch
        %475 = sbr.rel (%p472) target = $region68
      $region67: #{tpu_custom_call.1} parent=5 // pred_region
        %s476 = ssub.s32 %s28, 1
        %s477 = sand.u32 %s41, 1
        %s478 = scalar_lea.sflag [#allocation3], %s477
        %s479 = sand.u32 %s41, 1
        %s480 = smul.addr %s479, 8
        %s481 = scalar_lea.vmem [#allocation2], %s480
        // Predicated region
        $region69: #{tpu_custom_call.1} parent=67 // pred_check
          %p482 = pneg %p54
        $region70: #{tpu_custom_call.1} parent=67 // pred_check_branch
          %484 = sbr.rel (%p482) target = $region72
        $region71: #{tpu_custom_call.1} parent=67 // pred_region
          %486 = dma.done %s478, 128
        $region72: #{tpu_custom_call.1} parent=67 // pred_fallthru
          _
        // Predicated region
        $region73: #{tpu_custom_call.1} parent=67 // pred_check
          %p487 = pneg %p75
        $region74: #{tpu_custom_call.1} parent=67 // pred_check_branch
          %489 = sbr.rel (%p487) target = $region76
        $region75: #{tpu_custom_call.1} parent=67 // pred_region
          %491 = dma.done [#allocation6], 6144
        $region76: #{tpu_custom_call.1} parent=67 // pred_fallthru
          _
        // Predicated region
        $region77: #{tpu_custom_call.1} parent=67 // pred_check
          %p492 = pneg %p96
        $region78: #{tpu_custom_call.1} parent=67 // pred_check_branch
          %494 = sbr.rel (%p492) target = $region80
        $region79: #{tpu_custom_call.1} parent=67 // pred_region
          %496 = dma.done [#allocation6], 2048
        $region80: #{tpu_custom_call.1} parent=67 // pred_fallthru
          _
        // Predicated region
        $region81: #{tpu_custom_call.1} parent=67 // pred_check
          %p497 = pneg %p138
        $region82: #{tpu_custom_call.1} parent=67 // pred_check_branch
          %499 = sbr.rel (%p497) target = $region84
        $region83: #{tpu_custom_call.1} parent=67 // pred_region
          %501 = dma.done [#allocation9], 32
        $region84: #{tpu_custom_call.1} parent=67 // pred_fallthru
          _
        // Predicated region
        $region85: #{tpu_custom_call.1} parent=67 // pred_check
          %p502 = pneg %p159
        $region86: #{tpu_custom_call.1} parent=67 // pred_check_branch
          %504 = sbr.rel (%p502) target = $region88
        $region87: #{tpu_custom_call.1} parent=67 // pred_region
          %506 = dma.done [#allocation9], 32
        $region88: #{tpu_custom_call.1} parent=67 // pred_fallthru
          _
        // Predicated region
        $region89: #{tpu_custom_call.1} parent=67 // pred_check
          %p507 = pneg %p180
        $region90: #{tpu_custom_call.1} parent=67 // pred_check_branch
          %509 = sbr.rel (%p507) target = $region92
        $region91: #{tpu_custom_call.1} parent=67 // pred_region
          %511 = dma.done [#allocation12], 32
        $region92: #{tpu_custom_call.1} parent=67 // pred_fallthru
          _
        // Predicated region
        $region93: #{tpu_custom_call.1} parent=67 // pred_check
          %p512 = pneg %p201
        $region94: #{tpu_custom_call.1} parent=67 // pred_check_branch
          %514 = sbr.rel (%p512) target = $region96
        $region95: #{tpu_custom_call.1} parent=67 // pred_region
          %516 = dma.done [#allocation12], 32
        $region96: #{tpu_custom_call.1} parent=67 // pred_fallthru
          _
        // Predicated region
        $region97: #{tpu_custom_call.1} parent=67 // pred_check
          %p517 = pneg %p222
        $region98: #{tpu_custom_call.1} parent=67 // pred_check_branch
          %519 = sbr.rel (%p517) target = $region100
        $region99: #{tpu_custom_call.1} parent=67 // pred_region
          %521 = dma.done [#allocation15], 4096
        $region100: #{tpu_custom_call.1} parent=67 // pred_fallthru
          _
        // Predicated region
        $region101: #{tpu_custom_call.1} parent=67 // pred_check
          %p522 = pneg %p264
        $region102: #{tpu_custom_call.1} parent=67 // pred_check_branch
          %524 = sbr.rel (%p522) target = $region104
        $region103: #{tpu_custom_call.1} parent=67 // pred_region
          %526 = dma.done [#allocation15], 4096
        $region104: #{tpu_custom_call.1} parent=67 // pred_fallthru
          _
        %s527 = sand.u32 %s41, 1
        %s528 = scalar_lea.sflag [#allocation3], %s527
        %s529 = sand.u32 %s41, 1
        %s530 = smul.addr %s529, 8
        %s531 = scalar_lea.vmem [#allocation2], %s530
        %p532 = pneg %p54
        %p533 = pneg %p51
        %p534 = pneg %p75
        %p535 = pneg %p72
        %p536 = pneg %p96
        %p537 = pneg %p93
        %p538 = pneg %p117
        %p539 = pneg %p114
        %p540 = pneg %p138
        %p541 = pneg %p135
        %p542 = pneg %p159
        %p543 = pneg %p156
        %p544 = pneg %p180
        %p545 = pneg %p177
        %p546 = pneg %p201
        %p547 = pneg %p198
        %p548 = pneg %p222
        %p549 = pneg %p219
        %p550 = pneg %p243
        %p551 = pneg %p240
        %p552 = pneg %p264
        %p553 = pneg %p261
        %p554 = pneg %p285
        %p555 = pneg %p282
        %p556 = pneg %p311
        %p557 = pneg %p308
        %s558 = sand.u32 %s298, 1
        %s559 = scalar_lea.sflag [#allocation4], %s558
        %s560 = sand.u32 %s298, 1
        %s561 = smul.addr %s560, 8
        %s562 = scalar_lea.vmem [#allocation17], %s561
        %v564 = vld [vmem:[%s481] sm:$0xff]
        %v565 = vld [vmem:[#allocation5] sm:$0xff]
        %v566 = vld [vmem:[#allocation5 + $0x8] sm:$0xf]
        %v567 = vld [vmem:[#allocation5 + $0xc] sm:$0xff]
        %v568 = vld [vmem:[#allocation5 + $0x14] sm:$0xf]
        %v569 = vld [vmem:[#allocation5 + $0x18] sm:$0xff]
        %v570 = vld [vmem:[#allocation5 + $0x20] sm:$0xf]
        %v571 = vld [vmem:[#allocation5 + $0x24] sm:$0xff]
        %v572 = vld [vmem:[#allocation5 + $0x2c] sm:$0xf]
        %v573 = vld [vmem:[#allocation5 + $0x30] sm:$0xff]
        %v574 = vld [vmem:[#allocation5 + $0x38] sm:$0xf]
        %v575 = vld [vmem:[#allocation5 + $0x3c] sm:$0xff]
        %v576 = vld [vmem:[#allocation5 + $0x44] sm:$0xf]
        %v577 = vld [vmem:[#allocation5 + $0x48] sm:$0xff]
        %v578 = vld [vmem:[#allocation5 + $0x50] sm:$0xf]
        %v579 = vld [vmem:[#allocation5 + $0x54] sm:$0xff]
        %v580 = vld [vmem:[#allocation5 + $0x5c] sm:$0xf]
        %v581 = vld [vmem:[#allocation5 + $0x60] sm:$0xff]
        %v582 = vld [vmem:[#allocation5 + $0x68] sm:$0xf]
        %v583 = vld [vmem:[#allocation5 + $0x6c] sm:$0xff]
        %v584 = vld [vmem:[#allocation5 + $0x74] sm:$0xf]
        %v585 = vld [vmem:[#allocation5 + $0x78] sm:$0xff]
        %v586 = vld [vmem:[#allocation5 + $0x80] sm:$0xf]
        %v587 = vld [vmem:[#allocation5 + $0x84] sm:$0xff]
        %v588 = vld [vmem:[#allocation5 + $0x8c] sm:$0xf]
        %v589 = vld [vmem:[#allocation5 + $0x90] sm:$0xff]
        %v590 = vld [vmem:[#allocation5 + $0x98] sm:$0xf]
        %v591 = vld [vmem:[#allocation5 + $0x9c] sm:$0xff]
        %v592 = vld [vmem:[#allocation5 + $0xa4] sm:$0xf]
        %v593 = vld [vmem:[#allocation5 + $0xa8] sm:$0xff]
        %v594 = vld [vmem:[#allocation5 + $0xb0] sm:$0xf]
        %v595 = vld [vmem:[#allocation5 + $0xb4] sm:$0xff]
        %v596 = vld [vmem:[#allocation5 + $0xbc] sm:$0xf]
        %v597 = vld [vmem:[#allocation5 + $0xc0] sm:$0xff]
        %v598 = vld [vmem:[#allocation5 + $0xc8] sm:$0xf]
        %v599 = vld [vmem:[#allocation5 + $0xcc] sm:$0xff]
        %v600 = vld [vmem:[#allocation5 + $0xd4] sm:$0xf]
        %v601 = vld [vmem:[#allocation5 + $0xd8] sm:$0xff]
        %v602 = vld [vmem:[#allocation5 + $0xe0] sm:$0xf]
        %v603 = vld [vmem:[#allocation5 + $0xe4] sm:$0xff]
        %v604 = vld [vmem:[#allocation5 + $0xec] sm:$0xf]
        %v605 = vld [vmem:[#allocation5 + $0xf0] sm:$0xff]
        %v606 = vld [vmem:[#allocation5 + $0xf8] sm:$0xf]
        %v607 = vld [vmem:[#allocation5 + $0xfc] sm:$0xff]
        %v608 = vld [vmem:[#allocation5 + $0x104] sm:$0xf]
        %v609 = vld [vmem:[#allocation5 + $0x108] sm:$0xff]
        %v610 = vld [vmem:[#allocation5 + $0x110] sm:$0xf]
        %v611 = vld [vmem:[#allocation5 + $0x114] sm:$0xff]
        %v612 = vld [vmem:[#allocation5 + $0x11c] sm:$0xf]
        %v613 = vld [vmem:[#allocation5 + $0x120] sm:$0xff]
        %v614 = vld [vmem:[#allocation5 + $0x128] sm:$0xf]
        %v615 = vld [vmem:[#allocation5 + $0x12c] sm:$0xff]
        %v616 = vld [vmem:[#allocation5 + $0x134] sm:$0xf]
        %v617 = vld [vmem:[#allocation5 + $0x138] sm:$0xff]
        %v618 = vld [vmem:[#allocation5 + $0x140] sm:$0xf]
        %v619 = vld [vmem:[#allocation5 + $0x144] sm:$0xff]
        %v620 = vld [vmem:[#allocation5 + $0x14c] sm:$0xf]
        %v621 = vld [vmem:[#allocation5 + $0x150] sm:$0xff]
        %v622 = vld [vmem:[#allocation5 + $0x158] sm:$0xf]
        %v623 = vld [vmem:[#allocation5 + $0x15c] sm:$0xff]
        %v624 = vld [vmem:[#allocation5 + $0x164] sm:$0xf]
        %v625 = vld [vmem:[#allocation5 + $0x168] sm:$0xff]
        %v626 = vld [vmem:[#allocation5 + $0x170] sm:$0xf]
        %v627 = vld [vmem:[#allocation5 + $0x174] sm:$0xff]
        %v628 = vld [vmem:[#allocation5 + $0x17c] sm:$0xf]
        %v629 = vld [vmem:[#allocation7] sm:$0xf]
        %v630 = vld [vmem:[#allocation7 + $0x4] sm:$0xf]
        %v631 = vld [vmem:[#allocation7 + $0x8] sm:$0xf]
        %v632 = vld [vmem:[#allocation7 + $0xc] sm:$0xf]
        %v633 = vld [vmem:[#allocation7 + $0x10] sm:$0xf]
        %v634 = vld [vmem:[#allocation7 + $0x14] sm:$0xf]
        %v635 = vld [vmem:[#allocation7 + $0x18] sm:$0xf]
        %v636 = vld [vmem:[#allocation7 + $0x1c] sm:$0xf]
        %v637 = vld [vmem:[#allocation7 + $0x20] sm:$0xf]
        %v638 = vld [vmem:[#allocation7 + $0x24] sm:$0xf]
        %v639 = vld [vmem:[#allocation7 + $0x28] sm:$0xf]
        %v640 = vld [vmem:[#allocation7 + $0x2c] sm:$0xf]
        %v641 = vld [vmem:[#allocation7 + $0x30] sm:$0xf]
        %v642 = vld [vmem:[#allocation7 + $0x34] sm:$0xf]
        %v643 = vld [vmem:[#allocation7 + $0x38] sm:$0xf]
        %v644 = vld [vmem:[#allocation7 + $0x3c] sm:$0xf]
        %v645 = vld [vmem:[#allocation7 + $0x40] sm:$0xf]
        %v646 = vld [vmem:[#allocation7 + $0x44] sm:$0xf]
        %v647 = vld [vmem:[#allocation7 + $0x48] sm:$0xf]
        %v648 = vld [vmem:[#allocation7 + $0x4c] sm:$0xf]
        %v649 = vld [vmem:[#allocation7 + $0x50] sm:$0xf]
        %v650 = vld [vmem:[#allocation7 + $0x54] sm:$0xf]
        %v651 = vld [vmem:[#allocation7 + $0x58] sm:$0xf]
        %v652 = vld [vmem:[#allocation7 + $0x5c] sm:$0xf]
        %v653 = vld [vmem:[#allocation7 + $0x60] sm:$0xf]
        %v654 = vld [vmem:[#allocation7 + $0x64] sm:$0xf]
        %v655 = vld [vmem:[#allocation7 + $0x68] sm:$0xf]
        %v656 = vld [vmem:[#allocation7 + $0x6c] sm:$0xf]
        %v657 = vld [vmem:[#allocation7 + $0x70] sm:$0xf]
        %v658 = vld [vmem:[#allocation7 + $0x74] sm:$0xf]
        %v659 = vld [vmem:[#allocation7 + $0x78] sm:$0xf]
        %v660 = vld [vmem:[#allocation7 + $0x7c] sm:$0xf]
        %v661 = vld [vmem:[%s3] sm:$0x1]
        %v662 = vld [vmem:[%s3 + $0x1] sm:$0x1]
        %v663 = vld [vmem:[#allocation8] sm:$0x1]
        %v664 = vld [vmem:[#allocation8 + $0x1] sm:$0x1]
        %v665 = vld [vmem:[#allocation10] sm:$0x1]
        %v666 = vld [vmem:[#allocation10 + $0x1] sm:$0x1]
        %v667 = vld [vmem:[#allocation11] sm:$0x1]
        %v668 = vld [vmem:[#allocation11 + $0x1] sm:$0x1]
        %v669 = vld [vmem:[#allocation13] sm:$0x1]
        %v670 = vld [vmem:[#allocation13 + $0x1] sm:$0x1]
        %v671 = vld [vmem:[#allocation14] sm:$0xff]
        %v672 = vld [vmem:[#allocation14 + $0x8] sm:$0xff]
        %v673 = vld [vmem:[#allocation14 + $0x10] sm:$0xff]
        %v674 = vld [vmem:[#allocation14 + $0x18] sm:$0xff]
        %v675 = vld [vmem:[#allocation14 + $0x20] sm:$0xff]
        %v676 = vld [vmem:[#allocation14 + $0x28] sm:$0xff]
        %v677 = vld [vmem:[#allocation14 + $0x30] sm:$0xff]
        %v678 = vld [vmem:[#allocation14 + $0x38] sm:$0xff]
        %v679 = vld [vmem:[#allocation14 + $0x40] sm:$0xff]
        %v680 = vld [vmem:[#allocation14 + $0x48] sm:$0xff]
        %v681 = vld [vmem:[#allocation14 + $0x50] sm:$0xff]
        %v682 = vld [vmem:[#allocation14 + $0x58] sm:$0xff]
        %v683 = vld [vmem:[#allocation14 + $0x60] sm:$0xff]
        %v684 = vld [vmem:[#allocation14 + $0x68] sm:$0xff]
        %v685 = vld [vmem:[#allocation14 + $0x70] sm:$0xff]
        %v686 = vld [vmem:[#allocation14 + $0x78] sm:$0xff]
        %v687 = vld [vmem:[#allocation14 + $0x80] sm:$0xff]
        %v688 = vld [vmem:[#allocation14 + $0x88] sm:$0xff]
        %v689 = vld [vmem:[#allocation14 + $0x90] sm:$0xff]
        %v690 = vld [vmem:[#allocation14 + $0x98] sm:$0xff]
        %v691 = vld [vmem:[#allocation14 + $0xa0] sm:$0xff]
        %v692 = vld [vmem:[#allocation14 + $0xa8] sm:$0xff]
        %v693 = vld [vmem:[#allocation14 + $0xb0] sm:$0xff]
        %v694 = vld [vmem:[#allocation14 + $0xb8] sm:$0xff]
        %v695 = vld [vmem:[#allocation14 + $0xc0] sm:$0xff]
        %v696 = vld [vmem:[#allocation14 + $0xc8] sm:$0xff]
        %v697 = vld [vmem:[#allocation14 + $0xd0] sm:$0xff]
        %v698 = vld [vmem:[#allocation14 + $0xd8] sm:$0xff]
        %v699 = vld [vmem:[#allocation14 + $0xe0] sm:$0xff]
        %v700 = vld [vmem:[#allocation14 + $0xe8] sm:$0xff]
        %v701 = vld [vmem:[#allocation14 + $0xf0] sm:$0xff]
        %v702 = vld [vmem:[#allocation14 + $0xf8] sm:$0xff]
        %v703 = vld [vmem:[%s9] sm:$0x3]
        %v704 = vld [vmem:[%s9 + $0x2] sm:$0x3]
        %v705 = vld [vmem:[#allocation16] sm:$0xf]
        %v706 = vld [vmem:[#allocation16 + $0x4] sm:$0xf]
        %v707 = vld [vmem:[#allocation16 + $0x8] sm:$0xf]
        %v708 = vld [vmem:[#allocation16 + $0xc] sm:$0xf]
        %v709 = vld [vmem:[#allocation16 + $0x10] sm:$0xf]
        %v710 = vld [vmem:[#allocation16 + $0x14] sm:$0xf]
        %v711 = vld [vmem:[#allocation16 + $0x18] sm:$0xf]
        %v712 = vld [vmem:[#allocation16 + $0x1c] sm:$0xf]
        %v713 = vld [vmem:[#allocation16 + $0x20] sm:$0xf]
        %v714 = vld [vmem:[#allocation16 + $0x24] sm:$0xf]
        %v715 = vld [vmem:[#allocation16 + $0x28] sm:$0xf]
        %v716 = vld [vmem:[#allocation16 + $0x2c] sm:$0xf]
        %v717 = vld [vmem:[#allocation16 + $0x30] sm:$0xf]
        %v718 = vld [vmem:[#allocation16 + $0x34] sm:$0xf]
        %v719 = vld [vmem:[#allocation16 + $0x38] sm:$0xf]
        %v720 = vld [vmem:[#allocation16 + $0x3c] sm:$0xf]
        %v721 = vld [vmem:[#allocation16 + $0x40] sm:$0xf]
        %v722 = vld [vmem:[#allocation16 + $0x44] sm:$0xf]
        %v723 = vld [vmem:[#allocation16 + $0x48] sm:$0xf]
        %v724 = vld [vmem:[#allocation16 + $0x4c] sm:$0xf]
        %v725 = vld [vmem:[#allocation16 + $0x50] sm:$0xf]
        %v726 = vld [vmem:[#allocation16 + $0x54] sm:$0xf]
        %v727 = vld [vmem:[#allocation16 + $0x58] sm:$0xf]
        %v728 = vld [vmem:[#allocation16 + $0x5c] sm:$0xf]
        %v729 = vld [vmem:[#allocation16 + $0x60] sm:$0xf]
        %v730 = vld [vmem:[#allocation16 + $0x64] sm:$0xf]
        %v731 = vld [vmem:[#allocation16 + $0x68] sm:$0xf]
        %v732 = vld [vmem:[#allocation16 + $0x6c] sm:$0xf]
        %v733 = vld [vmem:[#allocation16 + $0x70] sm:$0xf]
        %v734 = vld [vmem:[#allocation16 + $0x74] sm:$0xf]
        %v735 = vld [vmem:[#allocation16 + $0x78] sm:$0xf]
        %v736 = vld [vmem:[#allocation16 + $0x7c] sm:$0xf]
        %v737 = vld [vmem:[#allocation16 + $0x80] sm:$0xf]
        %v738 = vld [vmem:[#allocation16 + $0x84] sm:$0xf]
        %v739 = vld [vmem:[#allocation16 + $0x88] sm:$0xf]
        %v740 = vld [vmem:[#allocation16 + $0x8c] sm:$0xf]
        %v741 = vld [vmem:[#allocation16 + $0x90] sm:$0xf]
        %v742 = vld [vmem:[#allocation16 + $0x94] sm:$0xf]
        %v743 = vld [vmem:[#allocation16 + $0x98] sm:$0xf]
        %v744 = vld [vmem:[#allocation16 + $0x9c] sm:$0xf]
        %v745 = vld [vmem:[#allocation16 + $0xa0] sm:$0xf]
        %v746 = vld [vmem:[#allocation16 + $0xa4] sm:$0xf]
        %v747 = vld [vmem:[#allocation16 + $0xa8] sm:$0xf]
        %v748 = vld [vmem:[#allocation16 + $0xac] sm:$0xf]
        %v749 = vld [vmem:[#allocation16 + $0xb0] sm:$0xf]
        %v750 = vld [vmem:[#allocation16 + $0xb4] sm:$0xf]
        %v751 = vld [vmem:[#allocation16 + $0xb8] sm:$0xf]
        %v752 = vld [vmem:[#allocation16 + $0xbc] sm:$0xf]
        %v753 = vld [vmem:[#allocation16 + $0xc0] sm:$0xf]
        %v754 = vld [vmem:[#allocation16 + $0xc4] sm:$0xf]
        %v755 = vld [vmem:[#allocation16 + $0xc8] sm:$0xf]
        %v756 = vld [vmem:[#allocation16 + $0xcc] sm:$0xf]
        %v757 = vld [vmem:[#allocation16 + $0xd0] sm:$0xf]
        %v758 = vld [vmem:[#allocation16 + $0xd4] sm:$0xf]
        %v759 = vld [vmem:[#allocation16 + $0xd8] sm:$0xf]
        %v760 = vld [vmem:[#allocation16 + $0xdc] sm:$0xf]
        %v761 = vld [vmem:[#allocation16 + $0xe0] sm:$0xf]
        %v762 = vld [vmem:[#allocation16 + $0xe4] sm:$0xf]
        %v763 = vld [vmem:[#allocation16 + $0xe8] sm:$0xf]
        %v764 = vld [vmem:[#allocation16 + $0xec] sm:$0xf]
        %v765 = vld [vmem:[#allocation16 + $0xf0] sm:$0xf]
        %v766 = vld [vmem:[#allocation16 + $0xf4] sm:$0xf]
        %v767 = vld [vmem:[#allocation16 + $0xf8] sm:$0xf]
        %v768 = vld [vmem:[#allocation16 + $0xfc] sm:$0xf]
        %v769 = vld [vmem:[%s11] sm:$0x1]
        %v770 = vld [vmem:[%s11 + $0x1] sm:$0x1]
        %771 = vadd.xlane.f32.xlu0 %v564
        %v772 = vpop.xlane.xlu0 %771
        %v773 = vrcp.pop 128.0
        %v774 = vmul.f32 128.0, %v773
        %v775 = vsub.f32 1.0, %v774
        %v776 = vmul.f32 %v773, %v775
        %v777 = vadd.f32 %v773, %v776
        %vm778 = vweird.f32 %v773
        %v779 = vsel %vm778, %v773, %v777
        %v780 = vmul.f32 %v772, %v779
        %v781 = vsub.f32 %v564, %v780
        %v782 = vmul.f32 %v781, %v781
        %783 = vadd.xlane.f32.xlu0 %v782
        %v784 = vpop.xlane.xlu0 %783
        %v785 = vmul.f32 %v784, %v779
        %v786 = vadd.f32 %v785, 1e-05
        %v787 = vrsqrt.pop %v786
        %v788 = vmul.f32 %v787, %v786
        %v789 = vmul.f32 %v788, %v787
        %v790 = vmul.f32 0.5, %v789
        %v791 = vsub.f32 1.5, %v790
        %v792 = vmul.f32 %v787, %v791
        %vm793 = vweird.f32 %v786
        %vm794 = vweird.f32 %v787
        %vm795 = vmor %vm793, %vm794
        %v796 = vsel %vm795, %v787, %v792
        %v797 = vmul.f32 %v781, %v796
        %v799 = vperm.slane %v663, 0
        %v801 = vmul.f32 %v797, %v799
        %v803 = vperm.slane %v665, 0
        %v805 = vadd.f32 %v801, %v803
        %v806 = vpack.c.bf16 %v805, %v805
        %v839 = vunpack.c.l.b16 %v565
        %v840 = vunpack.c.h.b16 %v565
        %v841 = vunpack.c.l.b16 %v566
        %v842 = vunpack.c.l.b16 %v567
        %v843 = vunpack.c.h.b16 %v567
        %v844 = vunpack.c.l.b16 %v568
        %v845 = vunpack.c.l.b16 %v569
        %v846 = vunpack.c.h.b16 %v569
        %v847 = vunpack.c.l.b16 %v570
        %v848 = vunpack.c.l.b16 %v571
        %v849 = vunpack.c.h.b16 %v571
        %v850 = vunpack.c.l.b16 %v572
        %v851 = vunpack.c.l.b16 %v573
        %v852 = vunpack.c.h.b16 %v573
        %v853 = vunpack.c.l.b16 %v574
        %v854 = vunpack.c.l.b16 %v575
        %v855 = vunpack.c.h.b16 %v575
        %v856 = vunpack.c.l.b16 %v576
        %v857 = vunpack.c.l.b16 %v577
        %v858 = vunpack.c.h.b16 %v577
        %v859 = vunpack.c.l.b16 %v578
        %v860 = vunpack.c.l.b16 %v579
        %v861 = vunpack.c.h.b16 %v579
        %v862 = vunpack.c.l.b16 %v580
        %v863 = vunpack.c.l.b16 %v581
        %v864 = vunpack.c.h.b16 %v581
        %v865 = vunpack.c.l.b16 %v582
        %v866 = vunpack.c.l.b16 %v583
        %v867 = vunpack.c.h.b16 %v583
        %v868 = vunpack.c.l.b16 %v584
        %v869 = vunpack.c.l.b16 %v585
        %v870 = vunpack.c.h.b16 %v585
        %v871 = vunpack.c.l.b16 %v586
        %v872 = vunpack.c.l.b16 %v587
        %v873 = vunpack.c.h.b16 %v587
        %v874 = vunpack.c.l.b16 %v588
        %v875 = vunpack.c.l.b16 %v589
        %v876 = vunpack.c.h.b16 %v589
        %v877 = vunpack.c.l.b16 %v590
        %v878 = vunpack.c.l.b16 %v591
        %v879 = vunpack.c.h.b16 %v591
        %v880 = vunpack.c.l.b16 %v592
        %v881 = vunpack.c.l.b16 %v593
        %v882 = vunpack.c.h.b16 %v593
        %v883 = vunpack.c.l.b16 %v594
        %v884 = vunpack.c.l.b16 %v595
        %v885 = vunpack.c.h.b16 %v595
        %v886 = vunpack.c.l.b16 %v596
        %v887 = vpack.c.b16 %v842, %v839
        %v888 = vpack.c.b16 %v843, %v840
        %v889 = vpack.c.b16 %v844, %v841
        %v890 = vpack.c.b16 %v848, %v845
        %v891 = vpack.c.b16 %v849, %v846
        %v892 = vpack.c.b16 %v850, %v847
        %v893 = vpack.c.b16 %v854, %v851
        %v894 = vpack.c.b16 %v855, %v852
        %v895 = vpack.c.b16 %v856, %v853
        %v896 = vpack.c.b16 %v860, %v857
        %v897 = vpack.c.b16 %v861, %v858
        %v898 = vpack.c.b16 %v862, %v859
        %v899 = vpack.c.b16 %v866, %v863
        %v900 = vpack.c.b16 %v867, %v864
        %v901 = vpack.c.b16 %v868, %v865
        %v902 = vpack.c.b16 %v872, %v869
        %v903 = vpack.c.b16 %v873, %v870
        %v904 = vpack.c.b16 %v874, %v871
        %v905 = vpack.c.b16 %v878, %v875
        %v906 = vpack.c.b16 %v879, %v876
        %v907 = vpack.c.b16 %v880, %v877
        %v908 = vpack.c.b16 %v884, %v881
        %v909 = vpack.c.b16 %v885, %v882
        %v910 = vpack.c.b16 %v886, %v883
        %935 = vmatpush.bf16.msra.mxu0 %v908
        %936 = vmatpush.bf16.msra.mxu0 %v905
        %937 = vmatpush.bf16.msra.mxu0 %v902
        %938 = vmatpush.bf16.msra.mxu0 %v899
        %939 = vmatpush.bf16.msra.mxu0 %v896
        %940 = vmatpush.bf16.msra.mxu0 %v893
        %941 = vmatpush.bf16.msra.mxu0 %v890
        %942 = vmatpush.bf16.msra.mxu0 %v887
        %943 = vmatmul.bf16.gmra.mxu0 %v806
        %v944 = vpop.f32.mrf.mxu0
        %v945 = vadd.f32 0.0, %v944
        %v946 = vpop.f32.mrf.mxu0
        %947 = vdwg.mxu0
        %948 = vmatpush.bf16.msra.mxu0 %v909
        %949 = vmatpush.bf16.msra.mxu0 %v906
        %950 = vmatpush.bf16.msra.mxu0 %v903
        %951 = vmatpush.bf16.msra.mxu0 %v900
        %952 = vmatpush.bf16.msra.mxu0 %v897
        %953 = vmatpush.bf16.msra.mxu0 %v894
        %954 = vmatpush.bf16.msra.mxu0 %v891
        %955 = vmatpush.bf16.msra.mxu0 %v888
        %956 = vmatmul.bf16.gmra.mxu0 %v806
        %v957 = vpop.f32.mrf.mxu0
        %v958 = vadd.f32 0.0, %v957
        %v959 = vpop.f32.mrf.mxu0
        %960 = vdwg.mxu0
        %961 = vmatpush.bf16.msra.mxu0 %v910
        %962 = vmatpush.bf16.msra.mxu0 %v907
        %963 = vmatpush.bf16.msra.mxu0 %v904
        %964 = vmatpush.bf16.msra.mxu0 %v901
        %965 = vmatpush.bf16.msra.mxu0 %v898
        %966 = vmatpush.bf16.msra.mxu0 %v895
        %967 = vmatpush.bf16.msra.mxu0 %v892
        %968 = vmatpush.bf16.msra.mxu0 %v889
        %969 = vmatmul.bf16.gmra.mxu0 %v806
        %v970 = vpop.f32.mrf.mxu0
        %v971 = vadd.f32 0.0, %v970
        %v972 = vpop.f32.mrf.mxu0
        %973 = vdwg.mxu0
        %v974 = vpack.c.bf16 %v945, %v945
        %v975 = vpack.c.bf16 %v958, %v958
        %v976 = vpack.c.bf16 %v971, %v971
        %vm977 = vcmask 261120
        %v979 = vsel %vm977, %v974, 0
        %v982 = vsel %vm977, %v975, 0
        %984 = vmatpush.bf16.xpose.msra.mxu0 0
        %985 = vmatpush.bf16.xpose.msra.mxu0 0
        %986 = vmatpush.bf16.xpose.msra.mxu0 0
        %987 = vmatpush.bf16.xpose.msra.mxu0 0
        %988 = vmatpush.bf16.xpose.msra.mxu0 0
        %989 = vmatpush.bf16.xpose.msra.mxu0 0
        %990 = vmatpush.bf16.xpose.msra.mxu0 0
        %991 = vmatpush.bf16.xpose.msra.mxu0 %v982
        %992 = vmatmul.bf16.gmra.mxu0 %v979
        %v993 = vpop.f32.mrf.mxu0
        %v994 = vadd.f32 0.0, %v993
        %v995 = vpop.f32.mrf.mxu0
        %996 = vdwg.mxu0
        %v997 = vmul.f32 %v994, 0.17677669
        %vm998 = vcmask 64512
        %v999 = vsel %vm998, %v997, -inf
        %1000 = vmax.xlane.f32.xlu0 %v999
        %v1001 = vpop.xlane.xlu0 %1000
        %v1002 = vsub.f32 %v997, %v1001
        %v1003 = vmul.f32 %v1002, 1.442695
        %v1004 = vpow.pop %v1003
        %v1005 = vsel %vm998, %v1004, 0.0
        %1006 = vadd.xlane.f32.xlu0 %v1005
        %v1007 = vpop.xlane.xlu0 %1006
        %v1008 = vrcp.pop %v1007
        %v1009 = vmul.f32 %v1007, %v1008
        %v1010 = vsub.f32 1.0, %v1009
        %v1011 = vmul.f32 %v1008, %v1010
        %v1012 = vadd.f32 %v1008, %v1011
        %vm1013 = vweird.f32 %v1007
        %vm1014 = vweird.f32 %v1008
        %vm1015 = vmor %vm1013, %vm1014
        %v1016 = vsel %vm1015, %v1008, %v1012
        %v1017 = vand.u32 2147483647, %v1007
        %vm1018 = vcmp.eq.f32.partialorder %v1017, 8.507059e+37
        %v1019 = vand.u32 %v1007, 2147483648
        %v1020 = vor.u32 1.1754944e-38, %v1019
        %v1021 = vsel %vm1018, %v1020, %v1016
        %v1022 = vmul.f32 %v1004, %v1021
        %v1023 = vpack.c.bf16 %v1022, %v1022
        %v1025 = vsel %vm998, %v1023, 0
        %vm1027 = vcmask 1043456
        %v1029 = vsel %vm1027, %v976, 0
        %1031 = vmatpush.bf16.msra.mxu0 0
        %1032 = vmatpush.bf16.msra.mxu0 0
        %1033 = vmatpush.bf16.msra.mxu0 0
        %1034 = vmatpush.bf16.msra.mxu0 0
        %1035 = vmatpush.bf16.msra.mxu0 0
        %1036 = vmatpush.bf16.msra.mxu0 0
        %1037 = vmatpush.bf16.msra.mxu0 0
        %1038 = vmatpush.bf16.msra.mxu0 %v1029
        %1039 = vmatmul.bf16.gmra.mxu0 %v1025
        %v1040 = vpop.f32.mrf.mxu0
        %v1041 = vadd.f32 0.0, %v1040
        %v1042 = vpop.f32.mrf.mxu0
        %1043 = vdwg.mxu0
        %1045 = vrot.lane.b32.xlu0 %v974, 96
        %v1046 = vpop.permute.xlu0 %1045
        %1048 = vrot.lane.b32.xlu0 %v975, 96
        %v1049 = vpop.permute.xlu0 %1048
        %v1051 = vsel %vm977, %v1046, 0
        %v1054 = vsel %vm977, %v1049, 0
        %1056 = vmatpush.bf16.xpose.msra.mxu0 0
        %1057 = vmatpush.bf16.xpose.msra.mxu0 0
        %1058 = vmatpush.bf16.xpose.msra.mxu0 0
        %1059 = vmatpush.bf16.xpose.msra.mxu0 0
        %1060 = vmatpush.bf16.xpose.msra.mxu0 0
        %1061 = vmatpush.bf16.xpose.msra.mxu0 0
        %1062 = vmatpush.bf16.xpose.msra.mxu0 0
        %1063 = vmatpush.bf16.xpose.msra.mxu0 %v1054
        %1064 = vmatmul.bf16.gmra.mxu0 %v1051
        %v1065 = vpop.f32.mrf.mxu0
        %v1066 = vadd.f32 0.0, %v1065
        %v1067 = vpop.f32.mrf.mxu0
        %1068 = vdwg.mxu0
        %v1069 = vmul.f32 %v1066, 0.17677669
        %v1070 = vsel %vm998, %v1069, -inf
        %1071 = vmax.xlane.f32.xlu0 %v1070
        %v1072 = vpop.xlane.xlu0 %1071
        %v1073 = vsub.f32 %v1069, %v1072
        %v1074 = vmul.f32 %v1073, 1.442695
        %v1075 = vpow.pop %v1074
        %v1076 = vsel %vm998, %v1075, 0.0
        %1077 = vadd.xlane.f32.xlu0 %v1076
        %v1078 = vpop.xlane.xlu0 %1077
        %v1079 = vrcp.pop %v1078
        %v1080 = vmul.f32 %v1078, %v1079
        %v1081 = vsub.f32 1.0, %v1080
        %v1082 = vmul.f32 %v1079, %v1081
        %v1083 = vadd.f32 %v1079, %v1082
        %vm1084 = vweird.f32 %v1078
        %vm1085 = vweird.f32 %v1079
        %vm1086 = vmor %vm1084, %vm1085
        %v1087 = vsel %vm1086, %v1079, %v1083
        %v1088 = vand.u32 2147483647, %v1078
        %vm1089 = vcmp.eq.f32.partialorder %v1088, 8.507059e+37
        %v1090 = vand.u32 %v1078, 2147483648
        %v1091 = vor.u32 1.1754944e-38, %v1090
        %v1092 = vsel %vm1089, %v1091, %v1087
        %v1093 = vmul.f32 %v1075, %v1092
        %v1094 = vpack.c.bf16 %v1093, %v1093
        %1096 = vrot.lane.b32.xlu0 %v976, 96
        %v1097 = vpop.permute.xlu0 %1096
        %v1099 = vsel %vm998, %v1094, 0
        %v1102 = vsel %vm1027, %v1097, 0
        %1104 = vmatpush.bf16.msra.mxu0 0
        %1105 = vmatpush.bf16.msra.mxu0 0
        %1106 = vmatpush.bf16.msra.mxu0 0
        %1107 = vmatpush.bf16.msra.mxu0 0
        %1108 = vmatpush.bf16.msra.mxu0 0
        %1109 = vmatpush.bf16.msra.mxu0 0
        %1110 = vmatpush.bf16.msra.mxu0 0
        %1111 = vmatpush.bf16.msra.mxu0 %v1102
        %1112 = vmatmul.bf16.gmra.mxu0 %v1099
        %v1113 = vpop.f32.mrf.mxu0
        %v1114 = vadd.f32 0.0, %v1113
        %v1115 = vpop.f32.mrf.mxu0
        %1116 = vdwg.mxu0
        %1117 = vrot.lane.b32.xlu0 %v974, 64
        %v1118 = vpop.permute.xlu0 %1117
        %1119 = vrot.lane.b32.xlu0 %v975, 64
        %v1120 = vpop.permute.xlu0 %1119
        %v1122 = vsel %vm977, %v1118, 0
        %v1125 = vsel %vm977, %v1120, 0
        %1127 = vmatpush.bf16.xpose.msra.mxu0 0
        %1128 = vmatpush.bf16.xpose.msra.mxu0 0
        %1129 = vmatpush.bf16.xpose.msra.mxu0 0
        %1130 = vmatpush.bf16.xpose.msra.mxu0 0
        %1131 = vmatpush.bf16.xpose.msra.mxu0 0
        %1132 = vmatpush.bf16.xpose.msra.mxu0 0
        %1133 = vmatpush.bf16.xpose.msra.mxu0 0
        %1134 = vmatpush.bf16.xpose.msra.mxu0 %v1125
        %1135 = vmatmul.bf16.gmra.mxu0 %v1122
        %v1136 = vpop.f32.mrf.mxu0
        %v1137 = vadd.f32 0.0, %v1136
        %v1138 = vpop.f32.mrf.mxu0
        %1139 = vdwg.mxu0
        %v1140 = vmul.f32 %v1137, 0.17677669
        %v1141 = vsel %vm998, %v1140, -inf
        %1142 = vmax.xlane.f32.xlu0 %v1141
        %v1143 = vpop.xlane.xlu0 %1142
        %v1144 = vsub.f32 %v1140, %v1143
        %v1145 = vmul.f32 %v1144, 1.442695
        %v1146 = vpow.pop %v1145
        %v1147 = vsel %vm998, %v1146, 0.0
        %1148 = vadd.xlane.f32.xlu0 %v1147
        %v1149 = vpop.xlane.xlu0 %1148
        %v1150 = vrcp.pop %v1149
        %v1151 = vmul.f32 %v1149, %v1150
        %v1152 = vsub.f32 1.0, %v1151
        %v1153 = vmul.f32 %v1150, %v1152
        %v1154 = vadd.f32 %v1150, %v1153
        %vm1155 = vweird.f32 %v1149
        %vm1156 = vweird.f32 %v1150
        %vm1157 = vmor %vm1155, %vm1156
        %v1158 = vsel %vm1157, %v1150, %v1154
        %v1159 = vand.u32 2147483647, %v1149
        %vm1160 = vcmp.eq.f32.partialorder %v1159, 8.507059e+37
        %v1161 = vand.u32 %v1149, 2147483648
        %v1162 = vor.u32 1.1754944e-38, %v1161
        %v1163 = vsel %vm1160, %v1162, %v1158
        %v1164 = vmul.f32 %v1146, %v1163
        %v1165 = vpack.c.bf16 %v1164, %v1164
        %1166 = vrot.lane.b32.xlu0 %v976, 64
        %v1167 = vpop.permute.xlu0 %1166
        %v1169 = vsel %vm998, %v1165, 0
        %v1172 = vsel %vm1027, %v1167, 0
        %1174 = vmatpush.bf16.msra.mxu0 0
        %1175 = vmatpush.bf16.msra.mxu0 0
        %1176 = vmatpush.bf16.msra.mxu0 0
        %1177 = vmatpush.bf16.msra.mxu0 0
        %1178 = vmatpush.bf16.msra.mxu0 0
        %1179 = vmatpush.bf16.msra.mxu0 0
        %1180 = vmatpush.bf16.msra.mxu0 0
        %1181 = vmatpush.bf16.msra.mxu0 %v1172
        %1182 = vmatmul.bf16.gmra.mxu0 %v1169
        %v1183 = vpop.f32.mrf.mxu0
        %v1184 = vadd.f32 0.0, %v1183
        %v1185 = vpop.f32.mrf.mxu0
        %1186 = vdwg.mxu0
        %1187 = vrot.lane.b32.xlu0 %v974, 32
        %v1188 = vpop.permute.xlu0 %1187
        %1189 = vrot.lane.b32.xlu0 %v975, 32
        %v1190 = vpop.permute.xlu0 %1189
        %v1192 = vsel %vm977, %v1188, 0
        %v1195 = vsel %vm977, %v1190, 0
        %1197 = vmatpush.bf16.xpose.msra.mxu0 0
        %1198 = vmatpush.bf16.xpose.msra.mxu0 0
        %1199 = vmatpush.bf16.xpose.msra.mxu0 0
        %1200 = vmatpush.bf16.xpose.msra.mxu0 0
        %1201 = vmatpush.bf16.xpose.msra.mxu0 0
        %1202 = vmatpush.bf16.xpose.msra.mxu0 0
        %1203 = vmatpush.bf16.xpose.msra.mxu0 0
        %1204 = vmatpush.bf16.xpose.msra.mxu0 %v1195
        %1205 = vmatmul.bf16.gmra.mxu0 %v1192
        %v1206 = vpop.f32.mrf.mxu0
        %v1207 = vadd.f32 0.0, %v1206
        %v1208 = vpop.f32.mrf.mxu0
        %1209 = vdwg.mxu0
        %v1210 = vmul.f32 %v1207, 0.17677669
        %v1211 = vsel %vm998, %v1210, -inf
        %1212 = vmax.xlane.f32.xlu0 %v1211
        %v1213 = vpop.xlane.xlu0 %1212
        %v1214 = vsub.f32 %v1210, %v1213
        %v1215 = vmul.f32 %v1214, 1.442695
        %v1216 = vpow.pop %v1215
        %v1217 = vsel %vm998, %v1216, 0.0
        %1218 = vadd.xlane.f32.xlu0 %v1217
        %v1219 = vpop.xlane.xlu0 %1218
        %v1220 = vrcp.pop %v1219
        %v1221 = vmul.f32 %v1219, %v1220
        %v1222 = vsub.f32 1.0, %v1221
        %v1223 = vmul.f32 %v1220, %v1222
        %v1224 = vadd.f32 %v1220, %v1223
        %vm1225 = vweird.f32 %v1219
        %vm1226 = vweird.f32 %v1220
        %vm1227 = vmor %vm1225, %vm1226
        %v1228 = vsel %vm1227, %v1220, %v1224
        %v1229 = vand.u32 2147483647, %v1219
        %vm1230 = vcmp.eq.f32.partialorder %v1229, 8.507059e+37
        %v1231 = vand.u32 %v1219, 2147483648
        %v1232 = vor.u32 1.1754944e-38, %v1231
        %v1233 = vsel %vm1230, %v1232, %v1228
        %v1234 = vmul.f32 %v1216, %v1233
        %v1235 = vpack.c.bf16 %v1234, %v1234
        %1236 = vrot.lane.b32.xlu0 %v976, 32
        %v1237 = vpop.permute.xlu0 %1236
        %v1239 = vsel %vm998, %v1235, 0
        %v1242 = vsel %vm1027, %v1237, 0
        %1244 = vmatpush.bf16.msra.mxu0 0
        %1245 = vmatpush.bf16.msra.mxu0 0
        %1246 = vmatpush.bf16.msra.mxu0 0
        %1247 = vmatpush.bf16.msra.mxu0 0
        %1248 = vmatpush.bf16.msra.mxu0 0
        %1249 = vmatpush.bf16.msra.mxu0 0
        %1250 = vmatpush.bf16.msra.mxu0 0
        %1251 = vmatpush.bf16.msra.mxu0 %v1242
        %1252 = vmatmul.bf16.gmra.mxu0 %v1239
        %v1253 = vpop.f32.mrf.mxu0
        %v1254 = vadd.f32 0.0, %v1253
        %v1255 = vpop.f32.mrf.mxu0
        %1256 = vdwg.mxu0
        %1258 = vrot.lane.b32.xlu0 %v1114, 32
        %v1259 = vpop.permute.xlu0 %1258
        %1262 = vrot.lane.b32.xlu0 %v1184, 64
        %v1263 = vpop.permute.xlu0 %1262
        %1266 = vrot.lane.b32.xlu0 %v1254, 96
        %v1267 = vpop.permute.xlu0 %1266
        %v1269 = vsel %vm977, %v1041, %v1259
        %vm1270 = vcmask 523264
        %v1271 = vsel %vm1270, %v1269, %v1263
        %vm1272 = vcmask 785408
        %v1273 = vsel %vm1272, %v1271, %v1267
        %v1274 = vpack.c.bf16 %v1273, %v1273
        %v1276 = vperm.slane %v661, 0
        %v1294 = vunpack.c.l.b16 %v629
        %v1295 = vunpack.c.l.b16 %v630
        %v1296 = vunpack.c.l.b16 %v631
        %v1297 = vunpack.c.l.b16 %v632
        %v1298 = vunpack.c.l.b16 %v633
        %v1299 = vunpack.c.l.b16 %v634
        %v1300 = vunpack.c.l.b16 %v635
        %v1301 = vunpack.c.l.b16 %v636
        %v1302 = vunpack.c.l.b16 %v637
        %v1303 = vunpack.c.l.b16 %v638
        %v1304 = vunpack.c.l.b16 %v639
        %v1305 = vunpack.c.l.b16 %v640
        %v1306 = vunpack.c.l.b16 %v641
        %v1307 = vunpack.c.l.b16 %v642
        %v1308 = vunpack.c.l.b16 %v643
        %v1309 = vunpack.c.l.b16 %v644
        %v1310 = vpack.c.b16 %v1295, %v1294
        %v1311 = vpack.c.b16 %v1297, %v1296
        %v1312 = vpack.c.b16 %v1299, %v1298
        %v1313 = vpack.c.b16 %v1301, %v1300
        %v1314 = vpack.c.b16 %v1303, %v1302
        %v1315 = vpack.c.b16 %v1305, %v1304
        %v1316 = vpack.c.b16 %v1307, %v1306
        %v1317 = vpack.c.b16 %v1309, %v1308
        %1326 = vmatpush.bf16.msra.mxu0 %v1317
        %1327 = vmatpush.bf16.msra.mxu0 %v1316
        %1328 = vmatpush.bf16.msra.mxu0 %v1315
        %1329 = vmatpush.bf16.msra.mxu0 %v1314
        %1330 = vmatpush.bf16.msra.mxu0 %v1313
        %1331 = vmatpush.bf16.msra.mxu0 %v1312
        %1332 = vmatpush.bf16.msra.mxu0 %v1311
        %1333 = vmatpush.bf16.msra.mxu0 %v1310
        %1334 = vmatmul.bf16.gmra.mxu0 %v1274
        %v1335 = vpop.f32.mrf.mxu0
        %v1336 = vadd.f32 %v1276, %v1335
        %v1337 = vpop.f32.mrf.mxu0
        %1338 = vdwg.mxu0
        %v1339 = vadd.f32 %v564, %v1336
        %1340 = vadd.xlane.f32.xlu0 %v1339
        %v1341 = vpop.xlane.xlu0 %1340
        %v1342 = vmul.f32 %v1341, %v779
        %v1343 = vsub.f32 %v1339, %v1342
        %v1344 = vmul.f32 %v1343, %v1343
        %1345 = vadd.xlane.f32.xlu0 %v1344
        %v1346 = vpop.xlane.xlu0 %1345
        %v1347 = vmul.f32 %v1346, %v779
        %v1348 = vadd.f32 %v1347, 1e-05
        %v1349 = vrsqrt.pop %v1348
        %v1350 = vmul.f32 %v1349, %v1348
        %v1351 = vmul.f32 %v1350, %v1349
        %v1352 = vmul.f32 0.5, %v1351
        %v1353 = vsub.f32 1.5, %v1352
        %v1354 = vmul.f32 %v1349, %v1353
        %vm1355 = vweird.f32 %v1348
        %vm1356 = vweird.f32 %v1349
        %vm1357 = vmor %vm1355, %vm1356
        %v1358 = vsel %vm1357, %v1349, %v1354
        %v1359 = vmul.f32 %v1343, %v1358
        %v1361 = vperm.slane %v667, 0
        %v1363 = vmul.f32 %v1359, %v1361
        %v1365 = vperm.slane %v669, 0
        %v1367 = vadd.f32 %v1363, %v1365
        %v1368 = vpack.c.bf16 %v1367, %v1367
        %v1370 = vperm.slane %v703, 0
        %v1371 = vperm.slane %v703, 1
        %v1390 = vunpack.c.l.b16 %v671
        %v1391 = vunpack.c.h.b16 %v671
        %v1392 = vunpack.c.l.b16 %v672
        %v1393 = vunpack.c.h.b16 %v672
        %v1394 = vunpack.c.l.b16 %v673
        %v1395 = vunpack.c.h.b16 %v673
        %v1396 = vunpack.c.l.b16 %v674
        %v1397 = vunpack.c.h.b16 %v674
        %v1398 = vunpack.c.l.b16 %v675
        %v1399 = vunpack.c.h.b16 %v675
        %v1400 = vunpack.c.l.b16 %v676
        %v1401 = vunpack.c.h.b16 %v676
        %v1402 = vunpack.c.l.b16 %v677
        %v1403 = vunpack.c.h.b16 %v677
        %v1404 = vunpack.c.l.b16 %v678
        %v1405 = vunpack.c.h.b16 %v678
        %v1406 = vunpack.c.l.b16 %v679
        %v1407 = vunpack.c.h.b16 %v679
        %v1408 = vunpack.c.l.b16 %v680
        %v1409 = vunpack.c.h.b16 %v680
        %v1410 = vunpack.c.l.b16 %v681
        %v1411 = vunpack.c.h.b16 %v681
        %v1412 = vunpack.c.l.b16 %v682
        %v1413 = vunpack.c.h.b16 %v682
        %v1414 = vunpack.c.l.b16 %v683
        %v1415 = vunpack.c.h.b16 %v683
        %v1416 = vunpack.c.l.b16 %v684
        %v1417 = vunpack.c.h.b16 %v684
        %v1418 = vunpack.c.l.b16 %v685
        %v1419 = vunpack.c.h.b16 %v685
        %v1420 = vunpack.c.l.b16 %v686
        %v1421 = vunpack.c.h.b16 %v686
        %v1422 = vpack.c.b16 %v1392, %v1390
        %v1423 = vpack.c.b16 %v1393, %v1391
        %v1424 = vpack.c.b16 %v1396, %v1394
        %v1425 = vpack.c.b16 %v1397, %v1395
        %v1426 = vpack.c.b16 %v1400, %v1398
        %v1427 = vpack.c.b16 %v1401, %v1399
        %v1428 = vpack.c.b16 %v1404, %v1402
        %v1429 = vpack.c.b16 %v1405, %v1403
        %v1430 = vpack.c.b16 %v1408, %v1406
        %v1431 = vpack.c.b16 %v1409, %v1407
        %v1432 = vpack.c.b16 %v1412, %v1410
        %v1433 = vpack.c.b16 %v1413, %v1411
        %v1434 = vpack.c.b16 %v1416, %v1414
        %v1435 = vpack.c.b16 %v1417, %v1415
        %v1436 = vpack.c.b16 %v1420, %v1418
        %v1437 = vpack.c.b16 %v1421, %v1419
        %1454 = vmatpush.bf16.msra.mxu0 %v1436
        %1455 = vmatpush.bf16.msra.mxu0 %v1434
        %1456 = vmatpush.bf16.msra.mxu0 %v1432
        %1457 = vmatpush.bf16.msra.mxu0 %v1430
        %1458 = vmatpush.bf16.msra.mxu0 %v1428
        %1459 = vmatpush.bf16.msra.mxu0 %v1426
        %1460 = vmatpush.bf16.msra.mxu0 %v1424
        %1461 = vmatpush.bf16.msra.mxu0 %v1422
        %1462 = vmatmul.bf16.gmra.mxu0 %v1368
        %v1463 = vpop.f32.mrf.mxu0
        %v1464 = vadd.f32 %v1370, %v1463
        %v1465 = vpop.f32.mrf.mxu0
        %1466 = vdwg.mxu0
        %1467 = vmatpush.bf16.msra.mxu0 %v1437
        %1468 = vmatpush.bf16.msra.mxu0 %v1435
        %1469 = vmatpush.bf16.msra.mxu0 %v1433
        %1470 = vmatpush.bf16.msra.mxu0 %v1431
        %1471 = vmatpush.bf16.msra.mxu0 %v1429
        %1472 = vmatpush.bf16.msra.mxu0 %v1427
        %1473 = vmatpush.bf16.msra.mxu0 %v1425
        %1474 = vmatpush.bf16.msra.mxu0 %v1423
        %1475 = vmatmul.bf16.gmra.mxu0 %v1368
        %v1476 = vpop.f32.mrf.mxu0
        %v1477 = vadd.f32 %v1371, %v1476
        %v1478 = vpop.f32.mrf.mxu0
        %1479 = vdwg.mxu0
        %v1480 = vmul.f32 %v1464, 0.5
        %v1481 = vmul.f32 %v1477, 0.5
        %v1482 = vmul.f32 %v1464, 0.70710677
        %v1483 = vmul.f32 %v1477, 0.70710677
        %v1484 = vand.u32 2147483647, %v1482
        %v1485 = vand.u32 2147483647, %v1483
        %v1486 = vmul.f32 %v1484, 0.3275911
        %v1487 = vmul.f32 %v1485, 0.3275911
        %v1488 = vadd.f32 %v1486, 1.0
        %v1489 = vadd.f32 %v1487, 1.0
        %v1490 = vrcp.pop %v1488
        %v1491 = vmul.f32 %v1488, %v1490
        %v1492 = vsub.f32 1.0, %v1491
        %v1493 = vmul.f32 %v1490, %v1492
        %v1494 = vadd.f32 %v1490, %v1493
        %vm1495 = vweird.f32 %v1488
        %vm1496 = vweird.f32 %v1490
        %vm1497 = vmor %vm1495, %vm1496
        %v1498 = vsel %vm1497, %v1490, %v1494
        %v1499 = vand.u32 2147483647, %v1488
        %vm1500 = vcmp.eq.f32.partialorder %v1499, 8.507059e+37
        %v1501 = vand.u32 %v1488, 2147483648
        %v1502 = vor.u32 1.1754944e-38, %v1501
        %v1503 = vsel %vm1500, %v1502, %v1498
        %v1504 = vmul.f32 1.0, %v1503
        %v1505 = vrcp.pop %v1489
        %v1506 = vmul.f32 %v1489, %v1505
        %v1507 = vsub.f32 1.0, %v1506
        %v1508 = vmul.f32 %v1505, %v1507
        %v1509 = vadd.f32 %v1505, %v1508
        %vm1510 = vweird.f32 %v1489
        %vm1511 = vweird.f32 %v1505
        %vm1512 = vmor %vm1510, %vm1511
        %v1513 = vsel %vm1512, %v1505, %v1509
        %v1514 = vand.u32 2147483647, %v1489
        %vm1515 = vcmp.eq.f32.partialorder %v1514, 8.507059e+37
        %v1516 = vand.u32 %v1489, 2147483648
        %v1517 = vor.u32 1.1754944e-38, %v1516
        %v1518 = vsel %vm1515, %v1517, %v1513
        %v1519 = vmul.f32 1.0, %v1518
        %v1520 = vmul.f32 %v1504, 1.0614054
        %v1521 = vmul.f32 %v1519, 1.0614054
        %v1522 = vadd.f32 %v1520, -1.4531521
        %v1523 = vadd.f32 %v1521, -1.4531521
        %v1524 = vmul.f32 %v1522, %v1504
        %v1525 = vmul.f32 %v1523, %v1519
        %v1526 = vadd.f32 %v1524, 1.4214138
        %v1527 = vadd.f32 %v1525, 1.4214138
        %v1528 = vmul.f32 %v1526, %v1504
        %v1529 = vmul.f32 %v1527, %v1519
        %v1530 = vadd.f32 %v1528, -0.28449672
        %v1531 = vadd.f32 %v1529, -0.28449672
        %v1532 = vmul.f32 %v1530, %v1504
        %v1533 = vmul.f32 %v1531, %v1519
        %v1534 = vadd.f32 %v1532, 0.2548296
        %v1535 = vadd.f32 %v1533, 0.2548296
        %v1536 = vmul.f32 %v1534, %v1504
        %v1537 = vmul.f32 %v1535, %v1519
        %v1538 = vsub.f32 0.0, %v1484
        %v1539 = vsub.f32 0.0, %v1485
        %v1540 = vmul.f32 %v1538, %v1484
        %v1541 = vmul.f32 %v1539, %v1485
        %v1542 = vmul.f32 %v1540, 1.442695
        %v1543 = vpow.pop %v1542
        %v1544 = vmul.f32 %v1541, 1.442695
        %v1545 = vpow.pop %v1544
        %v1546 = vmul.f32 %v1536, %v1543
        %v1547 = vmul.f32 %v1537, %v1545
        %v1548 = vsub.f32 1.0, %v1546
        %v1549 = vsub.f32 1.0, %v1547
        %vm1550 = vcmp.lt.f32.partialorder %v1482, 0.0
        %vm1551 = vcmp.lt.f32.partialorder %v1483, 0.0
        %v1552 = vsub.f32 0.0, %v1548
        %v1553 = vsub.f32 0.0, %v1549
        %v1554 = vsel %vm1550, %v1552, %v1548
        %v1555 = vsel %vm1551, %v1553, %v1549
        %v1556 = vadd.f32 %v1554, 1.0
        %v1557 = vadd.f32 %v1555, 1.0
        %v1558 = vmul.f32 %v1480, %v1556
        %v1559 = vmul.f32 %v1481, %v1557
        %v1560 = vpack.c.bf16 %v1558, %v1558
        %v1561 = vpack.c.bf16 %v1559, %v1559
        %v1563 = vperm.slane %v769, 0
        %v1597 = vunpack.c.l.b16 %v705
        %v1598 = vunpack.c.l.b16 %v706
        %v1599 = vunpack.c.l.b16 %v707
        %v1600 = vunpack.c.l.b16 %v708
        %v1601 = vunpack.c.l.b16 %v709
        %v1602 = vunpack.c.l.b16 %v710
        %v1603 = vunpack.c.l.b16 %v711
        %v1604 = vunpack.c.l.b16 %v712
        %v1605 = vunpack.c.l.b16 %v713
        %v1606 = vunpack.c.l.b16 %v714
        %v1607 = vunpack.c.l.b16 %v715
        %v1608 = vunpack.c.l.b16 %v716
        %v1609 = vunpack.c.l.b16 %v717
        %v1610 = vunpack.c.l.b16 %v718
        %v1611 = vunpack.c.l.b16 %v719
        %v1612 = vunpack.c.l.b16 %v720
        %v1613 = vunpack.c.l.b16 %v721
        %v1614 = vunpack.c.l.b16 %v722
        %v1615 = vunpack.c.l.b16 %v723
        %v1616 = vunpack.c.l.b16 %v724
        %v1617 = vunpack.c.l.b16 %v725
        %v1618 = vunpack.c.l.b16 %v726
        %v1619 = vunpack.c.l.b16 %v727
        %v1620 = vunpack.c.l.b16 %v728
        %v1621 = vunpack.c.l.b16 %v729
        %v1622 = vunpack.c.l.b16 %v730
        %v1623 = vunpack.c.l.b16 %v731
        %v1624 = vunpack.c.l.b16 %v732
        %v1625 = vunpack.c.l.b16 %v733
        %v1626 = vunpack.c.l.b16 %v734
        %v1627 = vunpack.c.l.b16 %v735
        %v1628 = vunpack.c.l.b16 %v736
        %v1629 = vpack.c.b16 %v1598, %v1597
        %v1630 = vpack.c.b16 %v1600, %v1599
        %v1631 = vpack.c.b16 %v1602, %v1601
        %v1632 = vpack.c.b16 %v1604, %v1603
        %v1633 = vpack.c.b16 %v1606, %v1605
        %v1634 = vpack.c.b16 %v1608, %v1607
        %v1635 = vpack.c.b16 %v1610, %v1609
        %v1636 = vpack.c.b16 %v1612, %v1611
        %v1637 = vpack.c.b16 %v1614, %v1613
        %v1638 = vpack.c.b16 %v1616, %v1615
        %v1639 = vpack.c.b16 %v1618, %v1617
        %v1640 = vpack.c.b16 %v1620, %v1619
        %v1641 = vpack.c.b16 %v1622, %v1621
        %v1642 = vpack.c.b16 %v1624, %v1623
        %v1643 = vpack.c.b16 %v1626, %v1625
        %v1644 = vpack.c.b16 %v1628, %v1627
        %1661 = vmatpush.bf16.msra.mxu0 %v1636
        %1662 = vmatpush.bf16.msra.mxu0 %v1635
        %1663 = vmatpush.bf16.msra.mxu0 %v1634
        %1664 = vmatpush.bf16.msra.mxu0 %v1633
        %1665 = vmatpush.bf16.msra.mxu0 %v1632
        %1666 = vmatpush.bf16.msra.mxu0 %v1631
        %1667 = vmatpush.bf16.msra.mxu0 %v1630
        %1668 = vmatpush.bf16.msra.mxu0 %v1629
        %1669 = vmatmul.bf16.gmra.mxu0 %v1560
        %v1670 = vpop.f32.mrf.mxu0
        %v1671 = vadd.f32 %v1563, %v1670
        %v1672 = vpop.f32.mrf.mxu0
        %1673 = vdwg.mxu0
        %1674 = vmatpush.bf16.msra.mxu0 %v1644
        %1675 = vmatpush.bf16.msra.mxu0 %v1643
        %1676 = vmatpush.bf16.msra.mxu0 %v1642
        %1677 = vmatpush.bf16.msra.mxu0 %v1641
        %1678 = vmatpush.bf16.msra.mxu0 %v1640
        %1679 = vmatpush.bf16.msra.mxu0 %v1639
        %1680 = vmatpush.bf16.msra.mxu0 %v1638
        %1681 = vmatpush.bf16.msra.mxu0 %v1637
        %1682 = vmatmul.bf16.gmra.mxu0 %v1561
        %v1683 = vpop.f32.mrf.mxu0
        %v1684 = vadd.f32 %v1671, %v1683
        %v1685 = vpop.f32.mrf.mxu0
        %1686 = vdwg.mxu0
        %v1687 = vadd.f32 %v1339, %v1684
        %1688 = vadd.xlane.f32.xlu0 %v1687
        %v1689 = vpop.xlane.xlu0 %1688
        %v1690 = vmul.f32 %v1689, %v779
        %v1691 = vsub.f32 %v1687, %v1690
        %v1692 = vmul.f32 %v1691, %v1691
        %1693 = vadd.xlane.f32.xlu0 %v1692
        %v1694 = vpop.xlane.xlu0 %1693
        %v1695 = vmul.f32 %v1694, %v779
        %v1696 = vadd.f32 %v1695, 1e-05
        %v1697 = vrsqrt.pop %v1696
        %v1698 = vmul.f32 %v1697, %v1696
        %v1699 = vmul.f32 %v1698, %v1697
        %v1700 = vmul.f32 0.5, %v1699
        %v1701 = vsub.f32 1.5, %v1700
        %v1702 = vmul.f32 %v1697, %v1701
        %vm1703 = vweird.f32 %v1696
        %vm1704 = vweird.f32 %v1697
        %vm1705 = vmor %vm1703, %vm1704
        %v1706 = vsel %vm1705, %v1697, %v1702
        %v1707 = vmul.f32 %v1691, %v1706
        %v1709 = vperm.slane %v664, 0
        %v1711 = vmul.f32 %v1707, %v1709
        %v1713 = vperm.slane %v666, 0
        %v1715 = vadd.f32 %v1711, %v1713
        %v1716 = vpack.c.bf16 %v1715, %v1715
        %v1749 = vunpack.c.l.b16 %v597
        %v1750 = vunpack.c.h.b16 %v597
        %v1751 = vunpack.c.l.b16 %v598
        %v1752 = vunpack.c.l.b16 %v599
        %v1753 = vunpack.c.h.b16 %v599
        %v1754 = vunpack.c.l.b16 %v600
        %v1755 = vunpack.c.l.b16 %v601
        %v1756 = vunpack.c.h.b16 %v601
        %v1757 = vunpack.c.l.b16 %v602
        %v1758 = vunpack.c.l.b16 %v603
        %v1759 = vunpack.c.h.b16 %v603
        %v1760 = vunpack.c.l.b16 %v604
        %v1761 = vunpack.c.l.b16 %v605
        %v1762 = vunpack.c.h.b16 %v605
        %v1763 = vunpack.c.l.b16 %v606
        %v1764 = vunpack.c.l.b16 %v607
        %v1765 = vunpack.c.h.b16 %v607
        %v1766 = vunpack.c.l.b16 %v608
        %v1767 = vunpack.c.l.b16 %v609
        %v1768 = vunpack.c.h.b16 %v609
        %v1769 = vunpack.c.l.b16 %v610
        %v1770 = vunpack.c.l.b16 %v611
        %v1771 = vunpack.c.h.b16 %v611
        %v1772 = vunpack.c.l.b16 %v612
        %v1773 = vunpack.c.l.b16 %v613
        %v1774 = vunpack.c.h.b16 %v613
        %v1775 = vunpack.c.l.b16 %v614
        %v1776 = vunpack.c.l.b16 %v615
        %v1777 = vunpack.c.h.b16 %v615
        %v1778 = vunpack.c.l.b16 %v616
        %v1779 = vunpack.c.l.b16 %v617
        %v1780 = vunpack.c.h.b16 %v617
        %v1781 = vunpack.c.l.b16 %v618
        %v1782 = vunpack.c.l.b16 %v619
        %v1783 = vunpack.c.h.b16 %v619
        %v1784 = vunpack.c.l.b16 %v620
        %v1785 = vunpack.c.l.b16 %v621
        %v1786 = vunpack.c.h.b16 %v621
        %v1787 = vunpack.c.l.b16 %v622
        %v1788 = vunpack.c.l.b16 %v623
        %v1789 = vunpack.c.h.b16 %v623
        %v1790 = vunpack.c.l.b16 %v624
        %v1791 = vunpack.c.l.b16 %v625
        %v1792 = vunpack.c.h.b16 %v625
        %v1793 = vunpack.c.l.b16 %v626
        %v1794 = vunpack.c.l.b16 %v627
        %v1795 = vunpack.c.h.b16 %v627
        %v1796 = vunpack.c.l.b16 %v628
        %v1797 = vpack.c.b16 %v1752, %v1749
        %v1798 = vpack.c.b16 %v1753, %v1750
        %v1799 = vpack.c.b16 %v1754, %v1751
        %v1800 = vpack.c.b16 %v1758, %v1755
        %v1801 = vpack.c.b16 %v1759, %v1756
        %v1802 = vpack.c.b16 %v1760, %v1757
        %v1803 = vpack.c.b16 %v1764, %v1761
        %v1804 = vpack.c.b16 %v1765, %v1762
        %v1805 = vpack.c.b16 %v1766, %v1763
        %v1806 = vpack.c.b16 %v1770, %v1767
        %v1807 = vpack.c.b16 %v1771, %v1768
        %v1808 = vpack.c.b16 %v1772, %v1769
        %v1809 = vpack.c.b16 %v1776, %v1773
        %v1810 = vpack.c.b16 %v1777, %v1774
        %v1811 = vpack.c.b16 %v1778, %v1775
        %v1812 = vpack.c.b16 %v1782, %v1779
        %v1813 = vpack.c.b16 %v1783, %v1780
        %v1814 = vpack.c.b16 %v1784, %v1781
        %v1815 = vpack.c.b16 %v1788, %v1785
        %v1816 = vpack.c.b16 %v1789, %v1786
        %v1817 = vpack.c.b16 %v1790, %v1787
        %v1818 = vpack.c.b16 %v1794, %v1791
        %v1819 = vpack.c.b16 %v1795, %v1792
        %v1820 = vpack.c.b16 %v1796, %v1793
        %1845 = vmatpush.bf16.msra.mxu0 %v1818
        %1846 = vmatpush.bf16.msra.mxu0 %v1815
        %1847 = vmatpush.bf16.msra.mxu0 %v1812
        %1848 = vmatpush.bf16.msra.mxu0 %v1809
        %1849 = vmatpush.bf16.msra.mxu0 %v1806
        %1850 = vmatpush.bf16.msra.mxu0 %v1803
        %1851 = vmatpush.bf16.msra.mxu0 %v1800
        %1852 = vmatpush.bf16.msra.mxu0 %v1797
        %1853 = vmatmul.bf16.gmra.mxu0 %v1716
        %v1854 = vpop.f32.mrf.mxu0
        %v1855 = vadd.f32 0.0, %v1854
        %v1856 = vpop.f32.mrf.mxu0
        %1857 = vdwg.mxu0
        %1858 = vmatpush.bf16.msra.mxu0 %v1819
        %1859 = vmatpush.bf16.msra.mxu0 %v1816
        %1860 = vmatpush.bf16.msra.mxu0 %v1813
        %1861 = vmatpush.bf16.msra.mxu0 %v1810
        %1862 = vmatpush.bf16.msra.mxu0 %v1807
        %1863 = vmatpush.bf16.msra.mxu0 %v1804
        %1864 = vmatpush.bf16.msra.mxu0 %v1801
        %1865 = vmatpush.bf16.msra.mxu0 %v1798
        %1866 = vmatmul.bf16.gmra.mxu0 %v1716
        %v1867 = vpop.f32.mrf.mxu0
        %v1868 = vadd.f32 0.0, %v1867
        %v1869 = vpop.f32.mrf.mxu0
        %1870 = vdwg.mxu0
        %1871 = vmatpush.bf16.msra.mxu0 %v1820
        %1872 = vmatpush.bf16.msra.mxu0 %v1817
        %1873 = vmatpush.bf16.msra.mxu0 %v1814
        %1874 = vmatpush.bf16.msra.mxu0 %v1811
        %1875 = vmatpush.bf16.msra.mxu0 %v1808
        %1876 = vmatpush.bf16.msra.mxu0 %v1805
        %1877 = vmatpush.bf16.msra.mxu0 %v1802
        %1878 = vmatpush.bf16.msra.mxu0 %v1799
        %1879 = vmatmul.bf16.gmra.mxu0 %v1716
        %v1880 = vpop.f32.mrf.mxu0
        %v1881 = vadd.f32 0.0, %v1880
        %v1882 = vpop.f32.mrf.mxu0
        %1883 = vdwg.mxu0
        %v1884 = vpack.c.bf16 %v1855, %v1855
        %v1885 = vpack.c.bf16 %v1868, %v1868
        %v1886 = vpack.c.bf16 %v1881, %v1881
        %v1888 = vsel %vm977, %v1884, 0
        %v1891 = vsel %vm977, %v1885, 0
        %1893 = vmatpush.bf16.xpose.msra.mxu0 0
        %1894 = vmatpush.bf16.xpose.msra.mxu0 0
        %1895 = vmatpush.bf16.xpose.msra.mxu0 0
        %1896 = vmatpush.bf16.xpose.msra.mxu0 0
        %1897 = vmatpush.bf16.xpose.msra.mxu0 0
        %1898 = vmatpush.bf16.xpose.msra.mxu0 0
        %1899 = vmatpush.bf16.xpose.msra.mxu0 0
        %1900 = vmatpush.bf16.xpose.msra.mxu0 %v1891
        %1901 = vmatmul.bf16.gmra.mxu0 %v1888
        %v1902 = vpop.f32.mrf.mxu0
        %v1903 = vadd.f32 0.0, %v1902
        %v1904 = vpop.f32.mrf.mxu0
        %1905 = vdwg.mxu0
        %v1906 = vmul.f32 %v1903, 0.17677669
        %v1907 = vsel %vm998, %v1906, -inf
        %1908 = vmax.xlane.f32.xlu0 %v1907
        %v1909 = vpop.xlane.xlu0 %1908
        %v1910 = vsub.f32 %v1906, %v1909
        %v1911 = vmul.f32 %v1910, 1.442695
        %v1912 = vpow.pop %v1911
        %v1913 = vsel %vm998, %v1912, 0.0
        %1914 = vadd.xlane.f32.xlu0 %v1913
        %v1915 = vpop.xlane.xlu0 %1914
        %v1916 = vrcp.pop %v1915
        %v1917 = vmul.f32 %v1915, %v1916
        %v1918 = vsub.f32 1.0, %v1917
        %v1919 = vmul.f32 %v1916, %v1918
        %v1920 = vadd.f32 %v1916, %v1919
        %vm1921 = vweird.f32 %v1915
        %vm1922 = vweird.f32 %v1916
        %vm1923 = vmor %vm1921, %vm1922
        %v1924 = vsel %vm1923, %v1916, %v1920
        %v1925 = vand.u32 2147483647, %v1915
        %vm1926 = vcmp.eq.f32.partialorder %v1925, 8.507059e+37
        %v1927 = vand.u32 %v1915, 2147483648
        %v1928 = vor.u32 1.1754944e-38, %v1927
        %v1929 = vsel %vm1926, %v1928, %v1924
        %v1930 = vmul.f32 %v1912, %v1929
        %v1931 = vpack.c.bf16 %v1930, %v1930
        %v1933 = vsel %vm998, %v1931, 0
        %v1936 = vsel %vm1027, %v1886, 0
        %1938 = vmatpush.bf16.msra.mxu0 0
        %1939 = vmatpush.bf16.msra.mxu0 0
        %1940 = vmatpush.bf16.msra.mxu0 0
        %1941 = vmatpush.bf16.msra.mxu0 0
        %1942 = vmatpush.bf16.msra.mxu0 0
        %1943 = vmatpush.bf16.msra.mxu0 0
        %1944 = vmatpush.bf16.msra.mxu0 0
        %1945 = vmatpush.bf16.msra.mxu0 %v1936
        %1946 = vmatmul.bf16.gmra.mxu0 %v1933
        %v1947 = vpop.f32.mrf.mxu0
        %v1948 = vadd.f32 0.0, %v1947
        %v1949 = vpop.f32.mrf.mxu0
        %1950 = vdwg.mxu0
        %1952 = vrot.lane.b32.xlu0 %v1884, 96
        %v1953 = vpop.permute.xlu0 %1952
        %1955 = vrot.lane.b32.xlu0 %v1885, 96
        %v1956 = vpop.permute.xlu0 %1955
        %v1958 = vsel %vm977, %v1953, 0
        %v1961 = vsel %vm977, %v1956, 0
        %1963 = vmatpush.bf16.xpose.msra.mxu0 0
        %1964 = vmatpush.bf16.xpose.msra.mxu0 0
        %1965 = vmatpush.bf16.xpose.msra.mxu0 0
        %1966 = vmatpush.bf16.xpose.msra.mxu0 0
        %1967 = vmatpush.bf16.xpose.msra.mxu0 0
        %1968 = vmatpush.bf16.xpose.msra.mxu0 0
        %1969 = vmatpush.bf16.xpose.msra.mxu0 0
        %1970 = vmatpush.bf16.xpose.msra.mxu0 %v1961
        %1971 = vmatmul.bf16.gmra.mxu0 %v1958
        %v1972 = vpop.f32.mrf.mxu0
        %v1973 = vadd.f32 0.0, %v1972
        %v1974 = vpop.f32.mrf.mxu0
        %1975 = vdwg.mxu0
        %v1976 = vmul.f32 %v1973, 0.17677669
        %v1977 = vsel %vm998, %v1976, -inf
        %1978 = vmax.xlane.f32.xlu0 %v1977
        %v1979 = vpop.xlane.xlu0 %1978
        %v1980 = vsub.f32 %v1976, %v1979
        %v1981 = vmul.f32 %v1980, 1.442695
        %v1982 = vpow.pop %v1981
        %v1983 = vsel %vm998, %v1982, 0.0
        %1984 = vadd.xlane.f32.xlu0 %v1983
        %v1985 = vpop.xlane.xlu0 %1984
        %v1986 = vrcp.pop %v1985
        %v1987 = vmul.f32 %v1985, %v1986
        %v1988 = vsub.f32 1.0, %v1987
        %v1989 = vmul.f32 %v1986, %v1988
        %v1990 = vadd.f32 %v1986, %v1989
        %vm1991 = vweird.f32 %v1985
        %vm1992 = vweird.f32 %v1986
        %vm1993 = vmor %vm1991, %vm1992
        %v1994 = vsel %vm1993, %v1986, %v1990
        %v1995 = vand.u32 2147483647, %v1985
        %vm1996 = vcmp.eq.f32.partialorder %v1995, 8.507059e+37
        %v1997 = vand.u32 %v1985, 2147483648
        %v1998 = vor.u32 1.1754944e-38, %v1997
        %v1999 = vsel %vm1996, %v1998, %v1994
        %v2000 = vmul.f32 %v1982, %v1999
        %v2001 = vpack.c.bf16 %v2000, %v2000
        %2003 = vrot.lane.b32.xlu0 %v1886, 96
        %v2004 = vpop.permute.xlu0 %2003
        %v2006 = vsel %vm998, %v2001, 0
        %v2009 = vsel %vm1027, %v2004, 0
        %2011 = vmatpush.bf16.msra.mxu0 0
        %2012 = vmatpush.bf16.msra.mxu0 0
        %2013 = vmatpush.bf16.msra.mxu0 0
        %2014 = vmatpush.bf16.msra.mxu0 0
        %2015 = vmatpush.bf16.msra.mxu0 0
        %2016 = vmatpush.bf16.msra.mxu0 0
        %2017 = vmatpush.bf16.msra.mxu0 0
        %2018 = vmatpush.bf16.msra.mxu0 %v2009
        %2019 = vmatmul.bf16.gmra.mxu0 %v2006
        %v2020 = vpop.f32.mrf.mxu0
        %v2021 = vadd.f32 0.0, %v2020
        %v2022 = vpop.f32.mrf.mxu0
        %2023 = vdwg.mxu0
        %2024 = vrot.lane.b32.xlu0 %v1884, 64
        %v2025 = vpop.permute.xlu0 %2024
        %2026 = vrot.lane.b32.xlu0 %v1885, 64
        %v2027 = vpop.permute.xlu0 %2026
        %v2029 = vsel %vm977, %v2025, 0
        %v2032 = vsel %vm977, %v2027, 0
        %2034 = vmatpush.bf16.xpose.msra.mxu0 0
        %2035 = vmatpush.bf16.xpose.msra.mxu0 0
        %2036 = vmatpush.bf16.xpose.msra.mxu0 0
        %2037 = vmatpush.bf16.xpose.msra.mxu0 0
        %2038 = vmatpush.bf16.xpose.msra.mxu0 0
        %2039 = vmatpush.bf16.xpose.msra.mxu0 0
        %2040 = vmatpush.bf16.xpose.msra.mxu0 0
        %2041 = vmatpush.bf16.xpose.msra.mxu0 %v2032
        %2042 = vmatmul.bf16.gmra.mxu0 %v2029
        %v2043 = vpop.f32.mrf.mxu0
        %v2044 = vadd.f32 0.0, %v2043
        %v2045 = vpop.f32.mrf.mxu0
        %2046 = vdwg.mxu0
        %v2047 = vmul.f32 %v2044, 0.17677669
        %v2048 = vsel %vm998, %v2047, -inf
        %2049 = vmax.xlane.f32.xlu0 %v2048
        %v2050 = vpop.xlane.xlu0 %2049
        %v2051 = vsub.f32 %v2047, %v2050
        %v2052 = vmul.f32 %v2051, 1.442695
        %v2053 = vpow.pop %v2052
        %v2054 = vsel %vm998, %v2053, 0.0
        %2055 = vadd.xlane.f32.xlu0 %v2054
        %v2056 = vpop.xlane.xlu0 %2055
        %v2057 = vrcp.pop %v2056
        %v2058 = vmul.f32 %v2056, %v2057
        %v2059 = vsub.f32 1.0, %v2058
        %v2060 = vmul.f32 %v2057, %v2059
        %v2061 = vadd.f32 %v2057, %v2060
        %vm2062 = vweird.f32 %v2056
        %vm2063 = vweird.f32 %v2057
        %vm2064 = vmor %vm2062, %vm2063
        %v2065 = vsel %vm2064, %v2057, %v2061
        %v2066 = vand.u32 2147483647, %v2056
        %vm2067 = vcmp.eq.f32.partialorder %v2066, 8.507059e+37
        %v2068 = vand.u32 %v2056, 2147483648
        %v2069 = vor.u32 1.1754944e-38, %v2068
        %v2070 = vsel %vm2067, %v2069, %v2065
        %v2071 = vmul.f32 %v2053, %v2070
        %v2072 = vpack.c.bf16 %v2071, %v2071
        %2073 = vrot.lane.b32.xlu0 %v1886, 64
        %v2074 = vpop.permute.xlu0 %2073
        %v2076 = vsel %vm998, %v2072, 0
        %v2079 = vsel %vm1027, %v2074, 0
        %2081 = vmatpush.bf16.msra.mxu0 0
        %2082 = vmatpush.bf16.msra.mxu0 0
        %2083 = vmatpush.bf16.msra.mxu0 0
        %2084 = vmatpush.bf16.msra.mxu0 0
        %2085 = vmatpush.bf16.msra.mxu0 0
        %2086 = vmatpush.bf16.msra.mxu0 0
        %2087 = vmatpush.bf16.msra.mxu0 0
        %2088 = vmatpush.bf16.msra.mxu0 %v2079
        %2089 = vmatmul.bf16.gmra.mxu0 %v2076
        %v2090 = vpop.f32.mrf.mxu0
        %v2091 = vadd.f32 0.0, %v2090
        %v2092 = vpop.f32.mrf.mxu0
        %2093 = vdwg.mxu0
        %2094 = vrot.lane.b32.xlu0 %v1884, 32
        %v2095 = vpop.permute.xlu0 %2094
        %2096 = vrot.lane.b32.xlu0 %v1885, 32
        %v2097 = vpop.permute.xlu0 %2096
        %v2099 = vsel %vm977, %v2095, 0
        %v2102 = vsel %vm977, %v2097, 0
        %2104 = vmatpush.bf16.xpose.msra.mxu0 0
        %2105 = vmatpush.bf16.xpose.msra.mxu0 0
        %2106 = vmatpush.bf16.xpose.msra.mxu0 0
        %2107 = vmatpush.bf16.xpose.msra.mxu0 0
        %2108 = vmatpush.bf16.xpose.msra.mxu0 0
        %2109 = vmatpush.bf16.xpose.msra.mxu0 0
        %2110 = vmatpush.bf16.xpose.msra.mxu0 0
        %2111 = vmatpush.bf16.xpose.msra.mxu0 %v2102
        %2112 = vmatmul.bf16.gmra.mxu0 %v2099
        %v2113 = vpop.f32.mrf.mxu0
        %v2114 = vadd.f32 0.0, %v2113
        %v2115 = vpop.f32.mrf.mxu0
        %2116 = vdwg.mxu0
        %v2117 = vmul.f32 %v2114, 0.17677669
        %v2118 = vsel %vm998, %v2117, -inf
        %2119 = vmax.xlane.f32.xlu0 %v2118
        %v2120 = vpop.xlane.xlu0 %2119
        %v2121 = vsub.f32 %v2117, %v2120
        %v2122 = vmul.f32 %v2121, 1.442695
        %v2123 = vpow.pop %v2122
        %v2124 = vsel %vm998, %v2123, 0.0
        %2125 = vadd.xlane.f32.xlu0 %v2124
        %v2126 = vpop.xlane.xlu0 %2125
        %v2127 = vrcp.pop %v2126
        %v2128 = vmul.f32 %v2126, %v2127
        %v2129 = vsub.f32 1.0, %v2128
        %v2130 = vmul.f32 %v2127, %v2129
        %v2131 = vadd.f32 %v2127, %v2130
        %vm2132 = vweird.f32 %v2126
        %vm2133 = vweird.f32 %v2127
        %vm2134 = vmor %vm2132, %vm2133
        %v2135 = vsel %vm2134, %v2127, %v2131
        %v2136 = vand.u32 2147483647, %v2126
        %vm2137 = vcmp.eq.f32.partialorder %v2136, 8.507059e+37
        %v2138 = vand.u32 %v2126, 2147483648
        %v2139 = vor.u32 1.1754944e-38, %v2138
        %v2140 = vsel %vm2137, %v2139, %v2135
        %v2141 = vmul.f32 %v2123, %v2140
        %v2142 = vpack.c.bf16 %v2141, %v2141
        %2143 = vrot.lane.b32.xlu0 %v1886, 32
        %v2144 = vpop.permute.xlu0 %2143
        %v2146 = vsel %vm998, %v2142, 0
        %v2149 = vsel %vm1027, %v2144, 0
        %2151 = vmatpush.bf16.msra.mxu0 0
        %2152 = vmatpush.bf16.msra.mxu0 0
        %2153 = vmatpush.bf16.msra.mxu0 0
        %2154 = vmatpush.bf16.msra.mxu0 0
        %2155 = vmatpush.bf16.msra.mxu0 0
        %2156 = vmatpush.bf16.msra.mxu0 0
        %2157 = vmatpush.bf16.msra.mxu0 0
        %2158 = vmatpush.bf16.msra.mxu0 %v2149
        %2159 = vmatmul.bf16.gmra.mxu0 %v2146
        %v2160 = vpop.f32.mrf.mxu0
        %v2161 = vadd.f32 0.0, %v2160
        %v2162 = vpop.f32.mrf.mxu0
        %2163 = vdwg.mxu0
        %2165 = vrot.lane.b32.xlu0 %v2021, 32
        %v2166 = vpop.permute.xlu0 %2165
        %2169 = vrot.lane.b32.xlu0 %v2091, 64
        %v2170 = vpop.permute.xlu0 %2169
        %2173 = vrot.lane.b32.xlu0 %v2161, 96
        %v2174 = vpop.permute.xlu0 %2173
        %v2176 = vsel %vm977, %v1948, %v2166
        %v2177 = vsel %vm1270, %v2176, %v2170
        %v2178 = vsel %vm1272, %v2177, %v2174
        %v2179 = vpack.c.bf16 %v2178, %v2178
        %v2181 = vperm.slane %v662, 0
        %v2199 = vunpack.c.l.b16 %v645
        %v2200 = vunpack.c.l.b16 %v646
        %v2201 = vunpack.c.l.b16 %v647
        %v2202 = vunpack.c.l.b16 %v648
        %v2203 = vunpack.c.l.b16 %v649
        %v2204 = vunpack.c.l.b16 %v650
        %v2205 = vunpack.c.l.b16 %v651
        %v2206 = vunpack.c.l.b16 %v652
        %v2207 = vunpack.c.l.b16 %v653
        %v2208 = vunpack.c.l.b16 %v654
        %v2209 = vunpack.c.l.b16 %v655
        %v2210 = vunpack.c.l.b16 %v656
        %v2211 = vunpack.c.l.b16 %v657
        %v2212 = vunpack.c.l.b16 %v658
        %v2213 = vunpack.c.l.b16 %v659
        %v2214 = vunpack.c.l.b16 %v660
        %v2215 = vpack.c.b16 %v2200, %v2199
        %v2216 = vpack.c.b16 %v2202, %v2201
        %v2217 = vpack.c.b16 %v2204, %v2203
        %v2218 = vpack.c.b16 %v2206, %v2205
        %v2219 = vpack.c.b16 %v2208, %v2207
        %v2220 = vpack.c.b16 %v2210, %v2209
        %v2221 = vpack.c.b16 %v2212, %v2211
        %v2222 = vpack.c.b16 %v2214, %v2213
        %2231 = vmatpush.bf16.msra.mxu0 %v2222
        %2232 = vmatpush.bf16.msra.mxu0 %v2221
        %2233 = vmatpush.bf16.msra.mxu0 %v2220
        %2234 = vmatpush.bf16.msra.mxu0 %v2219
        %2235 = vmatpush.bf16.msra.mxu0 %v2218
        %2236 = vmatpush.bf16.msra.mxu0 %v2217
        %2237 = vmatpush.bf16.msra.mxu0 %v2216
        %2238 = vmatpush.bf16.msra.mxu0 %v2215
        %2239 = vmatmul.bf16.gmra.mxu0 %v2179
        %v2240 = vpop.f32.mrf.mxu0
        %v2241 = vadd.f32 %v2181, %v2240
        %v2242 = vpop.f32.mrf.mxu0
        %2243 = vdwg.mxu0
        %v2244 = vadd.f32 %v1687, %v2241
        %2245 = vadd.xlane.f32.xlu0 %v2244
        %v2246 = vpop.xlane.xlu0 %2245
        %v2247 = vmul.f32 %v2246, %v779
        %v2248 = vsub.f32 %v2244, %v2247
        %v2249 = vmul.f32 %v2248, %v2248
        %2250 = vadd.xlane.f32.xlu0 %v2249
        %v2251 = vpop.xlane.xlu0 %2250
        %v2252 = vmul.f32 %v2251, %v779
        %v2253 = vadd.f32 %v2252, 1e-05
        %v2254 = vrsqrt.pop %v2253
        %v2255 = vmul.f32 %v2254, %v2253
        %v2256 = vmul.f32 %v2255, %v2254
        %v2257 = vmul.f32 0.5, %v2256
        %v2258 = vsub.f32 1.5, %v2257
        %v2259 = vmul.f32 %v2254, %v2258
        %vm2260 = vweird.f32 %v2253
        %vm2261 = vweird.f32 %v2254
        %vm2262 = vmor %vm2260, %vm2261
        %v2263 = vsel %vm2262, %v2254, %v2259
        %v2264 = vmul.f32 %v2248, %v2263
        %v2266 = vperm.slane %v668, 0
        %v2268 = vmul.f32 %v2264, %v2266
        %v2270 = vperm.slane %v670, 0
        %v2272 = vadd.f32 %v2268, %v2270
        %v2273 = vpack.c.bf16 %v2272, %v2272
        %v2275 = vperm.slane %v704, 0
        %v2276 = vperm.slane %v704, 1
        %v2295 = vunpack.c.l.b16 %v687
        %v2296 = vunpack.c.h.b16 %v687
        %v2297 = vunpack.c.l.b16 %v688
        %v2298 = vunpack.c.h.b16 %v688
        %v2299 = vunpack.c.l.b16 %v689
        %v2300 = vunpack.c.h.b16 %v689
        %v2301 = vunpack.c.l.b16 %v690
        %v2302 = vunpack.c.h.b16 %v690
        %v2303 = vunpack.c.l.b16 %v691
        %v2304 = vunpack.c.h.b16 %v691
        %v2305 = vunpack.c.l.b16 %v692
        %v2306 = vunpack.c.h.b16 %v692
        %v2307 = vunpack.c.l.b16 %v693
        %v2308 = vunpack.c.h.b16 %v693
        %v2309 = vunpack.c.l.b16 %v694
        %v2310 = vunpack.c.h.b16 %v694
        %v2311 = vunpack.c.l.b16 %v695
        %v2312 = vunpack.c.h.b16 %v695
        %v2313 = vunpack.c.l.b16 %v696
        %v2314 = vunpack.c.h.b16 %v696
        %v2315 = vunpack.c.l.b16 %v697
        %v2316 = vunpack.c.h.b16 %v697
        %v2317 = vunpack.c.l.b16 %v698
        %v2318 = vunpack.c.h.b16 %v698
        %v2319 = vunpack.c.l.b16 %v699
        %v2320 = vunpack.c.h.b16 %v699
        %v2321 = vunpack.c.l.b16 %v700
        %v2322 = vunpack.c.h.b16 %v700
        %v2323 = vunpack.c.l.b16 %v701
        %v2324 = vunpack.c.h.b16 %v701
        %v2325 = vunpack.c.l.b16 %v702
        %v2326 = vunpack.c.h.b16 %v702
        %v2327 = vpack.c.b16 %v2297, %v2295
        %v2328 = vpack.c.b16 %v2298, %v2296
        %v2329 = vpack.c.b16 %v2301, %v2299
        %v2330 = vpack.c.b16 %v2302, %v2300
        %v2331 = vpack.c.b16 %v2305, %v2303
        %v2332 = vpack.c.b16 %v2306, %v2304
        %v2333 = vpack.c.b16 %v2309, %v2307
        %v2334 = vpack.c.b16 %v2310, %v2308
        %v2335 = vpack.c.b16 %v2313, %v2311
        %v2336 = vpack.c.b16 %v2314, %v2312
        %v2337 = vpack.c.b16 %v2317, %v2315
        %v2338 = vpack.c.b16 %v2318, %v2316
        %v2339 = vpack.c.b16 %v2321, %v2319
        %v2340 = vpack.c.b16 %v2322, %v2320
        %v2341 = vpack.c.b16 %v2325, %v2323
        %v2342 = vpack.c.b16 %v2326, %v2324
        %2359 = vmatpush.bf16.msra.mxu0 %v2341
        %2360 = vmatpush.bf16.msra.mxu0 %v2339
        %2361 = vmatpush.bf16.msra.mxu0 %v2337
        %2362 = vmatpush.bf16.msra.mxu0 %v2335
        %2363 = vmatpush.bf16.msra.mxu0 %v2333
        %2364 = vmatpush.bf16.msra.mxu0 %v2331
        %2365 = vmatpush.bf16.msra.mxu0 %v2329
        %2366 = vmatpush.bf16.msra.mxu0 %v2327
        %2367 = vmatmul.bf16.gmra.mxu0 %v2273
        %v2368 = vpop.f32.mrf.mxu0
        %v2369 = vadd.f32 %v2275, %v2368
        %v2370 = vpop.f32.mrf.mxu0
        %2371 = vdwg.mxu0
        %2372 = vmatpush.bf16.msra.mxu0 %v2342
        %2373 = vmatpush.bf16.msra.mxu0 %v2340
        %2374 = vmatpush.bf16.msra.mxu0 %v2338
        %2375 = vmatpush.bf16.msra.mxu0 %v2336
        %2376 = vmatpush.bf16.msra.mxu0 %v2334
        %2377 = vmatpush.bf16.msra.mxu0 %v2332
        %2378 = vmatpush.bf16.msra.mxu0 %v2330
        %2379 = vmatpush.bf16.msra.mxu0 %v2328
        %2380 = vmatmul.bf16.gmra.mxu0 %v2273
        %v2381 = vpop.f32.mrf.mxu0
        %v2382 = vadd.f32 %v2276, %v2381
        %v2383 = vpop.f32.mrf.mxu0
        %2384 = vdwg.mxu0
        %v2385 = vmul.f32 %v2369, 0.5
        %v2386 = vmul.f32 %v2382, 0.5
        %v2387 = vmul.f32 %v2369, 0.70710677
        %v2388 = vmul.f32 %v2382, 0.70710677
        %v2389 = vand.u32 2147483647, %v2387
        %v2390 = vand.u32 2147483647, %v2388
        %v2391 = vmul.f32 %v2389, 0.3275911
        %v2392 = vmul.f32 %v2390, 0.3275911
        %v2393 = vadd.f32 %v2391, 1.0
        %v2394 = vadd.f32 %v2392, 1.0
        %v2395 = vrcp.pop %v2393
        %v2396 = vmul.f32 %v2393, %v2395
        %v2397 = vsub.f32 1.0, %v2396
        %v2398 = vmul.f32 %v2395, %v2397
        %v2399 = vadd.f32 %v2395, %v2398
        %vm2400 = vweird.f32 %v2393
        %vm2401 = vweird.f32 %v2395
        %vm2402 = vmor %vm2400, %vm2401
        %v2403 = vsel %vm2402, %v2395, %v2399
        %v2404 = vand.u32 2147483647, %v2393
        %vm2405 = vcmp.eq.f32.partialorder %v2404, 8.507059e+37
        %v2406 = vand.u32 %v2393, 2147483648
        %v2407 = vor.u32 1.1754944e-38, %v2406
        %v2408 = vsel %vm2405, %v2407, %v2403
        %v2409 = vmul.f32 1.0, %v2408
        %v2410 = vrcp.pop %v2394
        %v2411 = vmul.f32 %v2394, %v2410
        %v2412 = vsub.f32 1.0, %v2411
        %v2413 = vmul.f32 %v2410, %v2412
        %v2414 = vadd.f32 %v2410, %v2413
        %vm2415 = vweird.f32 %v2394
        %vm2416 = vweird.f32 %v2410
        %vm2417 = vmor %vm2415, %vm2416
        %v2418 = vsel %vm2417, %v2410, %v2414
        %v2419 = vand.u32 2147483647, %v2394
        %vm2420 = vcmp.eq.f32.partialorder %v2419, 8.507059e+37
        %v2421 = vand.u32 %v2394, 2147483648
        %v2422 = vor.u32 1.1754944e-38, %v2421
        %v2423 = vsel %vm2420, %v2422, %v2418
        %v2424 = vmul.f32 1.0, %v2423
        %v2425 = vmul.f32 %v2409, 1.0614054
        %v2426 = vmul.f32 %v2424, 1.0614054
        %v2427 = vadd.f32 %v2425, -1.4531521
        %v2428 = vadd.f32 %v2426, -1.4531521
        %v2429 = vmul.f32 %v2427, %v2409
        %v2430 = vmul.f32 %v2428, %v2424
        %v2431 = vadd.f32 %v2429, 1.4214138
        %v2432 = vadd.f32 %v2430, 1.4214138
        %v2433 = vmul.f32 %v2431, %v2409
        %v2434 = vmul.f32 %v2432, %v2424
        %v2435 = vadd.f32 %v2433, -0.28449672
        %v2436 = vadd.f32 %v2434, -0.28449672
        %v2437 = vmul.f32 %v2435, %v2409
        %v2438 = vmul.f32 %v2436, %v2424
        %v2439 = vadd.f32 %v2437, 0.2548296
        %v2440 = vadd.f32 %v2438, 0.2548296
        %v2441 = vmul.f32 %v2439, %v2409
        %v2442 = vmul.f32 %v2440, %v2424
        %v2443 = vsub.f32 0.0, %v2389
        %v2444 = vsub.f32 0.0, %v2390
        %v2445 = vmul.f32 %v2443, %v2389
        %v2446 = vmul.f32 %v2444, %v2390
        %v2447 = vmul.f32 %v2445, 1.442695
        %v2448 = vpow.pop %v2447
        %v2449 = vmul.f32 %v2446, 1.442695
        %v2450 = vpow.pop %v2449
        %v2451 = vmul.f32 %v2441, %v2448
        %v2452 = vmul.f32 %v2442, %v2450
        %v2453 = vsub.f32 1.0, %v2451
        %v2454 = vsub.f32 1.0, %v2452
        %vm2455 = vcmp.lt.f32.partialorder %v2387, 0.0
        %vm2456 = vcmp.lt.f32.partialorder %v2388, 0.0
        %v2457 = vsub.f32 0.0, %v2453
        %v2458 = vsub.f32 0.0, %v2454
        %v2459 = vsel %vm2455, %v2457, %v2453
        %v2460 = vsel %vm2456, %v2458, %v2454
        %v2461 = vadd.f32 %v2459, 1.0
        %v2462 = vadd.f32 %v2460, 1.0
        %v2463 = vmul.f32 %v2385, %v2461
        %v2464 = vmul.f32 %v2386, %v2462
        %v2465 = vpack.c.bf16 %v2463, %v2463
        %v2466 = vpack.c.bf16 %v2464, %v2464
        %v2468 = vperm.slane %v770, 0
        %v2502 = vunpack.c.l.b16 %v737
        %v2503 = vunpack.c.l.b16 %v738
        %v2504 = vunpack.c.l.b16 %v739
        %v2505 = vunpack.c.l.b16 %v740
        %v2506 = vunpack.c.l.b16 %v741
        %v2507 = vunpack.c.l.b16 %v742
        %v2508 = vunpack.c.l.b16 %v743
        %v2509 = vunpack.c.l.b16 %v744
        %v2510 = vunpack.c.l.b16 %v745
        %v2511 = vunpack.c.l.b16 %v746
        %v2512 = vunpack.c.l.b16 %v747
        %v2513 = vunpack.c.l.b16 %v748
        %v2514 = vunpack.c.l.b16 %v749
        %v2515 = vunpack.c.l.b16 %v750
        %v2516 = vunpack.c.l.b16 %v751
        %v2517 = vunpack.c.l.b16 %v752
        %v2518 = vunpack.c.l.b16 %v753
        %v2519 = vunpack.c.l.b16 %v754
        %v2520 = vunpack.c.l.b16 %v755
        %v2521 = vunpack.c.l.b16 %v756
        %v2522 = vunpack.c.l.b16 %v757
        %v2523 = vunpack.c.l.b16 %v758
        %v2524 = vunpack.c.l.b16 %v759
        %v2525 = vunpack.c.l.b16 %v760
        %v2526 = vunpack.c.l.b16 %v761
        %v2527 = vunpack.c.l.b16 %v762
        %v2528 = vunpack.c.l.b16 %v763
        %v2529 = vunpack.c.l.b16 %v764
        %v2530 = vunpack.c.l.b16 %v765
        %v2531 = vunpack.c.l.b16 %v766
        %v2532 = vunpack.c.l.b16 %v767
        %v2533 = vunpack.c.l.b16 %v768
        %v2534 = vpack.c.b16 %v2503, %v2502
        %v2535 = vpack.c.b16 %v2505, %v2504
        %v2536 = vpack.c.b16 %v2507, %v2506
        %v2537 = vpack.c.b16 %v2509, %v2508
        %v2538 = vpack.c.b16 %v2511, %v2510
        %v2539 = vpack.c.b16 %v2513, %v2512
        %v2540 = vpack.c.b16 %v2515, %v2514
        %v2541 = vpack.c.b16 %v2517, %v2516
        %v2542 = vpack.c.b16 %v2519, %v2518
        %v2543 = vpack.c.b16 %v2521, %v2520
        %v2544 = vpack.c.b16 %v2523, %v2522
        %v2545 = vpack.c.b16 %v2525, %v2524
        %v2546 = vpack.c.b16 %v2527, %v2526
        %v2547 = vpack.c.b16 %v2529, %v2528
        %v2548 = vpack.c.b16 %v2531, %v2530
        %v2549 = vpack.c.b16 %v2533, %v2532
        %2566 = vmatpush.bf16.msra.mxu0 %v2541
        %2567 = vmatpush.bf16.msra.mxu0 %v2540
        %2568 = vmatpush.bf16.msra.mxu0 %v2539
        %2569 = vmatpush.bf16.msra.mxu0 %v2538
        %2570 = vmatpush.bf16.msra.mxu0 %v2537
        %2571 = vmatpush.bf16.msra.mxu0 %v2536
        %2572 = vmatpush.bf16.msra.mxu0 %v2535
        %2573 = vmatpush.bf16.msra.mxu0 %v2534
        %2574 = vmatmul.bf16.gmra.mxu0 %v2465
        %v2575 = vpop.f32.mrf.mxu0
        %v2576 = vadd.f32 %v2468, %v2575
        %v2577 = vpop.f32.mrf.mxu0
        %2578 = vdwg.mxu0
        %2579 = vmatpush.bf16.msra.mxu0 %v2549
        %2580 = vmatpush.bf16.msra.mxu0 %v2548
        %2581 = vmatpush.bf16.msra.mxu0 %v2547
        %2582 = vmatpush.bf16.msra.mxu0 %v2546
        %2583 = vmatpush.bf16.msra.mxu0 %v2545
        %2584 = vmatpush.bf16.msra.mxu0 %v2544
        %2585 = vmatpush.bf16.msra.mxu0 %v2543
        %2586 = vmatpush.bf16.msra.mxu0 %v2542
        %2587 = vmatmul.bf16.gmra.mxu0 %v2466
        %v2588 = vpop.f32.mrf.mxu0
        %v2589 = vadd.f32 %v2576, %v2588
        %v2590 = vpop.f32.mrf.mxu0
        %2591 = vdwg.mxu0
        %v2592 = vadd.f32 %v2244, %v2589
        %2593 = vst [vmem:[%s562] sm:$0xff] %v2592
        %s2594 = sand.u32 %s298, 1
        %s2595 = scalar_lea.sflag [#allocation4], %s2594
        %s2596 = sand.u32 %s298, 1
        %s2597 = smul.addr %s2596, 8
        %s2598 = scalar_lea.vmem [#allocation17], %s2597
        // Predicated region
        $region105: #{tpu_custom_call.1} parent=67 // pred_check
          %p2599 = pneg %p308
        $region106: #{tpu_custom_call.1} parent=67 // pred_check_branch
          %2601 = sbr.rel (%p2599) target = $region108
        $region107: #{tpu_custom_call.1} parent=67 // pred_region
          %2603 = vsyncadd %s2595, 0
          %s2604 = smul.addr %s33, 8
          %s2605 = scalar_lea.hbm %s12, %s2604
          %s2607 = sshll.u32 %s2598, 4
          %s2608 = int_to_ptr.vmem [resolvable:$true] %s2607
          %s2609 = sshll.u32 %s2605, 4
          %s2610 = int_to_ptr.hbm [resolvable:$true] %s2609
          %2612 = dma.vmem_to_hbm [thread:$0]  %s2608, 128, %s2610, %s2595
        $region108: #{tpu_custom_call.1} parent=67 // pred_fallthru
          _
      $region68: #{tpu_custom_call.1} parent=5 // pred_fallthru
        _
      %p2613 = scmp.le.s32.totalorder 2, %s28
      // Predicated region
      $region109: #{tpu_custom_call.1} parent=5 // pred_check
        %p2614 = pneg %p2613
      $region110: #{tpu_custom_call.1} parent=5 // pred_check_branch
        %2616 = sbr.rel (%p2614) target = $region112
      $region111: #{tpu_custom_call.1} parent=5 // pred_region
        %s2617 = ssub.s32 %s28, 2
        // Predicated region
        $region113: #{tpu_custom_call.1} parent=111 // pred_check
          %p2618 = pneg %p314
        $region114: #{tpu_custom_call.1} parent=111 // pred_check_branch
          %2620 = sbr.rel (%p2618) target = $region116
        $region115: #{tpu_custom_call.1} parent=111 // pred_region
          %s2621 = sand.u32 %s299, 1
          %s2622 = scalar_lea.sflag [#allocation4], %s2621
          %s2623 = sand.u32 %s299, 1
          %s2624 = smul.addr %s2623, 8
          %s2625 = scalar_lea.vmem [#allocation17], %s2624
          %2627 = dma.done %s2622, 128
        $region116: #{tpu_custom_call.1} parent=111 // pred_fallthru
          _
      $region112: #{tpu_custom_call.1} parent=5 // pred_fallthru
        _
    $region6: #{tpu_custom_call.1} parent=1 // loop_footer
      %s32 = sadd.s32 1, %s28
    $region7: #{tpu_custom_call.1} parent=1 // loop_footer_branch
      %27 = sbr.rel target = $region3
    $region8: #{tpu_custom_call.1} parent=1 // loop_exit
      _
    %2628 = vsyncpa [#allocation3], 1
    %s2629 = scalar_lea.sflag [#allocation3], 1
    %2630 = vsyncpa %s2629, 1
    %2631 = vsyncpa [#allocation6], 1
    %2632 = vsyncpa [#allocation9], 1
    %2633 = vsyncpa [#allocation12], 1
    %2634 = vsyncpa [#allocation15], 1
    %2635 = vsyncpa [#allocation4], 1
    %s2636 = scalar_lea.sflag [#allocation4], 1
    %2637 = vsyncpa %s2636, 1

</llo_original>
